<compile_context>
chip_gen: v7x
topology: tpu7x:2x2x1
jax: 0.10.0
libtpu: 0.0.40
codegen_flags: <defaults>
</compile_context>

<pallas_src>
import math

import jax
import jax.numpy as jnp
from jax.experimental import pallas as pl
from jax.experimental.pallas import tpu as pltpu

# ----------------------------- model config ---------------------------------
B = 2                      # batch
C = 3                      # image channels
IMG = 16                   # spatial size (H = W)
PATCH = 4                  # patch size
NP = (IMG // PATCH) ** 2   # 16 patches
S = NP + 1                 # +CLS -> 17 tokens
S_PAD = 24                 # per-batch block padded to a multiple of 8 sublanes
BSP = B * S_PAD            # 48 rows in the fused token slab
D = 32                     # hidden size
NH = 4                     # attention heads
HD = D // NH               # head dim = 8
M = 64                     # MLP intermediate size
LAYERS = 2
EPS = 1e-12                # HF ViT LayerNorm eps
PD = C * PATCH * PATCH     # flattened patch dim = 48
NEG_INF = -1e30
CLS_ROW = NP               # row index of the CLS token inside each padded block


# ----------------------------- kernel helpers --------------------------------
def _layernorm(x, gamma, beta):
    # constant 1/D (power of two -> exact); two lane reductions total
    inv_d = 1.0 / x.shape[-1]
    mu = jnp.sum(x, axis=-1, keepdims=True) * inv_d
    xc = x - mu
    var = jnp.sum(xc * xc, axis=-1, keepdims=True) * inv_d
    return xc * jax.lax.rsqrt(var + EPS) * gamma + beta


def _gelu_exact(x):
    return 0.5 * x * (1.0 + jax.lax.erf(x * (1.0 / math.sqrt(2.0))))


# ----------------------------- fused ViT kernel -------------------------------
def vit_fused_kernel(patches_ref, pw_ref, pb_ref, cls_ref, pos_ref,
                     ln1_ref, wqkv_ref, bqkv_ref, wo_ref, bo_ref,
                     ln2_ref, w1_ref, b1_ref, w2_ref, b2_ref, fln_ref,
                     o_ref, x_scr):
    f32 = jnp.float32

    # ---- patch embedding for the whole batch: (B*NP, PD) @ (PD, D) ----------
    pe = jnp.dot(patches_ref[...], pw_ref[...],
                 preferred_element_type=f32) + pb_ref[...]            # (B*NP, D)

    # ---- assemble padded token slab in VMEM scratch ---------------------------
    # per-batch block rows: [0..NP-1]=patches, [NP]=CLS, [NP+1..S_PAD-1]=zero pad
    # pos_ref is already permuted host-side to this order ([pos[1:], pos[0]]).
    x_scr[...] = jnp.zeros((BSP, D), f32)
    for b in range(B):
        base = b * S_PAD
        x_scr[pl.ds(base, NP), :] = (pe[b * NP:(b + 1) * NP, :]
                                     + pos_ref[pl.ds(0, NP), :])
        x_scr[pl.ds(base + CLS_ROW, 1), :] = cls_ref[...] + pos_ref[pl.ds(NP, 1), :]
    x = x_scr[...]                                                    # (BSP, D)

    # ---- static block-diagonal attention mask (also masks pad keys) ----------
    ri = jax.lax.broadcasted_iota(jnp.int32, (BSP, BSP), 0)
    ci = jax.lax.broadcasted_iota(jnp.int32, (BSP, BSP), 1)
    valid = None
    for b in range(B):
        r0 = b * S_PAD
        blk = (ri >= r0) & (ri < r0 + S_PAD) & (ci >= r0) & (ci < r0 + S)
        valid = blk if valid is None else (valid | blk)
    attn_bias = jnp.where(valid, 0.0, NEG_INF).astype(f32)            # (BSP, BSP)

    scale = 1.0 / math.sqrt(HD)

    for l in range(LAYERS):                                           # static unroll
        # ---- multi-head self-attention (pre-norm) ----
        ln1 = ln1_ref[l]                                              # (2, D)
        h = _layernorm(x, ln1[0], ln1[1])
        qkv = jnp.dot(h, wqkv_ref[l], preferred_element_type=f32) + bqkv_ref[l]
        q = qkv[:, 0 * D:1 * D]
        k = qkv[:, 1 * D:2 * D]
        v = qkv[:, 2 * D:3 * D]

        head_outs = []
        for hh in range(NH):                                          # static unroll
            sl = slice(hh * HD, (hh + 1) * HD)
            s = (jnp.dot(q[:, sl], k[:, sl].T, preferred_element_type=f32)
                 * scale + attn_bias)
            s = s - jnp.max(s, axis=-1, keepdims=True)
            p = jnp.exp(s)
            # exact divide: approx reciprocal could endanger the 1e-4 check
            p = p / jnp.sum(p, axis=-1, keepdims=True)
            head_outs.append(jnp.dot(p, v[:, sl], preferred_element_type=f32))
        attn = jnp.concatenate(head_outs, axis=-1)                    # (BSP, D)
        attn = jnp.dot(attn, wo_ref[l], preferred_element_type=f32) + bo_ref[l]
        x = x + attn

        # ---- MLP (pre-norm) ----
        ln2 = ln2_ref[l]
        h2 = _layernorm(x, ln2[0], ln2[1])
        mm = jnp.dot(h2, w1_ref[l], preferred_element_type=f32) + b1_ref[l]
        mm = _gelu_exact(mm)
        x = x + jnp.dot(mm, w2_ref[l], preferred_element_type=f32) + b2_ref[l]

    # ---- final LayerNorm on the CLS rows only; write (B, D) -------------------
    fln = fln_ref[...]
    for b in range(B):
        r0 = b * S_PAD + CLS_ROW                                      # 16, 40 (aligned)
        row = x[r0:r0 + 1, :]                                         # (1, D)
        o_ref[pl.ds(b, 1), :] = _layernorm(row, fln[0], fln[1]).astype(o_ref.dtype)


# ----------------------------- host-side wrapper ------------------------------
def extract_patches(images):
    # images: (B, C, H, W) NCHW  ->  (B, NP, C*ph*pw), (C, ph, pw) flatten order
    b, c, h, w = images.shape
    gh, gw = h // PATCH, w // PATCH
    x = images.reshape(b, c, gh, PATCH, gw, PATCH)
    x = jnp.transpose(x, (0, 2, 4, 1, 3, 5))            # (B, gh, gw, C, ph, pw)
    return x.reshape(b, gh * gw, c * PATCH * PATCH)


@jax.jit
def image_encoder_forward(images, params):
    """Equivalent of ImageEncoder.forward(street=images): returns CLS features."""
    patches = extract_patches(images).reshape(B * NP, PD)             # (B*NP, PD)
    # permute pos to the kernel's per-block token order: [patch pos..., CLS pos]
    pos_perm = jnp.concatenate([params["pos"][1:], params["pos"][:1]], axis=0)

    args = (patches, params["patch_w"], params["patch_b"], params["cls"], pos_perm,
            params["ln1"], params["wqkv"], params["bqkv"], params["wo"], params["bo"],
            params["ln2"], params["w1"], params["b1"], params["w2"], params["b2"],
            params["final_ln"])
    vmem = pl.BlockSpec(memory_space=pltpu.MemorySpace.VMEM)
    return pl.pallas_call(
        vit_fused_kernel,
        out_shape=jax.ShapeDtypeStruct((B, D), jnp.float32),
        in_specs=[vmem] * len(args),
        out_specs=vmem,
        scratch_shapes=[pltpu.VMEM((BSP, D), jnp.float32)],
    )(*args)


# ----------------------------- pure-JAX reference -----------------------------
def reference_forward(images, params):
    patches = extract_patches(images)                                 # (B, NP, PD)
    x = patches @ params["patch_w"] + params["patch_b"]
    cls = jnp.broadcast_to(params["cls"][None], (B, 1, D))
    x = jnp.concatenate([cls, x], axis=1) + params["pos"][None]

    def ln(v, gb):
        mu = jnp.mean(v, axis=-1, keepdims=True)
        var = jnp.mean((v - mu) ** 2, axis=-1, keepdims=True)
        return (v - mu) * jax.lax.rsqrt(var + EPS) * gb[0] + gb[1]

    for l in range(LAYERS):
        h = ln(x, params["ln1"][l])
        qkv = h @ params["wqkv"][l] + params["bqkv"][l]
        q, k, v = qkv[..., :D], qkv[..., D:2 * D], qkv[..., 2 * D:]
        outs = []
        for hd in range(NH):
            sl = slice(hd * HD, (hd + 1) * HD)
            s = jnp.einsum("bqd,bkd->bqk", q[..., sl], k[..., sl]) / math.sqrt(HD)
            p = jax.nn.softmax(s, axis=-1)
            outs.append(jnp.einsum("bqk,bkd->bqd", p, v[..., sl]))
        attn = jnp.concatenate(outs, axis=-1) @ params["wo"][l] + params["bo"][l]
        x = x + attn
        h2 = ln(x, params["ln2"][l])
        mm = h2 @ params["w1"][l] + params["b1"][l]
        mm = 0.5 * mm * (1.0 + jax.lax.erf(mm / math.sqrt(2.0)))
        x = x + mm @ params["w2"][l] + params["b2"][l]
    x = ln(x, params["final_ln"])
    return x[:, 0, :]


# ----------------------------- params -----------------------------------------
def init_params(key):
    # TODO(synk): AutoModel.from_pretrained checkpoint loading has no in-script
    # equivalent; deterministic synthetic ViT weights are used instead.
    keys = jax.random.split(key, 4 + LAYERS * 8)
    ki = iter(keys)
    std = 0.02

    def nrm(shape):
        return jax.random.normal(next(ki), shape, jnp.float32) * std

    def ln_pair():
        return jnp.stack([jnp.ones((D,), jnp.float32), jnp.zeros((D,), jnp.float32)])

    params = {
        "patch_w": nrm((PD, D)),
        "patch_b": nrm((1, D)),
        "cls": nrm((1, D)),
        "pos": nrm((S, D)),
        "final_ln": ln_pair(),
        "ln1": jnp.stack([ln_pair() for _ in range(LAYERS)]),
        "ln2": jnp.stack([ln_pair() for _ in range(LAYERS)]),
        "wqkv": jnp.stack([nrm((D, 3 * D)) for _ in range(LAYERS)]),
        "bqkv": jnp.stack([nrm((1, 3 * D)) for _ in range(LAYERS)]),
        "wo": jnp.stack([nrm((D, D)) for _ in range(LAYERS)]),
        "bo": jnp.stack([nrm((1, D)) for _ in range(LAYERS)]),
        "w1": jnp.stack([nrm((D, M)) for _ in range(LAYERS)]),
        "b1": jnp.stack([nrm((1, M)) for _ in range(LAYERS)]),
        "w2": jnp.stack([nrm((M, D)) for _ in range(LAYERS)]),
        "b2": jnp.stack([nrm((1, D)) for _ in range(LAYERS)]),
    }
    return params


# ----------------------------- main --------------------------------------------
if __name__ == "__main__":
    key = jax.random.PRNGKey(0)
    k_img, k_par = jax.random.split(key)
    images = jax.random.normal(k_img, (B, C, IMG, IMG), jnp.float32)  # NCHW
    params = init_params(k_par)

    feats = jax.block_until_ready(image_encoder_forward(images, params))
    assert feats.shape == (B, D), feats.shape

    ref = reference_forward(images, params)
    assert jnp.allclose(feats, ref, atol=1e-4, rtol=1e-4), (
        float(jnp.max(jnp.abs(feats - ref))))

    print("KERNEL_OK")
</pallas_src>

<mosaic_0001>
module attributes {stable_mosaic.version = 11 : i64} {
  func.func @vit_fused_kernel(%arg0: memref<32x48xf32, #tpu.memory_space<vmem>>, %arg1: memref<48x32xf32, #tpu.memory_space<vmem>>, %arg2: memref<1x32xf32, #tpu.memory_space<vmem>>, %arg3: memref<1x32xf32, #tpu.memory_space<vmem>>, %arg4: memref<17x32xf32, #tpu.memory_space<vmem>>, %arg5: memref<2x2x32xf32, #tpu.memory_space<vmem>>, %arg6: memref<2x32x96xf32, #tpu.memory_space<vmem>>, %arg7: memref<2x1x96xf32, #tpu.memory_space<vmem>>, %arg8: memref<2x32x32xf32, #tpu.memory_space<vmem>>, %arg9: memref<2x1x32xf32, #tpu.memory_space<vmem>>, %arg10: memref<2x2x32xf32, #tpu.memory_space<vmem>>, %arg11: memref<2x32x64xf32, #tpu.memory_space<vmem>>, %arg12: memref<2x1x64xf32, #tpu.memory_space<vmem>>, %arg13: memref<2x64x32xf32, #tpu.memory_space<vmem>>, %arg14: memref<2x1x32xf32, #tpu.memory_space<vmem>>, %arg15: memref<2x32xf32, #tpu.memory_space<vmem>>, %arg16: memref<2x32xf32, #tpu.memory_space<vmem>>, %arg17: memref<48x32xf32, #tpu.memory_space<vmem>>) attributes {dimension_semantics = [], scalar_prefetch = 0 : i64, scratch_operands = 1 : i64, tpu.core_type = #tpu.core_type<tc>} {
    %c0 = arith.constant 0 : index
    %c0_0 = arith.constant 0 : index
    %0 = vector.load %arg0[%c0, %c0_0] : memref<32x48xf32, #tpu.memory_space<vmem>>, vector<32x48xf32>
    %c0_1 = arith.constant 0 : index
    %c0_2 = arith.constant 0 : index
    %1 = vector.load %arg1[%c0_1, %c0_2] : memref<48x32xf32, #tpu.memory_space<vmem>>, vector<48x32xf32>
    %cst = arith.constant dense<0.000000e+00> : vector<32x32xf32>
    %2 = tpu.matmul %0, %1, %cst {dimension_numbers = #tpu.dot_dimension_numbers<[1], [0], [0], [1], [0, 0, 1, 1], [], []>} : vector<32x48xf32>, vector<48x32xf32>, vector<32x32xf32> -> vector<32x32xf32>
    %c0_3 = arith.constant 0 : index
    %c0_4 = arith.constant 0 : index
    %3 = vector.load %arg2[%c0_3, %c0_4] : memref<1x32xf32, #tpu.memory_space<vmem>>, vector<1x32xf32>
    %4 = vector.broadcast %3 : vector<1x32xf32> to vector<32x32xf32>
    %5 = arith.addf %2, %4 : vector<32x32xf32>
    %cst_5 = arith.constant 0.000000e+00 : f32
    %6 = vector.broadcast %cst_5 : f32 to vector<48x32xf32>
    %c0_6 = arith.constant 0 : index
    %c0_7 = arith.constant 0 : index
    %7 = vector.load %arg17[%c0_6, %c0_7] : memref<48x32xf32, #tpu.memory_space<vmem>>, vector<48x32xf32>
    tpu.vector_store %arg17[%c0_6, %c0_7], %6 {strides = array<i32>} : memref<48x32xf32, #tpu.memory_space<vmem>>, vector<48x32xf32>,
    %8 = vector.extract_strided_slice %5 {offsets = [0, 0], sizes = [16, 32], strides = [1, 1]} : vector<32x32xf32> to vector<16x32xf32>
    %c0_8 = arith.constant 0 : index
    %c0_9 = arith.constant 0 : index
    %9 = vector.load %arg4[%c0_8, %c0_9] : memref<17x32xf32, #tpu.memory_space<vmem>>, vector<16x32xf32>
    %10 = arith.addf %8, %9 : vector<16x32xf32>
    %c0_10 = arith.constant 0 : index
    %c0_11 = arith.constant 0 : index
    %11 = vector.load %arg17[%c0_10, %c0_11] : memref<48x32xf32, #tpu.memory_space<vmem>>, vector<16x32xf32>
    tpu.vector_store %arg17[%c0_10, %c0_11], %10 {strides = array<i32>} : memref<48x32xf32, #tpu.memory_space<vmem>>, vector<16x32xf32>,
    %c0_12 = arith.constant 0 : index
    %c0_13 = arith.constant 0 : index
    %12 = vector.load %arg3[%c0_12, %c0_13] : memref<1x32xf32, #tpu.memory_space<vmem>>, vector<1x32xf32>
    %c16 = arith.constant 16 : index
    %c0_14 = arith.constant 0 : index
    %13 = vector.load %arg4[%c16, %c0_14] : memref<17x32xf32, #tpu.memory_space<vmem>>, vector<1x32xf32>
    %14 = arith.addf %12, %13 : vector<1x32xf32>
    %c16_15 = arith.constant 16 : index
    %c0_16 = arith.constant 0 : index
    %15 = vector.load %arg17[%c16_15, %c0_16] : memref<48x32xf32, #tpu.memory_space<vmem>>, vector<1x32xf32>
    tpu.vector_store %arg17[%c16_15, %c0_16], %14 {strides = array<i32>} : memref<48x32xf32, #tpu.memory_space<vmem>>, vector<1x32xf32>,
    %16 = vector.extract_strided_slice %5 {offsets = [16, 0], sizes = [16, 32], strides = [1, 1]} : vector<32x32xf32> to vector<16x32xf32>
    %c0_17 = arith.constant 0 : index
    %c0_18 = arith.constant 0 : index
    %17 = vector.load %arg4[%c0_17, %c0_18] : memref<17x32xf32, #tpu.memory_space<vmem>>, vector<16x32xf32>
    %18 = arith.addf %16, %17 : vector<16x32xf32>
    %c24 = arith.constant 24 : index
    %c0_19 = arith.constant 0 : index
    %19 = vector.load %arg17[%c24, %c0_19] : memref<48x32xf32, #tpu.memory_space<vmem>>, vector<16x32xf32>
    tpu.vector_store %arg17[%c24, %c0_19], %18 {strides = array<i32>} : memref<48x32xf32, #tpu.memory_space<vmem>>, vector<16x32xf32>,
    %c0_20 = arith.constant 0 : index
    %c0_21 = arith.constant 0 : index
    %20 = vector.load %arg3[%c0_20, %c0_21] : memref<1x32xf32, #tpu.memory_space<vmem>>, vector<1x32xf32>
    %c16_22 = arith.constant 16 : index
    %c0_23 = arith.constant 0 : index
    %21 = vector.load %arg4[%c16_22, %c0_23] : memref<17x32xf32, #tpu.memory_space<vmem>>, vector<1x32xf32>
    %22 = arith.addf %20, %21 : vector<1x32xf32>
    %c40 = arith.constant 40 : index
    %c0_24 = arith.constant 0 : index
    %23 = vector.load %arg17[%c40, %c0_24] : memref<48x32xf32, #tpu.memory_space<vmem>>, vector<1x32xf32>
    tpu.vector_store %arg17[%c40, %c0_24], %22 {strides = array<i32>} : memref<48x32xf32, #tpu.memory_space<vmem>>, vector<1x32xf32>,
    %c0_25 = arith.constant 0 : index
    %c0_26 = arith.constant 0 : index
    %24 = vector.load %arg17[%c0_25, %c0_26] : memref<48x32xf32, #tpu.memory_space<vmem>>, vector<48x32xf32>
    %25 = tpu.iota {dimensions = array<i32: 0>} : vector<48x48xi32>
    %26 = tpu.iota {dimensions = array<i32: 1>} : vector<48x48xi32>
    %c0_i32 = arith.constant 0 : i32
    %27 = vector.broadcast %c0_i32 : i32 to vector<48x48xi32>
    %28 = arith.cmpi sge, %25, %27 : vector<48x48xi32>
    %c24_i32 = arith.constant 24 : i32
    %29 = vector.broadcast %c24_i32 : i32 to vector<48x48xi32>
    %30 = arith.cmpi slt, %25, %29 : vector<48x48xi32>
    %31 = arith.andi %28, %30 : vector<48x48xi1>
    %c0_i32_27 = arith.constant 0 : i32
    %32 = vector.broadcast %c0_i32_27 : i32 to vector<48x48xi32>
    %33 = arith.cmpi sge, %26, %32 : vector<48x48xi32>
    %34 = arith.andi %31, %33 : vector<48x48xi1>
    %c17_i32 = arith.constant 17 : i32
    %35 = vector.broadcast %c17_i32 : i32 to vector<48x48xi32>
    %36 = arith.cmpi slt, %26, %35 : vector<48x48xi32>
    %37 = arith.andi %34, %36 : vector<48x48xi1>
    %c24_i32_28 = arith.constant 24 : i32
    %38 = vector.broadcast %c24_i32_28 : i32 to vector<48x48xi32>
    %39 = arith.cmpi sge, %25, %38 : vector<48x48xi32>
    %c48_i32 = arith.constant 48 : i32
    %40 = vector.broadcast %c48_i32 : i32 to vector<48x48xi32>
    %41 = arith.cmpi slt, %25, %40 : vector<48x48xi32>
    %42 = arith.andi %39, %41 : vector<48x48xi1>
    %c24_i32_29 = arith.constant 24 : i32
    %43 = vector.broadcast %c24_i32_29 : i32 to vector<48x48xi32>
    %44 = arith.cmpi sge, %26, %43 : vector<48x48xi32>
    %45 = arith.andi %42, %44 : vector<48x48xi1>
    %c41_i32 = arith.constant 41 : i32
    %46 = vector.broadcast %c41_i32 : i32 to vector<48x48xi32>
    %47 = arith.cmpi slt, %26, %46 : vector<48x48xi32>
    %48 = arith.andi %45, %47 : vector<48x48xi1>
    %49 = arith.ori %37, %48 : vector<48x48xi1>
    %cst_30 = arith.constant 0.000000e+00 : f32
    %cst_31 = arith.constant -1.000000e+30 : f32
    %50 = vector.broadcast %cst_30 : f32 to vector<48x48xf32>
    %51 = vector.broadcast %cst_31 : f32 to vector<48x48xf32>
    %52 = arith.select %49, %50, %51 : vector<48x48xi1>, vector<48x48xf32>
    %c0_32 = arith.constant 0 : index
    %c0_33 = arith.constant 0 : index
    %c0_34 = arith.constant 0 : index
    %53 = vector.load %arg5[%c0_32, %c0_33, %c0_34] : memref<2x2x32xf32, #tpu.memory_space<vmem>>, vector<1x2x32xf32>
    %54 = vector.shape_cast %53 : vector<1x2x32xf32> to vector<2x32xf32>
    %55 = vector.extract_strided_slice %54 {offsets = [0, 0], sizes = [1, 32], strides = [1, 1]} : vector<2x32xf32> to vector<1x32xf32>
    %56 = vector.shape_cast %55 : vector<1x32xf32> to vector<32xf32>
    %57 = vector.extract_strided_slice %54 {offsets = [1, 0], sizes = [1, 32], strides = [1, 1]} : vector<2x32xf32> to vector<1x32xf32>
    %58 = vector.shape_cast %57 : vector<1x32xf32> to vector<32xf32>
    %cst_35 = arith.constant dense<0.000000e+00> : vector<48xf32>
    %59 = vector.multi_reduction <add>, %24, %cst_35 [1] : vector<48x32xf32> to vector<48xf32>
    %60 = vector.shape_cast %59 : vector<48xf32> to vector<48x1xf32>
    %cst_36 = arith.constant 3.125000e-02 : f32
    %61 = vector.broadcast %cst_36 : f32 to vector<48x1xf32>
    %62 = arith.mulf %60, %61 : vector<48x1xf32>
    %63 = vector.broadcast %62 : vector<48x1xf32> to vector<48x32xf32>
    %64 = arith.subf %24, %63 : vector<48x32xf32>
    %65 = arith.mulf %64, %64 : vector<48x32xf32>
    %cst_37 = arith.constant dense<0.000000e+00> : vector<48xf32>
    %66 = vector.multi_reduction <add>, %65, %cst_37 [1] : vector<48x32xf32> to vector<48xf32>
    %67 = vector.shape_cast %66 : vector<48xf32> to vector<48x1xf32>
    %cst_38 = arith.constant 3.125000e-02 : f32
    %68 = vector.broadcast %cst_38 : f32 to vector<48x1xf32>
    %69 = arith.mulf %67, %68 : vector<48x1xf32>
    %cst_39 = arith.constant 9.99999996E-13 : f32
    %70 = vector.broadcast %cst_39 : f32 to vector<48x1xf32>
    %71 = arith.addf %69, %70 : vector<48x1xf32>
    %72 = math.rsqrt %71 : vector<48x1xf32>
    %73 = vector.broadcast %72 : vector<48x1xf32> to vector<48x32xf32>
    %74 = arith.mulf %64, %73 : vector<48x32xf32>
    %75 = vector.shape_cast %56 : vector<32xf32> to vector<1x32xf32>
    %76 = vector.broadcast %75 : vector<1x32xf32> to vector<48x32xf32>
    %77 = arith.mulf %74, %76 : vector<48x32xf32>
    %78 = vector.shape_cast %58 : vector<32xf32> to vector<1x32xf32>
    %79 = vector.broadcast %78 : vector<1x32xf32> to vector<48x32xf32>
    %80 = arith.addf %77, %79 : vector<48x32xf32>
    %c0_40 = arith.constant 0 : index
    %c0_41 = arith.constant 0 : index
    %c0_42 = arith.constant 0 : index
    %81 = vector.load %arg6[%c0_40, %c0_41, %c0_42] : memref<2x32x96xf32, #tpu.memory_space<vmem>>, vector<1x32x96xf32>
    %82 = vector.shape_cast %81 : vector<1x32x96xf32> to vector<32x96xf32>
    %cst_43 = arith.constant dense<0.000000e+00> : vector<48x96xf32>
    %83 = tpu.matmul %80, %82, %cst_43 {dimension_numbers = #tpu.dot_dimension_numbers<[1], [0], [0], [1], [0, 0, 1, 1], [], []>} : vector<48x32xf32>, vector<32x96xf32>, vector<48x96xf32> -> vector<48x96xf32>
    %c0_44 = arith.constant 0 : index
    %c0_45 = arith.constant 0 : index
    %c0_46 = arith.constant 0 : index
    %84 = vector.load %arg7[%c0_44, %c0_45, %c0_46] : memref<2x1x96xf32, #tpu.memory_space<vmem>>, vector<1x1x96xf32>
    %85 = vector.shape_cast %84 : vector<1x1x96xf32> to vector<1x96xf32>
    %86 = vector.broadcast %85 : vector<1x96xf32> to vector<48x96xf32>
    %87 = arith.addf %83, %86 : vector<48x96xf32>
    %88 = vector.extract_strided_slice %87 {offsets = [0, 0], sizes = [48, 32], strides = [1, 1]} : vector<48x96xf32> to vector<48x32xf32>
    %89 = vector.extract_strided_slice %87 {offsets = [0, 32], sizes = [48, 32], strides = [1, 1]} : vector<48x96xf32> to vector<48x32xf32>
    %90 = vector.extract_strided_slice %87 {offsets = [0, 64], sizes = [48, 32], strides = [1, 1]} : vector<48x96xf32> to vector<48x32xf32>
    %91 = vector.extract_strided_slice %88 {offsets = [0, 0], sizes = [48, 8], strides = [1, 1]} : vector<48x32xf32> to vector<48x8xf32>
    %92 = vector.extract_strided_slice %89 {offsets = [0, 0], sizes = [48, 8], strides = [1, 1]} : vector<48x32xf32> to vector<48x8xf32>
    %93 = tpu.transpose %92, [1, 0] : vector<48x8xf32> -> vector<8x48xf32>
    %cst_47 = arith.constant dense<0.000000e+00> : vector<48x48xf32>
    %94 = tpu.matmul %91, %93, %cst_47 {dimension_numbers = #tpu.dot_dimension_numbers<[1], [0], [0], [1], [0, 0, 1, 1], [], []>} : vector<48x8xf32>, vector<8x48xf32>, vector<48x48xf32> -> vector<48x48xf32>
    %cst_48 = arith.constant 0.353553385 : f32
    %95 = vector.broadcast %cst_48 : f32 to vector<48x48xf32>
    %96 = arith.mulf %94, %95 : vector<48x48xf32>
    %97 = arith.addf %96, %52 : vector<48x48xf32>
    %cst_49 = arith.constant dense<0xFF800000> : vector<48xf32>
    %98 = vector.multi_reduction <maximumf>, %97, %cst_49 [1] : vector<48x48xf32> to vector<48xf32>
    %99 = vector.shape_cast %98 : vector<48xf32> to vector<48x1xf32>
    %100 = vector.broadcast %99 : vector<48x1xf32> to vector<48x48xf32>
    %101 = arith.subf %97, %100 : vector<48x48xf32>
    %102 = math.exp %101 : vector<48x48xf32>
    %cst_50 = arith.constant dense<0.000000e+00> : vector<48xf32>
    %103 = vector.multi_reduction <add>, %102, %cst_50 [1] : vector<48x48xf32> to vector<48xf32>
    %104 = vector.shape_cast %103 : vector<48xf32> to vector<48x1xf32>
    %105 = vector.broadcast %104 : vector<48x1xf32> to vector<48x48xf32>
    %106 = arith.divf %102, %105 : vector<48x48xf32>
    %107 = vector.extract_strided_slice %90 {offsets = [0, 0], sizes = [48, 8], strides = [1, 1]} : vector<48x32xf32> to vector<48x8xf32>
    %cst_51 = arith.constant dense<0.000000e+00> : vector<48x8xf32>
    %108 = tpu.matmul %106, %107, %cst_51 {dimension_numbers = #tpu.dot_dimension_numbers<[1], [0], [0], [1], [0, 0, 1, 1], [], []>} : vector<48x48xf32>, vector<48x8xf32>, vector<48x8xf32> -> vector<48x8xf32>
    %109 = vector.extract_strided_slice %88 {offsets = [0, 8], sizes = [48, 8], strides = [1, 1]} : vector<48x32xf32> to vector<48x8xf32>
    %110 = vector.extract_strided_slice %89 {offsets = [0, 8], sizes = [48, 8], strides = [1, 1]} : vector<48x32xf32> to vector<48x8xf32>
    %111 = tpu.transpose %110, [1, 0] : vector<48x8xf32> -> vector<8x48xf32>
    %cst_52 = arith.constant dense<0.000000e+00> : vector<48x48xf32>
    %112 = tpu.matmul %109, %111, %cst_52 {dimension_numbers = #tpu.dot_dimension_numbers<[1], [0], [0], [1], [0, 0, 1, 1], [], []>} : vector<48x8xf32>, vector<8x48xf32>, vector<48x48xf32> -> vector<48x48xf32>
    %cst_53 = arith.constant 0.353553385 : f32
    %113 = vector.broadcast %cst_53 : f32 to vector<48x48xf32>
    %114 = arith.mulf %112, %113 : vector<48x48xf32>
    %115 = arith.addf %114, %52 : vector<48x48xf32>
    %cst_54 = arith.constant dense<0xFF800000> : vector<48xf32>
    %116 = vector.multi_reduction <maximumf>, %115, %cst_54 [1] : vector<48x48xf32> to vector<48xf32>
    %117 = vector.shape_cast %116 : vector<48xf32> to vector<48x1xf32>
    %118 = vector.broadcast %117 : vector<48x1xf32> to vector<48x48xf32>
    %119 = arith.subf %115, %118 : vector<48x48xf32>
    %120 = math.exp %119 : vector<48x48xf32>
    %cst_55 = arith.constant dense<0.000000e+00> : vector<48xf32>
    %121 = vector.multi_reduction <add>, %120, %cst_55 [1] : vector<48x48xf32> to vector<48xf32>
    %122 = vector.shape_cast %121 : vector<48xf32> to vector<48x1xf32>
    %123 = vector.broadcast %122 : vector<48x1xf32> to vector<48x48xf32>
    %124 = arith.divf %120, %123 : vector<48x48xf32>
    %125 = vector.extract_strided_slice %90 {offsets = [0, 8], sizes = [48, 8], strides = [1, 1]} : vector<48x32xf32> to vector<48x8xf32>
    %cst_56 = arith.constant dense<0.000000e+00> : vector<48x8xf32>
    %126 = tpu.matmul %124, %125, %cst_56 {dimension_numbers = #tpu.dot_dimension_numbers<[1], [0], [0], [1], [0, 0, 1, 1], [], []>} : vector<48x48xf32>, vector<48x8xf32>, vector<48x8xf32> -> vector<48x8xf32>
    %127 = vector.extract_strided_slice %88 {offsets = [0, 16], sizes = [48, 8], strides = [1, 1]} : vector<48x32xf32> to vector<48x8xf32>
    %128 = vector.extract_strided_slice %89 {offsets = [0, 16], sizes = [48, 8], strides = [1, 1]} : vector<48x32xf32> to vector<48x8xf32>
    %129 = tpu.transpose %128, [1, 0] : vector<48x8xf32> -> vector<8x48xf32>
    %cst_57 = arith.constant dense<0.000000e+00> : vector<48x48xf32>
    %130 = tpu.matmul %127, %129, %cst_57 {dimension_numbers = #tpu.dot_dimension_numbers<[1], [0], [0], [1], [0, 0, 1, 1], [], []>} : vector<48x8xf32>, vector<8x48xf32>, vector<48x48xf32> -> vector<48x48xf32>
    %cst_58 = arith.constant 0.353553385 : f32
    %131 = vector.broadcast %cst_58 : f32 to vector<48x48xf32>
    %132 = arith.mulf %130, %131 : vector<48x48xf32>
    %133 = arith.addf %132, %52 : vector<48x48xf32>
    %cst_59 = arith.constant dense<0xFF800000> : vector<48xf32>
    %134 = vector.multi_reduction <maximumf>, %133, %cst_59 [1] : vector<48x48xf32> to vector<48xf32>
    %135 = vector.shape_cast %134 : vector<48xf32> to vector<48x1xf32>
    %136 = vector.broadcast %135 : vector<48x1xf32> to vector<48x48xf32>
    %137 = arith.subf %133, %136 : vector<48x48xf32>
    %138 = math.exp %137 : vector<48x48xf32>
    %cst_60 = arith.constant dense<0.000000e+00> : vector<48xf32>
    %139 = vector.multi_reduction <add>, %138, %cst_60 [1] : vector<48x48xf32> to vector<48xf32>
    %140 = vector.shape_cast %139 : vector<48xf32> to vector<48x1xf32>
    %141 = vector.broadcast %140 : vector<48x1xf32> to vector<48x48xf32>
    %142 = arith.divf %138, %141 : vector<48x48xf32>
    %143 = vector.extract_strided_slice %90 {offsets = [0, 16], sizes = [48, 8], strides = [1, 1]} : vector<48x32xf32> to vector<48x8xf32>
    %cst_61 = arith.constant dense<0.000000e+00> : vector<48x8xf32>
    %144 = tpu.matmul %142, %143, %cst_61 {dimension_numbers = #tpu.dot_dimension_numbers<[1], [0], [0], [1], [0, 0, 1, 1], [], []>} : vector<48x48xf32>, vector<48x8xf32>, vector<48x8xf32> -> vector<48x8xf32>
    %145 = vector.extract_strided_slice %88 {offsets = [0, 24], sizes = [48, 8], strides = [1, 1]} : vector<48x32xf32> to vector<48x8xf32>
    %146 = vector.extract_strided_slice %89 {offsets = [0, 24], sizes = [48, 8], strides = [1, 1]} : vector<48x32xf32> to vector<48x8xf32>
    %147 = tpu.transpose %146, [1, 0] : vector<48x8xf32> -> vector<8x48xf32>
    %cst_62 = arith.constant dense<0.000000e+00> : vector<48x48xf32>
    %148 = tpu.matmul %145, %147, %cst_62 {dimension_numbers = #tpu.dot_dimension_numbers<[1], [0], [0], [1], [0, 0, 1, 1], [], []>} : vector<48x8xf32>, vector<8x48xf32>, vector<48x48xf32> -> vector<48x48xf32>
    %cst_63 = arith.constant 0.353553385 : f32
    %149 = vector.broadcast %cst_63 : f32 to vector<48x48xf32>
    %150 = arith.mulf %148, %149 : vector<48x48xf32>
    %151 = arith.addf %150, %52 : vector<48x48xf32>
    %cst_64 = arith.constant dense<0xFF800000> : vector<48xf32>
    %152 = vector.multi_reduction <maximumf>, %151, %cst_64 [1] : vector<48x48xf32> to vector<48xf32>
    %153 = vector.shape_cast %152 : vector<48xf32> to vector<48x1xf32>
    %154 = vector.broadcast %153 : vector<48x1xf32> to vector<48x48xf32>
    %155 = arith.subf %151, %154 : vector<48x48xf32>
    %156 = math.exp %155 : vector<48x48xf32>
    %cst_65 = arith.constant dense<0.000000e+00> : vector<48xf32>
    %157 = vector.multi_reduction <add>, %156, %cst_65 [1] : vector<48x48xf32> to vector<48xf32>
    %158 = vector.shape_cast %157 : vector<48xf32> to vector<48x1xf32>
    %159 = vector.broadcast %158 : vector<48x1xf32> to vector<48x48xf32>
    %160 = arith.divf %156, %159 : vector<48x48xf32>
    %161 = vector.extract_strided_slice %90 {offsets = [0, 24], sizes = [48, 8], strides = [1, 1]} : vector<48x32xf32> to vector<48x8xf32>
    %cst_66 = arith.constant dense<0.000000e+00> : vector<48x8xf32>
    %162 = tpu.matmul %160, %161, %cst_66 {dimension_numbers = #tpu.dot_dimension_numbers<[1], [0], [0], [1], [0, 0, 1, 1], [], []>} : vector<48x48xf32>, vector<48x8xf32>, vector<48x8xf32> -> vector<48x8xf32>
    %163 = tpu.concatenate %108, %126, %144, %162 in 1 : vector<48x8xf32>, vector<48x8xf32>, vector<48x8xf32>, vector<48x8xf32> -> vector<48x32xf32>
    %c0_67 = arith.constant 0 : index
    %c0_68 = arith.constant 0 : index
    %c0_69 = arith.constant 0 : index
    %164 = vector.load %arg8[%c0_67, %c0_68, %c0_69] : memref<2x32x32xf32, #tpu.memory_space<vmem>>, vector<1x32x32xf32>
    %165 = vector.shape_cast %164 : vector<1x32x32xf32> to vector<32x32xf32>
    %cst_70 = arith.constant dense<0.000000e+00> : vector<48x32xf32>
    %166 = tpu.matmul %163, %165, %cst_70 {dimension_numbers = #tpu.dot_dimension_numbers<[1], [0], [0], [1], [0, 0, 1, 1], [], []>} : vector<48x32xf32>, vector<32x32xf32>, vector<48x32xf32> -> vector<48x32xf32>
    %c0_71 = arith.constant 0 : index
    %c0_72 = arith.constant 0 : index
    %c0_73 = arith.constant 0 : index
    %167 = vector.load %arg9[%c0_71, %c0_72, %c0_73] : memref<2x1x32xf32, #tpu.memory_space<vmem>>, vector<1x1x32xf32>
    %168 = vector.shape_cast %167 : vector<1x1x32xf32> to vector<1x32xf32>
    %169 = vector.broadcast %168 : vector<1x32xf32> to vector<48x32xf32>
    %170 = arith.addf %166, %169 : vector<48x32xf32>
    %171 = arith.addf %24, %170 : vector<48x32xf32>
    %c0_74 = arith.constant 0 : index
    %c0_75 = arith.constant 0 : index
    %c0_76 = arith.constant 0 : index
    %172 = vector.load %arg10[%c0_74, %c0_75, %c0_76] : memref<2x2x32xf32, #tpu.memory_space<vmem>>, vector<1x2x32xf32>
    %173 = vector.shape_cast %172 : vector<1x2x32xf32> to vector<2x32xf32>
    %174 = vector.extract_strided_slice %173 {offsets = [0, 0], sizes = [1, 32], strides = [1, 1]} : vector<2x32xf32> to vector<1x32xf32>
    %175 = vector.shape_cast %174 : vector<1x32xf32> to vector<32xf32>
    %176 = vector.extract_strided_slice %173 {offsets = [1, 0], sizes = [1, 32], strides = [1, 1]} : vector<2x32xf32> to vector<1x32xf32>
    %177 = vector.shape_cast %176 : vector<1x32xf32> to vector<32xf32>
    %cst_77 = arith.constant dense<0.000000e+00> : vector<48xf32>
    %178 = vector.multi_reduction <add>, %171, %cst_77 [1] : vector<48x32xf32> to vector<48xf32>
    %179 = vector.shape_cast %178 : vector<48xf32> to vector<48x1xf32>
    %cst_78 = arith.constant 3.125000e-02 : f32
    %180 = vector.broadcast %cst_78 : f32 to vector<48x1xf32>
    %181 = arith.mulf %179, %180 : vector<48x1xf32>
    %182 = vector.broadcast %181 : vector<48x1xf32> to vector<48x32xf32>
    %183 = arith.subf %171, %182 : vector<48x32xf32>
    %184 = arith.mulf %183, %183 : vector<48x32xf32>
    %cst_79 = arith.constant dense<0.000000e+00> : vector<48xf32>
    %185 = vector.multi_reduction <add>, %184, %cst_79 [1] : vector<48x32xf32> to vector<48xf32>
    %186 = vector.shape_cast %185 : vector<48xf32> to vector<48x1xf32>
    %cst_80 = arith.constant 3.125000e-02 : f32
    %187 = vector.broadcast %cst_80 : f32 to vector<48x1xf32>
    %188 = arith.mulf %186, %187 : vector<48x1xf32>
    %cst_81 = arith.constant 9.99999996E-13 : f32
    %189 = vector.broadcast %cst_81 : f32 to vector<48x1xf32>
    %190 = arith.addf %188, %189 : vector<48x1xf32>
    %191 = math.rsqrt %190 : vector<48x1xf32>
    %192 = vector.broadcast %191 : vector<48x1xf32> to vector<48x32xf32>
    %193 = arith.mulf %183, %192 : vector<48x32xf32>
    %194 = vector.shape_cast %175 : vector<32xf32> to vector<1x32xf32>
    %195 = vector.broadcast %194 : vector<1x32xf32> to vector<48x32xf32>
    %196 = arith.mulf %193, %195 : vector<48x32xf32>
    %197 = vector.shape_cast %177 : vector<32xf32> to vector<1x32xf32>
    %198 = vector.broadcast %197 : vector<1x32xf32> to vector<48x32xf32>
    %199 = arith.addf %196, %198 : vector<48x32xf32>
    %c0_82 = arith.constant 0 : index
    %c0_83 = arith.constant 0 : index
    %c0_84 = arith.constant 0 : index
    %200 = vector.load %arg11[%c0_82, %c0_83, %c0_84] : memref<2x32x64xf32, #tpu.memory_space<vmem>>, vector<1x32x64xf32>
    %201 = vector.shape_cast %200 : vector<1x32x64xf32> to vector<32x64xf32>
    %cst_85 = arith.constant dense<0.000000e+00> : vector<48x64xf32>
    %202 = tpu.matmul %199, %201, %cst_85 {dimension_numbers = #tpu.dot_dimension_numbers<[1], [0], [0], [1], [0, 0, 1, 1], [], []>} : vector<48x32xf32>, vector<32x64xf32>, vector<48x64xf32> -> vector<48x64xf32>
    %c0_86 = arith.constant 0 : index
    %c0_87 = arith.constant 0 : index
    %c0_88 = arith.constant 0 : index
    %203 = vector.load %arg12[%c0_86, %c0_87, %c0_88] : memref<2x1x64xf32, #tpu.memory_space<vmem>>, vector<1x1x64xf32>
    %204 = vector.shape_cast %203 : vector<1x1x64xf32> to vector<1x64xf32>
    %205 = vector.broadcast %204 : vector<1x64xf32> to vector<48x64xf32>
    %206 = arith.addf %202, %205 : vector<48x64xf32>
    %cst_89 = arith.constant 5.000000e-01 : f32
    %207 = vector.broadcast %cst_89 : f32 to vector<48x64xf32>
    %208 = arith.mulf %207, %206 : vector<48x64xf32>
    %cst_90 = arith.constant 0.707106769 : f32
    %209 = vector.broadcast %cst_90 : f32 to vector<48x64xf32>
    %210 = arith.mulf %206, %209 : vector<48x64xf32>
    %211 = math.erf %210 : vector<48x64xf32>
    %cst_91 = arith.constant 1.000000e+00 : f32
    %212 = vector.broadcast %cst_91 : f32 to vector<48x64xf32>
    %213 = arith.addf %212, %211 : vector<48x64xf32>
    %214 = arith.mulf %208, %213 : vector<48x64xf32>
    %c0_92 = arith.constant 0 : index
    %c0_93 = arith.constant 0 : index
    %c0_94 = arith.constant 0 : index
    %215 = vector.load %arg13[%c0_92, %c0_93, %c0_94] : memref<2x64x32xf32, #tpu.memory_space<vmem>>, vector<1x64x32xf32>
    %216 = vector.shape_cast %215 : vector<1x64x32xf32> to vector<64x32xf32>
    %cst_95 = arith.constant dense<0.000000e+00> : vector<48x32xf32>
    %217 = tpu.matmul %214, %216, %cst_95 {dimension_numbers = #tpu.dot_dimension_numbers<[1], [0], [0], [1], [0, 0, 1, 1], [], []>} : vector<48x64xf32>, vector<64x32xf32>, vector<48x32xf32> -> vector<48x32xf32>
    %218 = arith.addf %171, %217 : vector<48x32xf32>
    %c0_96 = arith.constant 0 : index
    %c0_97 = arith.constant 0 : index
    %c0_98 = arith.constant 0 : index
    %219 = vector.load %arg14[%c0_96, %c0_97, %c0_98] : memref<2x1x32xf32, #tpu.memory_space<vmem>>, vector<1x1x32xf32>
    %220 = vector.shape_cast %219 : vector<1x1x32xf32> to vector<1x32xf32>
    %221 = vector.broadcast %220 : vector<1x32xf32> to vector<48x32xf32>
    %222 = arith.addf %218, %221 : vector<48x32xf32>
    %c1 = arith.constant 1 : index
    %c0_99 = arith.constant 0 : index
    %c0_100 = arith.constant 0 : index
    %223 = vector.load %arg5[%c1, %c0_99, %c0_100] : memref<2x2x32xf32, #tpu.memory_space<vmem>>, vector<1x2x32xf32>
    %224 = vector.shape_cast %223 : vector<1x2x32xf32> to vector<2x32xf32>
    %225 = vector.extract_strided_slice %224 {offsets = [0, 0], sizes = [1, 32], strides = [1, 1]} : vector<2x32xf32> to vector<1x32xf32>
    %226 = vector.shape_cast %225 : vector<1x32xf32> to vector<32xf32>
    %227 = vector.extract_strided_slice %224 {offsets = [1, 0], sizes = [1, 32], strides = [1, 1]} : vector<2x32xf32> to vector<1x32xf32>
    %228 = vector.shape_cast %227 : vector<1x32xf32> to vector<32xf32>
    %cst_101 = arith.constant dense<0.000000e+00> : vector<48xf32>
    %229 = vector.multi_reduction <add>, %222, %cst_101 [1] : vector<48x32xf32> to vector<48xf32>
    %230 = vector.shape_cast %229 : vector<48xf32> to vector<48x1xf32>
    %cst_102 = arith.constant 3.125000e-02 : f32
    %231 = vector.broadcast %cst_102 : f32 to vector<48x1xf32>
    %232 = arith.mulf %230, %231 : vector<48x1xf32>
    %233 = vector.broadcast %232 : vector<48x1xf32> to vector<48x32xf32>
    %234 = arith.subf %222, %233 : vector<48x32xf32>
    %235 = arith.mulf %234, %234 : vector<48x32xf32>
    %cst_103 = arith.constant dense<0.000000e+00> : vector<48xf32>
    %236 = vector.multi_reduction <add>, %235, %cst_103 [1] : vector<48x32xf32> to vector<48xf32>
    %237 = vector.shape_cast %236 : vector<48xf32> to vector<48x1xf32>
    %cst_104 = arith.constant 3.125000e-02 : f32
    %238 = vector.broadcast %cst_104 : f32 to vector<48x1xf32>
    %239 = arith.mulf %237, %238 : vector<48x1xf32>
    %cst_105 = arith.constant 9.99999996E-13 : f32
    %240 = vector.broadcast %cst_105 : f32 to vector<48x1xf32>
    %241 = arith.addf %239, %240 : vector<48x1xf32>
    %242 = math.rsqrt %241 : vector<48x1xf32>
    %243 = vector.broadcast %242 : vector<48x1xf32> to vector<48x32xf32>
    %244 = arith.mulf %234, %243 : vector<48x32xf32>
    %245 = vector.shape_cast %226 : vector<32xf32> to vector<1x32xf32>
    %246 = vector.broadcast %245 : vector<1x32xf32> to vector<48x32xf32>
    %247 = arith.mulf %244, %246 : vector<48x32xf32>
    %248 = vector.shape_cast %228 : vector<32xf32> to vector<1x32xf32>
    %249 = vector.broadcast %248 : vector<1x32xf32> to vector<48x32xf32>
    %250 = arith.addf %247, %249 : vector<48x32xf32>
    %c1_106 = arith.constant 1 : index
    %c0_107 = arith.constant 0 : index
    %c0_108 = arith.constant 0 : index
    %251 = vector.load %arg6[%c1_106, %c0_107, %c0_108] : memref<2x32x96xf32, #tpu.memory_space<vmem>>, vector<1x32x96xf32>
    %252 = vector.shape_cast %251 : vector<1x32x96xf32> to vector<32x96xf32>
    %cst_109 = arith.constant dense<0.000000e+00> : vector<48x96xf32>
    %253 = tpu.matmul %250, %252, %cst_109 {dimension_numbers = #tpu.dot_dimension_numbers<[1], [0], [0], [1], [0, 0, 1, 1], [], []>} : vector<48x32xf32>, vector<32x96xf32>, vector<48x96xf32> -> vector<48x96xf32>
    %c1_110 = arith.constant 1 : index
    %c0_111 = arith.constant 0 : index
    %c0_112 = arith.constant 0 : index
    %254 = vector.load %arg7[%c1_110, %c0_111, %c0_112] : memref<2x1x96xf32, #tpu.memory_space<vmem>>, vector<1x1x96xf32>
    %255 = vector.shape_cast %254 : vector<1x1x96xf32> to vector<1x96xf32>
    %256 = vector.broadcast %255 : vector<1x96xf32> to vector<48x96xf32>
    %257 = arith.addf %253, %256 : vector<48x96xf32>
    %258 = vector.extract_strided_slice %257 {offsets = [0, 0], sizes = [48, 32], strides = [1, 1]} : vector<48x96xf32> to vector<48x32xf32>
    %259 = vector.extract_strided_slice %257 {offsets = [0, 32], sizes = [48, 32], strides = [1, 1]} : vector<48x96xf32> to vector<48x32xf32>
    %260 = vector.extract_strided_slice %257 {offsets = [0, 64], sizes = [48, 32], strides = [1, 1]} : vector<48x96xf32> to vector<48x32xf32>
    %261 = vector.extract_strided_slice %258 {offsets = [0, 0], sizes = [48, 8], strides = [1, 1]} : vector<48x32xf32> to vector<48x8xf32>
    %262 = vector.extract_strided_slice %259 {offsets = [0, 0], sizes = [48, 8], strides = [1, 1]} : vector<48x32xf32> to vector<48x8xf32>
    %263 = tpu.transpose %262, [1, 0] : vector<48x8xf32> -> vector<8x48xf32>
    %cst_113 = arith.constant dense<0.000000e+00> : vector<48x48xf32>
    %264 = tpu.matmul %261, %263, %cst_113 {dimension_numbers = #tpu.dot_dimension_numbers<[1], [0], [0], [1], [0, 0, 1, 1], [], []>} : vector<48x8xf32>, vector<8x48xf32>, vector<48x48xf32> -> vector<48x48xf32>
    %cst_114 = arith.constant 0.353553385 : f32
    %265 = vector.broadcast %cst_114 : f32 to vector<48x48xf32>
    %266 = arith.mulf %264, %265 : vector<48x48xf32>
    %267 = arith.addf %266, %52 : vector<48x48xf32>
    %cst_115 = arith.constant dense<0xFF800000> : vector<48xf32>
    %268 = vector.multi_reduction <maximumf>, %267, %cst_115 [1] : vector<48x48xf32> to vector<48xf32>
    %269 = vector.shape_cast %268 : vector<48xf32> to vector<48x1xf32>
    %270 = vector.broadcast %269 : vector<48x1xf32> to vector<48x48xf32>
    %271 = arith.subf %267, %270 : vector<48x48xf32>
    %272 = math.exp %271 : vector<48x48xf32>
    %cst_116 = arith.constant dense<0.000000e+00> : vector<48xf32>
    %273 = vector.multi_reduction <add>, %272, %cst_116 [1] : vector<48x48xf32> to vector<48xf32>
    %274 = vector.shape_cast %273 : vector<48xf32> to vector<48x1xf32>
    %275 = vector.broadcast %274 : vector<48x1xf32> to vector<48x48xf32>
    %276 = arith.divf %272, %275 : vector<48x48xf32>
    %277 = vector.extract_strided_slice %260 {offsets = [0, 0], sizes = [48, 8], strides = [1, 1]} : vector<48x32xf32> to vector<48x8xf32>
    %cst_117 = arith.constant dense<0.000000e+00> : vector<48x8xf32>
    %278 = tpu.matmul %276, %277, %cst_117 {dimension_numbers = #tpu.dot_dimension_numbers<[1], [0], [0], [1], [0, 0, 1, 1], [], []>} : vector<48x48xf32>, vector<48x8xf32>, vector<48x8xf32> -> vector<48x8xf32>
    %279 = vector.extract_strided_slice %258 {offsets = [0, 8], sizes = [48, 8], strides = [1, 1]} : vector<48x32xf32> to vector<48x8xf32>
    %280 = vector.extract_strided_slice %259 {offsets = [0, 8], sizes = [48, 8], strides = [1, 1]} : vector<48x32xf32> to vector<48x8xf32>
    %281 = tpu.transpose %280, [1, 0] : vector<48x8xf32> -> vector<8x48xf32>
    %cst_118 = arith.constant dense<0.000000e+00> : vector<48x48xf32>
    %282 = tpu.matmul %279, %281, %cst_118 {dimension_numbers = #tpu.dot_dimension_numbers<[1], [0], [0], [1], [0, 0, 1, 1], [], []>} : vector<48x8xf32>, vector<8x48xf32>, vector<48x48xf32> -> vector<48x48xf32>
    %cst_119 = arith.constant 0.353553385 : f32
    %283 = vector.broadcast %cst_119 : f32 to vector<48x48xf32>
    %284 = arith.mulf %282, %283 : vector<48x48xf32>
    %285 = arith.addf %284, %52 : vector<48x48xf32>
    %cst_120 = arith.constant dense<0xFF800000> : vector<48xf32>
    %286 = vector.multi_reduction <maximumf>, %285, %cst_120 [1] : vector<48x48xf32> to vector<48xf32>
    %287 = vector.shape_cast %286 : vector<48xf32> to vector<48x1xf32>
    %288 = vector.broadcast %287 : vector<48x1xf32> to vector<48x48xf32>
    %289 = arith.subf %285, %288 : vector<48x48xf32>
    %290 = math.exp %289 : vector<48x48xf32>
    %cst_121 = arith.constant dense<0.000000e+00> : vector<48xf32>
    %291 = vector.multi_reduction <add>, %290, %cst_121 [1] : vector<48x48xf32> to vector<48xf32>
    %292 = vector.shape_cast %291 : vector<48xf32> to vector<48x1xf32>
    %293 = vector.broadcast %292 : vector<48x1xf32> to vector<48x48xf32>
    %294 = arith.divf %290, %293 : vector<48x48xf32>
    %295 = vector.extract_strided_slice %260 {offsets = [0, 8], sizes = [48, 8], strides = [1, 1]} : vector<48x32xf32> to vector<48x8xf32>
    %cst_122 = arith.constant dense<0.000000e+00> : vector<48x8xf32>
    %296 = tpu.matmul %294, %295, %cst_122 {dimension_numbers = #tpu.dot_dimension_numbers<[1], [0], [0], [1], [0, 0, 1, 1], [], []>} : vector<48x48xf32>, vector<48x8xf32>, vector<48x8xf32> -> vector<48x8xf32>
    %297 = vector.extract_strided_slice %258 {offsets = [0, 16], sizes = [48, 8], strides = [1, 1]} : vector<48x32xf32> to vector<48x8xf32>
    %298 = vector.extract_strided_slice %259 {offsets = [0, 16], sizes = [48, 8], strides = [1, 1]} : vector<48x32xf32> to vector<48x8xf32>
    %299 = tpu.transpose %298, [1, 0] : vector<48x8xf32> -> vector<8x48xf32>
    %cst_123 = arith.constant dense<0.000000e+00> : vector<48x48xf32>
    %300 = tpu.matmul %297, %299, %cst_123 {dimension_numbers = #tpu.dot_dimension_numbers<[1], [0], [0], [1], [0, 0, 1, 1], [], []>} : vector<48x8xf32>, vector<8x48xf32>, vector<48x48xf32> -> vector<48x48xf32>
    %cst_124 = arith.constant 0.353553385 : f32
    %301 = vector.broadcast %cst_124 : f32 to vector<48x48xf32>
    %302 = arith.mulf %300, %301 : vector<48x48xf32>
    %303 = arith.addf %302, %52 : vector<48x48xf32>
    %cst_125 = arith.constant dense<0xFF800000> : vector<48xf32>
    %304 = vector.multi_reduction <maximumf>, %303, %cst_125 [1] : vector<48x48xf32> to vector<48xf32>
    %305 = vector.shape_cast %304 : vector<48xf32> to vector<48x1xf32>
    %306 = vector.broadcast %305 : vector<48x1xf32> to vector<48x48xf32>
    %307 = arith.subf %303, %306 : vector<48x48xf32>
    %308 = math.exp %307 : vector<48x48xf32>
    %cst_126 = arith.constant dense<0.000000e+00> : vector<48xf32>
    %309 = vector.multi_reduction <add>, %308, %cst_126 [1] : vector<48x48xf32> to vector<48xf32>
    %310 = vector.shape_cast %309 : vector<48xf32> to vector<48x1xf32>
    %311 = vector.broadcast %310 : vector<48x1xf32> to vector<48x48xf32>
    %312 = arith.divf %308, %311 : vector<48x48xf32>
    %313 = vector.extract_strided_slice %260 {offsets = [0, 16], sizes = [48, 8], strides = [1, 1]} : vector<48x32xf32> to vector<48x8xf32>
    %cst_127 = arith.constant dense<0.000000e+00> : vector<48x8xf32>
    %314 = tpu.matmul %312, %313, %cst_127 {dimension_numbers = #tpu.dot_dimension_numbers<[1], [0], [0], [1], [0, 0, 1, 1], [], []>} : vector<48x48xf32>, vector<48x8xf32>, vector<48x8xf32> -> vector<48x8xf32>
    %315 = vector.extract_strided_slice %258 {offsets = [0, 24], sizes = [48, 8], strides = [1, 1]} : vector<48x32xf32> to vector<48x8xf32>
    %316 = vector.extract_strided_slice %259 {offsets = [0, 24], sizes = [48, 8], strides = [1, 1]} : vector<48x32xf32> to vector<48x8xf32>
    %317 = tpu.transpose %316, [1, 0] : vector<48x8xf32> -> vector<8x48xf32>
    %cst_128 = arith.constant dense<0.000000e+00> : vector<48x48xf32>
    %318 = tpu.matmul %315, %317, %cst_128 {dimension_numbers = #tpu.dot_dimension_numbers<[1], [0], [0], [1], [0, 0, 1, 1], [], []>} : vector<48x8xf32>, vector<8x48xf32>, vector<48x48xf32> -> vector<48x48xf32>
    %cst_129 = arith.constant 0.353553385 : f32
    %319 = vector.broadcast %cst_129 : f32 to vector<48x48xf32>
    %320 = arith.mulf %318, %319 : vector<48x48xf32>
    %321 = arith.addf %320, %52 : vector<48x48xf32>
    %cst_130 = arith.constant dense<0xFF800000> : vector<48xf32>
    %322 = vector.multi_reduction <maximumf>, %321, %cst_130 [1] : vector<48x48xf32> to vector<48xf32>
    %323 = vector.shape_cast %322 : vector<48xf32> to vector<48x1xf32>
    %324 = vector.broadcast %323 : vector<48x1xf32> to vector<48x48xf32>
    %325 = arith.subf %321, %324 : vector<48x48xf32>
    %326 = math.exp %325 : vector<48x48xf32>
    %cst_131 = arith.constant dense<0.000000e+00> : vector<48xf32>
    %327 = vector.multi_reduction <add>, %326, %cst_131 [1] : vector<48x48xf32> to vector<48xf32>
    %328 = vector.shape_cast %327 : vector<48xf32> to vector<48x1xf32>
    %329 = vector.broadcast %328 : vector<48x1xf32> to vector<48x48xf32>
    %330 = arith.divf %326, %329 : vector<48x48xf32>
    %331 = vector.extract_strided_slice %260 {offsets = [0, 24], sizes = [48, 8], strides = [1, 1]} : vector<48x32xf32> to vector<48x8xf32>
    %cst_132 = arith.constant dense<0.000000e+00> : vector<48x8xf32>
    %332 = tpu.matmul %330, %331, %cst_132 {dimension_numbers = #tpu.dot_dimension_numbers<[1], [0], [0], [1], [0, 0, 1, 1], [], []>} : vector<48x48xf32>, vector<48x8xf32>, vector<48x8xf32> -> vector<48x8xf32>
    %333 = tpu.concatenate %278, %296, %314, %332 in 1 : vector<48x8xf32>, vector<48x8xf32>, vector<48x8xf32>, vector<48x8xf32> -> vector<48x32xf32>
    %c1_133 = arith.constant 1 : index
    %c0_134 = arith.constant 0 : index
    %c0_135 = arith.constant 0 : index
    %334 = vector.load %arg8[%c1_133, %c0_134, %c0_135] : memref<2x32x32xf32, #tpu.memory_space<vmem>>, vector<1x32x32xf32>
    %335 = vector.shape_cast %334 : vector<1x32x32xf32> to vector<32x32xf32>
    %cst_136 = arith.constant dense<0.000000e+00> : vector<48x32xf32>
    %336 = tpu.matmul %333, %335, %cst_136 {dimension_numbers = #tpu.dot_dimension_numbers<[1], [0], [0], [1], [0, 0, 1, 1], [], []>} : vector<48x32xf32>, vector<32x32xf32>, vector<48x32xf32> -> vector<48x32xf32>
    %c1_137 = arith.constant 1 : index
    %c0_138 = arith.constant 0 : index
    %c0_139 = arith.constant 0 : index
    %337 = vector.load %arg9[%c1_137, %c0_138, %c0_139] : memref<2x1x32xf32, #tpu.memory_space<vmem>>, vector<1x1x32xf32>
    %338 = vector.shape_cast %337 : vector<1x1x32xf32> to vector<1x32xf32>
    %339 = vector.broadcast %338 : vector<1x32xf32> to vector<48x32xf32>
    %340 = arith.addf %336, %339 : vector<48x32xf32>
    %341 = arith.addf %222, %340 : vector<48x32xf32>
    %c1_140 = arith.constant 1 : index
    %c0_141 = arith.constant 0 : index
    %c0_142 = arith.constant 0 : index
    %342 = vector.load %arg10[%c1_140, %c0_141, %c0_142] : memref<2x2x32xf32, #tpu.memory_space<vmem>>, vector<1x2x32xf32>
    %343 = vector.shape_cast %342 : vector<1x2x32xf32> to vector<2x32xf32>
    %344 = vector.extract_strided_slice %343 {offsets = [0, 0], sizes = [1, 32], strides = [1, 1]} : vector<2x32xf32> to vector<1x32xf32>
    %345 = vector.shape_cast %344 : vector<1x32xf32> to vector<32xf32>
    %346 = vector.extract_strided_slice %343 {offsets = [1, 0], sizes = [1, 32], strides = [1, 1]} : vector<2x32xf32> to vector<1x32xf32>
    %347 = vector.shape_cast %346 : vector<1x32xf32> to vector<32xf32>
    %cst_143 = arith.constant dense<0.000000e+00> : vector<48xf32>
    %348 = vector.multi_reduction <add>, %341, %cst_143 [1] : vector<48x32xf32> to vector<48xf32>
    %349 = vector.shape_cast %348 : vector<48xf32> to vector<48x1xf32>
    %cst_144 = arith.constant 3.125000e-02 : f32
    %350 = vector.broadcast %cst_144 : f32 to vector<48x1xf32>
    %351 = arith.mulf %349, %350 : vector<48x1xf32>
    %352 = vector.broadcast %351 : vector<48x1xf32> to vector<48x32xf32>
    %353 = arith.subf %341, %352 : vector<48x32xf32>
    %354 = arith.mulf %353, %353 : vector<48x32xf32>
    %cst_145 = arith.constant dense<0.000000e+00> : vector<48xf32>
    %355 = vector.multi_reduction <add>, %354, %cst_145 [1] : vector<48x32xf32> to vector<48xf32>
    %356 = vector.shape_cast %355 : vector<48xf32> to vector<48x1xf32>
    %cst_146 = arith.constant 3.125000e-02 : f32
    %357 = vector.broadcast %cst_146 : f32 to vector<48x1xf32>
    %358 = arith.mulf %356, %357 : vector<48x1xf32>
    %cst_147 = arith.constant 9.99999996E-13 : f32
    %359 = vector.broadcast %cst_147 : f32 to vector<48x1xf32>
    %360 = arith.addf %358, %359 : vector<48x1xf32>
    %361 = math.rsqrt %360 : vector<48x1xf32>
    %362 = vector.broadcast %361 : vector<48x1xf32> to vector<48x32xf32>
    %363 = arith.mulf %353, %362 : vector<48x32xf32>
    %364 = vector.shape_cast %345 : vector<32xf32> to vector<1x32xf32>
    %365 = vector.broadcast %364 : vector<1x32xf32> to vector<48x32xf32>
    %366 = arith.mulf %363, %365 : vector<48x32xf32>
    %367 = vector.shape_cast %347 : vector<32xf32> to vector<1x32xf32>
    %368 = vector.broadcast %367 : vector<1x32xf32> to vector<48x32xf32>
    %369 = arith.addf %366, %368 : vector<48x32xf32>
    %c1_148 = arith.constant 1 : index
    %c0_149 = arith.constant 0 : index
    %c0_150 = arith.constant 0 : index
    %370 = vector.load %arg11[%c1_148, %c0_149, %c0_150] : memref<2x32x64xf32, #tpu.memory_space<vmem>>, vector<1x32x64xf32>
    %371 = vector.shape_cast %370 : vector<1x32x64xf32> to vector<32x64xf32>
    %cst_151 = arith.constant dense<0.000000e+00> : vector<48x64xf32>
    %372 = tpu.matmul %369, %371, %cst_151 {dimension_numbers = #tpu.dot_dimension_numbers<[1], [0], [0], [1], [0, 0, 1, 1], [], []>} : vector<48x32xf32>, vector<32x64xf32>, vector<48x64xf32> -> vector<48x64xf32>
    %c1_152 = arith.constant 1 : index
    %c0_153 = arith.constant 0 : index
    %c0_154 = arith.constant 0 : index
    %373 = vector.load %arg12[%c1_152, %c0_153, %c0_154] : memref<2x1x64xf32, #tpu.memory_space<vmem>>, vector<1x1x64xf32>
    %374 = vector.shape_cast %373 : vector<1x1x64xf32> to vector<1x64xf32>
    %375 = vector.broadcast %374 : vector<1x64xf32> to vector<48x64xf32>
    %376 = arith.addf %372, %375 : vector<48x64xf32>
    %cst_155 = arith.constant 5.000000e-01 : f32
    %377 = vector.broadcast %cst_155 : f32 to vector<48x64xf32>
    %378 = arith.mulf %377, %376 : vector<48x64xf32>
    %cst_156 = arith.constant 0.707106769 : f32
    %379 = vector.broadcast %cst_156 : f32 to vector<48x64xf32>
    %380 = arith.mulf %376, %379 : vector<48x64xf32>
    %381 = math.erf %380 : vector<48x64xf32>
    %cst_157 = arith.constant 1.000000e+00 : f32
    %382 = vector.broadcast %cst_157 : f32 to vector<48x64xf32>
    %383 = arith.addf %382, %381 : vector<48x64xf32>
    %384 = arith.mulf %378, %383 : vector<48x64xf32>
    %c1_158 = arith.constant 1 : index
    %c0_159 = arith.constant 0 : index
    %c0_160 = arith.constant 0 : index
    %385 = vector.load %arg13[%c1_158, %c0_159, %c0_160] : memref<2x64x32xf32, #tpu.memory_space<vmem>>, vector<1x64x32xf32>
    %386 = vector.shape_cast %385 : vector<1x64x32xf32> to vector<64x32xf32>
    %cst_161 = arith.constant dense<0.000000e+00> : vector<48x32xf32>
    %387 = tpu.matmul %384, %386, %cst_161 {dimension_numbers = #tpu.dot_dimension_numbers<[1], [0], [0], [1], [0, 0, 1, 1], [], []>} : vector<48x64xf32>, vector<64x32xf32>, vector<48x32xf32> -> vector<48x32xf32>
    %388 = arith.addf %341, %387 : vector<48x32xf32>
    %c1_162 = arith.constant 1 : index
    %c0_163 = arith.constant 0 : index
    %c0_164 = arith.constant 0 : index
    %389 = vector.load %arg14[%c1_162, %c0_163, %c0_164] : memref<2x1x32xf32, #tpu.memory_space<vmem>>, vector<1x1x32xf32>
    %390 = vector.shape_cast %389 : vector<1x1x32xf32> to vector<1x32xf32>
    %391 = vector.broadcast %390 : vector<1x32xf32> to vector<48x32xf32>
    %392 = arith.addf %388, %391 : vector<48x32xf32>
    %c0_165 = arith.constant 0 : index
    %c0_166 = arith.constant 0 : index
    %393 = vector.load %arg15[%c0_165, %c0_166] : memref<2x32xf32, #tpu.memory_space<vmem>>, vector<2x32xf32>
    %394 = vector.extract_strided_slice %392 {offsets = [16, 0], sizes = [1, 32], strides = [1, 1]} : vector<48x32xf32> to vector<1x32xf32>
    %395 = vector.extract_strided_slice %393 {offsets = [0, 0], sizes = [1, 32], strides = [1, 1]} : vector<2x32xf32> to vector<1x32xf32>
    %396 = vector.shape_cast %395 : vector<1x32xf32> to vector<32xf32>
    %397 = vector.extract_strided_slice %393 {offsets = [1, 0], sizes = [1, 32], strides = [1, 1]} : vector<2x32xf32> to vector<1x32xf32>
    %398 = vector.shape_cast %397 : vector<1x32xf32> to vector<32xf32>
    %cst_167 = arith.constant dense<0.000000e+00> : vector<1xf32>
    %399 = vector.multi_reduction <add>, %394, %cst_167 [1] : vector<1x32xf32> to vector<1xf32>
    %400 = vector.shape_cast %399 : vector<1xf32> to vector<1x1xf32>
    %cst_168 = arith.constant 3.125000e-02 : f32
    %401 = vector.broadcast %cst_168 : f32 to vector<1x1xf32>
    %402 = arith.mulf %400, %401 : vector<1x1xf32>
    %403 = vector.broadcast %402 : vector<1x1xf32> to vector<1x32xf32>
    %404 = arith.subf %394, %403 : vector<1x32xf32>
    %405 = arith.mulf %404, %404 : vector<1x32xf32>
    %cst_169 = arith.constant dense<0.000000e+00> : vector<1xf32>
    %406 = vector.multi_reduction <add>, %405, %cst_169 [1] : vector<1x32xf32> to vector<1xf32>
    %407 = vector.shape_cast %406 : vector<1xf32> to vector<1x1xf32>
    %cst_170 = arith.constant 3.125000e-02 : f32
    %408 = vector.broadcast %cst_170 : f32 to vector<1x1xf32>
    %409 = arith.mulf %407, %408 : vector<1x1xf32>
    %cst_171 = arith.constant 9.99999996E-13 : f32
    %410 = vector.broadcast %cst_171 : f32 to vector<1x1xf32>
    %411 = arith.addf %409, %410 : vector<1x1xf32>
    %412 = math.rsqrt %411 : vector<1x1xf32>
    %413 = vector.broadcast %412 : vector<1x1xf32> to vector<1x32xf32>
    %414 = arith.mulf %404, %413 : vector<1x32xf32>
    %415 = vector.shape_cast %396 : vector<32xf32> to vector<1x32xf32>
    %416 = arith.mulf %414, %415 : vector<1x32xf32>
    %417 = vector.shape_cast %398 : vector<32xf32> to vector<1x32xf32>
    %418 = arith.addf %416, %417 : vector<1x32xf32>
    %c0_172 = arith.constant 0 : index
    %c0_173 = arith.constant 0 : index
    %419 = vector.load %arg16[%c0_172, %c0_173] : memref<2x32xf32, #tpu.memory_space<vmem>>, vector<1x32xf32>
    tpu.vector_store %arg16[%c0_172, %c0_173], %418 {strides = array<i32>} : memref<2x32xf32, #tpu.memory_space<vmem>>, vector<1x32xf32>,
    %420 = vector.extract_strided_slice %392 {offsets = [40, 0], sizes = [1, 32], strides = [1, 1]} : vector<48x32xf32> to vector<1x32xf32>
    %421 = vector.extract_strided_slice %393 {offsets = [0, 0], sizes = [1, 32], strides = [1, 1]} : vector<2x32xf32> to vector<1x32xf32>
    %422 = vector.shape_cast %421 : vector<1x32xf32> to vector<32xf32>
    %423 = vector.extract_strided_slice %393 {offsets = [1, 0], sizes = [1, 32], strides = [1, 1]} : vector<2x32xf32> to vector<1x32xf32>
    %424 = vector.shape_cast %423 : vector<1x32xf32> to vector<32xf32>
    %cst_174 = arith.constant dense<0.000000e+00> : vector<1xf32>
    %425 = vector.multi_reduction <add>, %420, %cst_174 [1] : vector<1x32xf32> to vector<1xf32>
    %426 = vector.shape_cast %425 : vector<1xf32> to vector<1x1xf32>
    %cst_175 = arith.constant 3.125000e-02 : f32
    %427 = vector.broadcast %cst_175 : f32 to vector<1x1xf32>
    %428 = arith.mulf %426, %427 : vector<1x1xf32>
    %429 = vector.broadcast %428 : vector<1x1xf32> to vector<1x32xf32>
    %430 = arith.subf %420, %429 : vector<1x32xf32>
    %431 = arith.mulf %430, %430 : vector<1x32xf32>
    %cst_176 = arith.constant dense<0.000000e+00> : vector<1xf32>
    %432 = vector.multi_reduction <add>, %431, %cst_176 [1] : vector<1x32xf32> to vector<1xf32>
    %433 = vector.shape_cast %432 : vector<1xf32> to vector<1x1xf32>
    %cst_177 = arith.constant 3.125000e-02 : f32
    %434 = vector.broadcast %cst_177 : f32 to vector<1x1xf32>
    %435 = arith.mulf %433, %434 : vector<1x1xf32>
    %cst_178 = arith.constant 9.99999996E-13 : f32
    %436 = vector.broadcast %cst_178 : f32 to vector<1x1xf32>
    %437 = arith.addf %435, %436 : vector<1x1xf32>
    %438 = math.rsqrt %437 : vector<1x1xf32>
    %439 = vector.broadcast %438 : vector<1x1xf32> to vector<1x32xf32>
    %440 = arith.mulf %430, %439 : vector<1x32xf32>
    %441 = vector.shape_cast %422 : vector<32xf32> to vector<1x32xf32>
    %442 = arith.mulf %440, %441 : vector<1x32xf32>
    %443 = vector.shape_cast %424 : vector<32xf32> to vector<1x32xf32>
    %444 = arith.addf %442, %443 : vector<1x32xf32>
    %c1_179 = arith.constant 1 : index
    %c0_180 = arith.constant 0 : index
    %445 = vector.load %arg16[%c1_179, %c0_180] : memref<2x32xf32, #tpu.memory_space<vmem>>, vector<1x32xf32>
    tpu.vector_store %arg16[%c1_179, %c0_180], %444 {strides = array<i32>} : memref<2x32xf32, #tpu.memory_space<vmem>>, vector<1x32xf32>,
    return
  }
}

</mosaic_0001>

<llo_original>
// kernel: image_encoder_forward.1
$region0: #{image_encoder_forward.1}
  #allocation0 [shape = 'u32[]', space=smem, size = 0x4, offset = 0x4, fixed_abs, tag = 'smem constant byte address 0x4 - core index']
  #allocation1 [shape = 'u32[144,128]{1,0:T(1,128)}', space=vmem, size = 0x12000, scoped, tag = 'internal scratch']
  #allocation2 [shape = 'f32[48,32]{1,0:T(8,128)}', space=vmem, size = 0x6000, scoped, tag = 'scratch operand']
  %s0 = inlined_call_operand.vmem [shape: f32[32,48], index: 0, kind: input, shape index: {}]
  %s1 = inlined_call_operand.vmem [shape: f32[48,32], index: 1, kind: input, shape index: {}]
  %s2 = inlined_call_operand.vmem [shape: f32[1,32], index: 2, kind: input, shape index: {}]
  %s3 = inlined_call_operand.vmem [shape: f32[1,32], index: 3, kind: input, shape index: {}]
  %s4 = inlined_call_operand.vmem [shape: f32[17,32], index: 4, kind: input, shape index: {}]
  %s5 = inlined_call_operand.vmem [shape: f32[2,2,32], index: 5, kind: input, shape index: {}]
  %s6 = inlined_call_operand.vmem [shape: f32[2,32,96], index: 6, kind: input, shape index: {}]
  %s7 = inlined_call_operand.vmem [shape: f32[2,1,96], index: 7, kind: input, shape index: {}]
  %s8 = inlined_call_operand.vmem [shape: f32[2,32,32], index: 8, kind: input, shape index: {}]
  %s9 = inlined_call_operand.vmem [shape: f32[2,1,32], index: 9, kind: input, shape index: {}]
  %s10 = inlined_call_operand.vmem [shape: f32[2,2,32], index: 10, kind: input, shape index: {}]
  %s11 = inlined_call_operand.vmem [shape: f32[2,32,64], index: 11, kind: input, shape index: {}]
  %s12 = inlined_call_operand.vmem [shape: f32[2,1,64], index: 12, kind: input, shape index: {}]
  %s13 = inlined_call_operand.vmem [shape: f32[2,64,32], index: 13, kind: input, shape index: {}]
  %s14 = inlined_call_operand.vmem [shape: f32[2,1,32], index: 14, kind: input, shape index: {}]
  %s15 = inlined_call_operand.vmem [shape: f32[2,32], index: 15, kind: input, shape index: {}]
  %s16 = inlined_call_operand.hbm [shape: f32[2,32], index: 16, kind: output, shape index: {}]
  %s17 = sld [smem:[#allocation0]]
  $region74: #{image_encoder_forward.1} parent=0
    _
  %s19 = ssub.s32 1, %s17
  %s20 = scalar_select 0, %s19, %s17
  $region1: #{image_encoder_forward.1} parent=0
    #allocation3 [shape = 'u8[1024]{0}', space=vmem, size = 0x400, scoped, tag = 'output window, operand 0, single buffered']
    #allocation4 [shape = 's32[1]{0}', space=sflag, size = 0x4, scoped, tag = 'scoped memory for image_encoder_forward.1']
    %21 = vsyncpa [#allocation4], 0
    // Predicated region
    $region2: #{image_encoder_forward.1} parent=1 // pred_check
      _
    $region3: #{image_encoder_forward.1} parent=1 // pred_check_branch
      %23 = sbr.rel (0) target = $region5
    $region4: #{image_encoder_forward.1} parent=1 // pred_region
      _
    $region5: #{image_encoder_forward.1} parent=1 // pred_fallthru
      _
    // Predicated region
    $region6: #{image_encoder_forward.1} parent=1 // pred_check
      _
    $region7: #{image_encoder_forward.1} parent=1 // pred_check_branch
      %25 = sbr.rel (0) target = $region9
    $region8: #{image_encoder_forward.1} parent=1 // pred_region
      _
    $region9: #{image_encoder_forward.1} parent=1 // pred_fallthru
      _
    // Predicated region
    $region10: #{image_encoder_forward.1} parent=1 // pred_check
      _
    $region11: #{image_encoder_forward.1} parent=1 // pred_check_branch
      %27 = sbr.rel (0) target = $region13
    $region12: #{image_encoder_forward.1} parent=1 // pred_region
      _
    $region13: #{image_encoder_forward.1} parent=1 // pred_fallthru
      _
    // Predicated region
    $region14: #{image_encoder_forward.1} parent=1 // pred_check
      _
    $region15: #{image_encoder_forward.1} parent=1 // pred_check_branch
      %29 = sbr.rel (0) target = $region17
    $region16: #{image_encoder_forward.1} parent=1 // pred_region
      _
    $region17: #{image_encoder_forward.1} parent=1 // pred_fallthru
      _
    // Predicated region
    $region18: #{image_encoder_forward.1} parent=1 // pred_check
      _
    $region19: #{image_encoder_forward.1} parent=1 // pred_check_branch
      %31 = sbr.rel (0) target = $region21
    $region20: #{image_encoder_forward.1} parent=1 // pred_region
      _
    $region21: #{image_encoder_forward.1} parent=1 // pred_fallthru
      _
    // Predicated region
    $region22: #{image_encoder_forward.1} parent=1 // pred_check
      _
    $region23: #{image_encoder_forward.1} parent=1 // pred_check_branch
      %33 = sbr.rel (0) target = $region25
    $region24: #{image_encoder_forward.1} parent=1 // pred_region
      _
    $region25: #{image_encoder_forward.1} parent=1 // pred_fallthru
      _
    // Predicated region
    $region26: #{image_encoder_forward.1} parent=1 // pred_check
      _
    $region27: #{image_encoder_forward.1} parent=1 // pred_check_branch
      %35 = sbr.rel (0) target = $region29
    $region28: #{image_encoder_forward.1} parent=1 // pred_region
      _
    $region29: #{image_encoder_forward.1} parent=1 // pred_fallthru
      _
    // Predicated region
    $region30: #{image_encoder_forward.1} parent=1 // pred_check
      _
    $region31: #{image_encoder_forward.1} parent=1 // pred_check_branch
      %37 = sbr.rel (0) target = $region33
    $region32: #{image_encoder_forward.1} parent=1 // pred_region
      _
    $region33: #{image_encoder_forward.1} parent=1 // pred_fallthru
      _
    // Predicated region
    $region34: #{image_encoder_forward.1} parent=1 // pred_check
      _
    $region35: #{image_encoder_forward.1} parent=1 // pred_check_branch
      %39 = sbr.rel (0) target = $region37
    $region36: #{image_encoder_forward.1} parent=1 // pred_region
      _
    $region37: #{image_encoder_forward.1} parent=1 // pred_fallthru
      _
    // Predicated region
    $region38: #{image_encoder_forward.1} parent=1 // pred_check
      _
    $region39: #{image_encoder_forward.1} parent=1 // pred_check_branch
      %41 = sbr.rel (0) target = $region41
    $region40: #{image_encoder_forward.1} parent=1 // pred_region
      _
    $region41: #{image_encoder_forward.1} parent=1 // pred_fallthru
      _
    // Predicated region
    $region42: #{image_encoder_forward.1} parent=1 // pred_check
      _
    $region43: #{image_encoder_forward.1} parent=1 // pred_check_branch
      %43 = sbr.rel (0) target = $region45
    $region44: #{image_encoder_forward.1} parent=1 // pred_region
      _
    $region45: #{image_encoder_forward.1} parent=1 // pred_fallthru
      _
    // Predicated region
    $region46: #{image_encoder_forward.1} parent=1 // pred_check
      _
    $region47: #{image_encoder_forward.1} parent=1 // pred_check_branch
      %45 = sbr.rel (0) target = $region49
    $region48: #{image_encoder_forward.1} parent=1 // pred_region
      _
    $region49: #{image_encoder_forward.1} parent=1 // pred_fallthru
      _
    // Predicated region
    $region50: #{image_encoder_forward.1} parent=1 // pred_check
      _
    $region51: #{image_encoder_forward.1} parent=1 // pred_check_branch
      %47 = sbr.rel (0) target = $region53
    $region52: #{image_encoder_forward.1} parent=1 // pred_region
      _
    $region53: #{image_encoder_forward.1} parent=1 // pred_fallthru
      _
    // Predicated region
    $region54: #{image_encoder_forward.1} parent=1 // pred_check
      _
    $region55: #{image_encoder_forward.1} parent=1 // pred_check_branch
      %49 = sbr.rel (0) target = $region57
    $region56: #{image_encoder_forward.1} parent=1 // pred_region
      _
    $region57: #{image_encoder_forward.1} parent=1 // pred_fallthru
      _
    // Predicated region
    $region58: #{image_encoder_forward.1} parent=1 // pred_check
      _
    $region59: #{image_encoder_forward.1} parent=1 // pred_check_branch
      %51 = sbr.rel (0) target = $region61
    $region60: #{image_encoder_forward.1} parent=1 // pred_region
      _
    $region61: #{image_encoder_forward.1} parent=1 // pred_fallthru
      _
    // Predicated region
    $region62: #{image_encoder_forward.1} parent=1 // pred_check
      _
    $region63: #{image_encoder_forward.1} parent=1 // pred_check_branch
      %53 = sbr.rel (0) target = $region65
    $region64: #{image_encoder_forward.1} parent=1 // pred_region
      _
    $region65: #{image_encoder_forward.1} parent=1 // pred_fallthru
      _
    %v54 = vld [vmem:[%s0] sm:$0xff]
    %v55 = vld [vmem:[%s0 + $0x8] sm:$0xff]
    %v56 = vld [vmem:[%s0 + $0x10] sm:$0xff]
    %v57 = vld [vmem:[%s0 + $0x18] sm:$0xff]
    %v58 = vld [vmem:[%s1] sm:$0xff]
    %v59 = vld [vmem:[%s1 + $0x8] sm:$0xff]
    %v60 = vld [vmem:[%s1 + $0x10] sm:$0xff]
    %v61 = vld [vmem:[%s1 + $0x18] sm:$0xff]
    %v62 = vld [vmem:[%s1 + $0x20] sm:$0xff]
    %v63 = vld [vmem:[%s1 + $0x28] sm:$0xff]
    %v64 = vld [vmem:[%s2] sm:$0x1]
    %v66 = vlaneseq
    %v67 = vshrl.u32 %v66, 7
    %v68 = vsub.s32 0, %v67
    %v69 = vrot.slane %v64, %v68
    %vm71 = vcmask 392192
    %v73 = vsel %vm71, %v54, 0
    %v76 = vsel %vm71, %v55, 0
    %v79 = vsel %vm71, %v56, 0
    %v82 = vsel %vm71, %v57, 0
    %84 = vmatprep.subr.mxu0 0.0
    %85 = vmatpush1.msra.mxu0 %v58
    %86 = vmatprep.subr.mxu0 0.0
    %87 = vmatpush1.msra.mxu0 %v59
    %88 = vmatprep.subr.mxu0 0.0
    %89 = vmatpush1.msra.mxu0 %v60
    %90 = vmatprep.subr.mxu0 0.0
    %91 = vmatpush1.msra.mxu0 %v61
    %92 = vmatprep.subr.mxu0 0.0
    %93 = vmatpush1.msra.mxu0 %v62
    %94 = vmatprep.subr.mxu0 0.0
    %95 = vmatpush1.msra.mxu0 %v63
    %96 = vmatprep.subr.mxu0 0.0
    %97 = vmatpush1.msra.mxu0 0.0
    %98 = vmatprep.subr.mxu0 0.0
    %99 = vmatpush1.msra.mxu0 0.0
    %100 = vmatprep.subr.mxu0 0.0
    %101 = vmatpush1.msra.mxu0 0.0
    %102 = vmatprep.subr.mxu0 0.0
    %103 = vmatpush1.msra.mxu0 0.0
    %104 = vmatprep.subr.mxu0 0.0
    %105 = vmatpush1.msra.mxu0 0.0
    %106 = vmatprep.subr.mxu0 0.0
    %107 = vmatpush1.msra.mxu0 0.0
    %108 = vmatprep.subr.mxu0 0.0
    %109 = vmatpush1.msra.mxu0 0.0
    %110 = vmatprep.subr.mxu0 0.0
    %111 = vmatpush1.msra.mxu0 0.0
    %112 = vmatprep.subr.mxu0 0.0
    %113 = vmatpush1.msra.mxu0 0.0
    %114 = vmatprep.subr.mxu0 0.0
    %115 = vmatpush1.msra.mxu0 0.0
    %116 = vmatprep.subr.mxu0 0.0
    %117 = vmatpush1.msra.mxu0 0.0
    %118 = vmatprep.subr.mxu0 0.0
    %119 = vmatpush1.msra.mxu0 0.0
    %120 = vmatprep.subr.mxu0 0.0
    %121 = vmatpush1.msra.mxu0 0.0
    %122 = vmatprep.subr.mxu0 0.0
    %123 = vmatpush1.msra.mxu0 0.0
    %124 = vmatprep.subr.mxu0 0.0
    %125 = vmatpush1.msra.mxu0 0.0
    %126 = vmatprep.subr.mxu0 0.0
    %127 = vmatpush1.msra.mxu0 0.0
    %128 = vmatprep.subr.mxu0 0.0
    %129 = vmatpush1.msra.mxu0 0.0
    %130 = vmatprep.subr.mxu0 0.0
    %131 = vmatpush1.msra.mxu0 0.0
    %132 = vmatprep.subr.mxu0 0.0
    %133 = vmatpush1.msra.mxu0 0.0
    %134 = vmatprep.subr.mxu0 0.0
    %135 = vmatpush1.msra.mxu0 0.0
    %136 = vmatprep.subr.mxu0 0.0
    %137 = vmatpush1.msra.mxu0 0.0
    %138 = vmatprep.subr.mxu0 0.0
    %139 = vmatpush1.msra.mxu0 0.0
    %140 = vmatprep.subr.mxu0 0.0
    %141 = vmatpush1.msra.mxu0 0.0
    %142 = vmatprep.subr.mxu0 0.0
    %143 = vmatpush1.msra.mxu0 0.0
    %144 = vmatprep.subr.mxu0 0.0
    %145 = vmatpush1.msra.mxu0 0.0
    %146 = vmatprep.subr.mxu0 0.0
    %147 = vmatpush1.msra.mxu0 0.0
    %148 = vmatprep.mubr.f32.mxu0 0.0
    %149 = vmatmul.mubr.f32.gmra.mrb[0].mxu0 %v73
    %v150 = vpop.f32.mrb[0].mxu0
    %v151 = vadd.f32 %v69, %v150
    %v152 = vpop.f32.mrb[0].mxu0
    %153 = vmatprep.mubr.f32.mxu0 0.0
    %154 = vmatmul.mubr.f32.gmra.mrb[0].mxu0 %v76
    %v155 = vpop.f32.mrb[0].mxu0
    %v156 = vadd.f32 %v69, %v155
    %v157 = vpop.f32.mrb[0].mxu0
    %158 = vmatprep.mubr.f32.mxu0 0.0
    %159 = vmatmul.mubr.f32.gmra.mrb[0].mxu0 %v79
    %v160 = vpop.f32.mrb[0].mxu0
    %v161 = vadd.f32 %v69, %v160
    %v162 = vpop.f32.mrb[0].mxu0
    %163 = vmatprep.mubr.f32.mxu0 0.0
    %164 = vmatmul.mubr.f32.gmra.mrb[0].mxu0 %v82
    %v165 = vpop.f32.mrb[0].mxu0
    %v166 = vadd.f32 %v69, %v165
    %v167 = vpop.f32.mrb[0].mxu0
    %168 = vdwg.mxu0
    %vm169 = vcmask 261120
    %170 = vst.msk [vmem:[#allocation2] sm:$0xff] %vm169, 0.0
    %171 = vst.msk [vmem:[#allocation2 + $0x8] sm:$0xff] %vm169, 0.0
    %172 = vst.msk [vmem:[#allocation2 + $0x10] sm:$0xff] %vm169, 0.0
    %173 = vst.msk [vmem:[#allocation2 + $0x18] sm:$0xff] %vm169, 0.0
    %174 = vst.msk [vmem:[#allocation2 + $0x20] sm:$0xff] %vm169, 0.0
    %175 = vst.msk [vmem:[#allocation2 + $0x28] sm:$0xff] %vm169, 0.0
    %v176 = vld [vmem:[%s4] sm:$0xff]
    %v177 = vld [vmem:[%s4 + $0x8] sm:$0xff]
    %v178 = vadd.f32 %v151, %v176
    %v179 = vadd.f32 %v156, %v177
    %180 = vst.msk [vmem:[#allocation2] sm:$0xff] %vm169, %v178
    %181 = vst.msk [vmem:[#allocation2 + $0x8] sm:$0xff] %vm169, %v179
    %v182 = vld [vmem:[%s3] sm:$0x1]
    %v183 = vld [vmem:[%s4 + $0x10] sm:$0x1]
    %v184 = vadd.f32 %v182, %v183
    %vm185 = vcmask 253952
    %186 = vst.msk [vmem:[#allocation2 + $0x10] sm:$0x1] %vm185, %v184
    %v187 = vld [vmem:[%s4] sm:$0xff]
    %v188 = vld [vmem:[%s4 + $0x8] sm:$0xff]
    %v189 = vadd.f32 %v161, %v187
    %v190 = vadd.f32 %v166, %v188
    %191 = vst.msk [vmem:[#allocation2 + $0x18] sm:$0xff] %vm169, %v189
    %192 = vst.msk [vmem:[#allocation2 + $0x20] sm:$0xff] %vm169, %v190
    %v193 = vld [vmem:[%s3] sm:$0x1]
    %v194 = vld [vmem:[%s4 + $0x10] sm:$0x1]
    %v195 = vadd.f32 %v193, %v194
    %196 = vst.msk [vmem:[#allocation2 + $0x28] sm:$0x1] %vm185, %v195
    %v197 = vld [vmem:[#allocation2] sm:$0xff]
    %v198 = vld [vmem:[#allocation2 + $0x8] sm:$0xff]
    %v199 = vld [vmem:[#allocation2 + $0x10] sm:$0xff]
    %v200 = vld [vmem:[#allocation2 + $0x18] sm:$0xff]
    %v201 = vld [vmem:[#allocation2 + $0x20] sm:$0xff]
    %v202 = vld [vmem:[#allocation2 + $0x28] sm:$0xff]
    %v203 = vlaneseq
    %v204 = vshrl.u32 %v203, 7
    %v205 = vadd.s32 %v204, 8
    %v206 = vadd.s32 %v204, 16
    %v207 = vadd.s32 %v204, 24
    %v208 = vadd.s32 %v204, 32
    %v209 = vadd.s32 %v204, 40
    %v210 = vlaneseq
    %v211 = vand.u32 %v210, 127
    %vm212 = vcmp.ge.s32.totalorder %v204, 0
    %vm213 = vcmp.ge.s32.totalorder %v205, 0
    %vm214 = vcmp.ge.s32.totalorder %v206, 0
    %vm215 = vcmp.ge.s32.totalorder %v207, 0
    %vm216 = vcmp.ge.s32.totalorder %v208, 0
    %vm217 = vcmp.ge.s32.totalorder %v209, 0
    %vm218 = vcmp.lt.s32.totalorder %v204, 24
    %vm219 = vcmp.lt.s32.totalorder %v205, 24
    %vm220 = vcmp.lt.s32.totalorder %v206, 24
    %vm221 = vcmp.lt.s32.totalorder %v207, 24
    %vm222 = vcmp.lt.s32.totalorder %v208, 24
    %vm223 = vcmp.lt.s32.totalorder %v209, 24
    %vm224 = vmand %vm212, %vm218
    %vm225 = vmand %vm213, %vm219
    %vm226 = vmand %vm214, %vm220
    %vm227 = vmand %vm215, %vm221
    %vm228 = vmand %vm216, %vm222
    %vm229 = vmand %vm217, %vm223
    %vm230 = vcmp.ge.s32.totalorder %v211, 0
    %vm231 = vmand %vm224, %vm230
    %vm232 = vmand %vm225, %vm230
    %vm233 = vmand %vm226, %vm230
    %vm234 = vmand %vm227, %vm230
    %vm235 = vmand %vm228, %vm230
    %vm236 = vmand %vm229, %vm230
    %vm237 = vcmp.lt.s32.totalorder %v211, 17
    %vm238 = vmand %vm231, %vm237
    %vm239 = vmand %vm232, %vm237
    %vm240 = vmand %vm233, %vm237
    %vm241 = vmand %vm234, %vm237
    %vm242 = vmand %vm235, %vm237
    %vm243 = vmand %vm236, %vm237
    %vm244 = vcmp.ge.s32.totalorder %v204, 24
    %vm245 = vcmp.ge.s32.totalorder %v205, 24
    %vm246 = vcmp.ge.s32.totalorder %v206, 24
    %vm247 = vcmp.ge.s32.totalorder %v207, 24
    %vm248 = vcmp.ge.s32.totalorder %v208, 24
    %vm249 = vcmp.ge.s32.totalorder %v209, 24
    %vm250 = vcmp.lt.s32.totalorder %v204, 48
    %vm251 = vcmp.lt.s32.totalorder %v205, 48
    %vm252 = vcmp.lt.s32.totalorder %v206, 48
    %vm253 = vcmp.lt.s32.totalorder %v207, 48
    %vm254 = vcmp.lt.s32.totalorder %v208, 48
    %vm255 = vcmp.lt.s32.totalorder %v209, 48
    %vm256 = vmand %vm244, %vm250
    %vm257 = vmand %vm245, %vm251
    %vm258 = vmand %vm246, %vm252
    %vm259 = vmand %vm247, %vm253
    %vm260 = vmand %vm248, %vm254
    %vm261 = vmand %vm249, %vm255
    %vm262 = vcmp.ge.s32.totalorder %v211, 24
    %vm263 = vmand %vm256, %vm262
    %vm264 = vmand %vm257, %vm262
    %vm265 = vmand %vm258, %vm262
    %vm266 = vmand %vm259, %vm262
    %vm267 = vmand %vm260, %vm262
    %vm268 = vmand %vm261, %vm262
    %vm269 = vcmp.lt.s32.totalorder %v211, 41
    %vm270 = vmand %vm263, %vm269
    %vm271 = vmand %vm264, %vm269
    %vm272 = vmand %vm265, %vm269
    %vm273 = vmand %vm266, %vm269
    %vm274 = vmand %vm267, %vm269
    %vm275 = vmand %vm268, %vm269
    %vm276 = vmor %vm238, %vm270
    %vm277 = vmor %vm239, %vm271
    %vm278 = vmor %vm240, %vm272
    %vm279 = vmor %vm241, %vm273
    %vm280 = vmor %vm242, %vm274
    %vm281 = vmor %vm243, %vm275
    %v282 = vsel %vm276, 0.0, -1e+30
    %v283 = vsel %vm277, 0.0, -1e+30
    %v284 = vsel %vm278, 0.0, -1e+30
    %v285 = vsel %vm279, 0.0, -1e+30
    %v286 = vsel %vm280, 0.0, -1e+30
    %v287 = vsel %vm281, 0.0, -1e+30
    %v288 = vld [vmem:[%s5] sm:$0x3]
    %v289 = vsel %vm169, %v197, 0.0
    %290 = vadd.xlane.f32.xlu0 %v289
    %v291 = vpop.xlane.xlu0 %290
    %v292 = vsel %vm169, %v198, 0.0
    %293 = vadd.xlane.f32.xlu0 %v292
    %v294 = vpop.xlane.xlu0 %293
    %v295 = vsel %vm169, %v199, 0.0
    %296 = vadd.xlane.f32.xlu0 %v295
    %v297 = vpop.xlane.xlu0 %296
    %v298 = vsel %vm169, %v200, 0.0
    %299 = vadd.xlane.f32.xlu0 %v298
    %v300 = vpop.xlane.xlu0 %299
    %v301 = vsel %vm169, %v201, 0.0
    %302 = vadd.xlane.f32.xlu0 %v301
    %v303 = vpop.xlane.xlu0 %302
    %v304 = vsel %vm169, %v202, 0.0
    %305 = vadd.xlane.f32.xlu0 %v304
    %v306 = vpop.xlane.xlu0 %305
    %v307 = vmul.f32 %v291, 0.03125
    %v308 = vmul.f32 %v294, 0.03125
    %v309 = vmul.f32 %v297, 0.03125
    %v310 = vmul.f32 %v300, 0.03125
    %v311 = vmul.f32 %v303, 0.03125
    %v312 = vmul.f32 %v306, 0.03125
    %v313 = vsub.f32 %v197, %v307
    %v314 = vsub.f32 %v198, %v308
    %v315 = vsub.f32 %v199, %v309
    %v316 = vsub.f32 %v200, %v310
    %v317 = vsub.f32 %v201, %v311
    %v318 = vsub.f32 %v202, %v312
    %v319 = vmul.f32 %v313, %v313
    %v320 = vmul.f32 %v314, %v314
    %v321 = vmul.f32 %v315, %v315
    %v322 = vmul.f32 %v316, %v316
    %v323 = vmul.f32 %v317, %v317
    %v324 = vmul.f32 %v318, %v318
    %v325 = vsel %vm169, %v319, 0.0
    %326 = vadd.xlane.f32.xlu0 %v325
    %v327 = vpop.xlane.xlu0 %326
    %v328 = vsel %vm169, %v320, 0.0
    %329 = vadd.xlane.f32.xlu0 %v328
    %v330 = vpop.xlane.xlu0 %329
    %v331 = vsel %vm169, %v321, 0.0
    %332 = vadd.xlane.f32.xlu0 %v331
    %v333 = vpop.xlane.xlu0 %332
    %v334 = vsel %vm169, %v322, 0.0
    %335 = vadd.xlane.f32.xlu0 %v334
    %v336 = vpop.xlane.xlu0 %335
    %v337 = vsel %vm169, %v323, 0.0
    %338 = vadd.xlane.f32.xlu0 %v337
    %v339 = vpop.xlane.xlu0 %338
    %v340 = vsel %vm169, %v324, 0.0
    %341 = vadd.xlane.f32.xlu0 %v340
    %v342 = vpop.xlane.xlu0 %341
    %v343 = vmul.f32 %v327, 0.03125
    %v344 = vmul.f32 %v330, 0.03125
    %v345 = vmul.f32 %v333, 0.03125
    %v346 = vmul.f32 %v336, 0.03125
    %v347 = vmul.f32 %v339, 0.03125
    %v348 = vmul.f32 %v342, 0.03125
    %v349 = vadd.f32 %v343, 1e-12
    %v350 = vadd.f32 %v344, 1e-12
    %v351 = vadd.f32 %v345, 1e-12
    %v352 = vadd.f32 %v346, 1e-12
    %v353 = vadd.f32 %v347, 1e-12
    %v354 = vadd.f32 %v348, 1e-12
    %v355 = vrsqrt.pop %v349
    %v356 = vrsqrt.pop %v350
    %v357 = vrsqrt.pop %v351
    %v358 = vrsqrt.pop %v352
    %v359 = vrsqrt.pop %v353
    %v360 = vrsqrt.pop %v354
    %v361 = vmul.f32 %v313, %v355
    %v362 = vmul.f32 %v314, %v356
    %v363 = vmul.f32 %v315, %v357
    %v364 = vmul.f32 %v316, %v358
    %v365 = vmul.f32 %v317, %v359
    %v366 = vmul.f32 %v318, %v360
    %v367 = vlaneseq
    %v368 = vshrl.u32 %v367, 7
    %v369 = vsub.s32 0, %v368
    %v370 = vrot.slane %v288, %v369
    %v371 = vmul.f32 %v361, %v370
    %v372 = vmul.f32 %v362, %v370
    %v373 = vmul.f32 %v363, %v370
    %v374 = vmul.f32 %v364, %v370
    %v375 = vmul.f32 %v365, %v370
    %v376 = vmul.f32 %v366, %v370
    %v377 = vlaneseq
    %v378 = vshrl.u32 %v377, 7
    %v379 = vsub.s32 1, %v378
    %v380 = vrot.slane %v288, %v379
    %v381 = vadd.f32 %v371, %v380
    %v382 = vadd.f32 %v372, %v380
    %v383 = vadd.f32 %v373, %v380
    %v384 = vadd.f32 %v374, %v380
    %v385 = vadd.f32 %v375, %v380
    %v386 = vadd.f32 %v376, %v380
    %v387 = vld [vmem:[%s6] sm:$0xff]
    %v388 = vld [vmem:[%s6 + $0x8] sm:$0xff]
    %v389 = vld [vmem:[%s6 + $0x10] sm:$0xff]
    %v390 = vld [vmem:[%s6 + $0x18] sm:$0xff]
    %v391 = vld [vmem:[%s7] sm:$0x1]
    %v393 = vlaneseq
    %v394 = vshrl.u32 %v393, 7
    %v395 = vsub.s32 0, %v394
    %v396 = vrot.slane %v391, %v395
    %v399 = vsel %vm169, %v381, 0
    %v402 = vsel %vm169, %v382, 0
    %v405 = vsel %vm169, %v383, 0
    %v408 = vsel %vm169, %v384, 0
    %v411 = vsel %vm169, %v385, 0
    %v414 = vsel %vm169, %v386, 0
    %416 = vmatprep.subr.mxu0 0.0
    %417 = vmatpush1.msra.mxu0 %v387
    %418 = vmatprep.subr.mxu0 0.0
    %419 = vmatpush1.msra.mxu0 %v388
    %420 = vmatprep.subr.mxu0 0.0
    %421 = vmatpush1.msra.mxu0 %v389
    %422 = vmatprep.subr.mxu0 0.0
    %423 = vmatpush1.msra.mxu0 %v390
    %424 = vmatprep.subr.mxu0 0.0
    %425 = vmatpush1.msra.mxu0 0.0
    %426 = vmatprep.subr.mxu0 0.0
    %427 = vmatpush1.msra.mxu0 0.0
    %428 = vmatprep.subr.mxu0 0.0
    %429 = vmatpush1.msra.mxu0 0.0
    %430 = vmatprep.subr.mxu0 0.0
    %431 = vmatpush1.msra.mxu0 0.0
    %432 = vmatprep.subr.mxu0 0.0
    %433 = vmatpush1.msra.mxu0 0.0
    %434 = vmatprep.subr.mxu0 0.0
    %435 = vmatpush1.msra.mxu0 0.0
    %436 = vmatprep.subr.mxu0 0.0
    %437 = vmatpush1.msra.mxu0 0.0
    %438 = vmatprep.subr.mxu0 0.0
    %439 = vmatpush1.msra.mxu0 0.0
    %440 = vmatprep.subr.mxu0 0.0
    %441 = vmatpush1.msra.mxu0 0.0
    %442 = vmatprep.subr.mxu0 0.0
    %443 = vmatpush1.msra.mxu0 0.0
    %444 = vmatprep.subr.mxu0 0.0
    %445 = vmatpush1.msra.mxu0 0.0
    %446 = vmatprep.subr.mxu0 0.0
    %447 = vmatpush1.msra.mxu0 0.0
    %448 = vmatprep.subr.mxu0 0.0
    %449 = vmatpush1.msra.mxu0 0.0
    %450 = vmatprep.subr.mxu0 0.0
    %451 = vmatpush1.msra.mxu0 0.0
    %452 = vmatprep.subr.mxu0 0.0
    %453 = vmatpush1.msra.mxu0 0.0
    %454 = vmatprep.subr.mxu0 0.0
    %455 = vmatpush1.msra.mxu0 0.0
    %456 = vmatprep.subr.mxu0 0.0
    %457 = vmatpush1.msra.mxu0 0.0
    %458 = vmatprep.subr.mxu0 0.0
    %459 = vmatpush1.msra.mxu0 0.0
    %460 = vmatprep.subr.mxu0 0.0
    %461 = vmatpush1.msra.mxu0 0.0
    %462 = vmatprep.subr.mxu0 0.0
    %463 = vmatpush1.msra.mxu0 0.0
    %464 = vmatprep.subr.mxu0 0.0
    %465 = vmatpush1.msra.mxu0 0.0
    %466 = vmatprep.subr.mxu0 0.0
    %467 = vmatpush1.msra.mxu0 0.0
    %468 = vmatprep.subr.mxu0 0.0
    %469 = vmatpush1.msra.mxu0 0.0
    %470 = vmatprep.subr.mxu0 0.0
    %471 = vmatpush1.msra.mxu0 0.0
    %472 = vmatprep.subr.mxu0 0.0
    %473 = vmatpush1.msra.mxu0 0.0
    %474 = vmatprep.subr.mxu0 0.0
    %475 = vmatpush1.msra.mxu0 0.0
    %476 = vmatprep.subr.mxu0 0.0
    %477 = vmatpush1.msra.mxu0 0.0
    %478 = vmatprep.subr.mxu0 0.0
    %479 = vmatpush1.msra.mxu0 0.0
    %480 = vmatprep.mubr.f32.mxu0 0.0
    %481 = vmatmul.mubr.f32.gmra.mrb[0].mxu0 %v399
    %v482 = vpop.f32.mrb[0].mxu0
    %v483 = vadd.f32 %v396, %v482
    %v484 = vpop.f32.mrb[0].mxu0
    %485 = vmatprep.mubr.f32.mxu0 0.0
    %486 = vmatmul.mubr.f32.gmra.mrb[0].mxu0 %v402
    %v487 = vpop.f32.mrb[0].mxu0
    %v488 = vadd.f32 %v396, %v487
    %v489 = vpop.f32.mrb[0].mxu0
    %490 = vmatprep.mubr.f32.mxu0 0.0
    %491 = vmatmul.mubr.f32.gmra.mrb[0].mxu0 %v405
    %v492 = vpop.f32.mrb[0].mxu0
    %v493 = vadd.f32 %v396, %v492
    %v494 = vpop.f32.mrb[0].mxu0
    %495 = vmatprep.mubr.f32.mxu0 0.0
    %496 = vmatmul.mubr.f32.gmra.mrb[0].mxu0 %v408
    %v497 = vpop.f32.mrb[0].mxu0
    %v498 = vadd.f32 %v396, %v497
    %v499 = vpop.f32.mrb[0].mxu0
    %500 = vmatprep.mubr.f32.mxu0 0.0
    %501 = vmatmul.mubr.f32.gmra.mrb[0].mxu0 %v411
    %v502 = vpop.f32.mrb[0].mxu0
    %v503 = vadd.f32 %v396, %v502
    %v504 = vpop.f32.mrb[0].mxu0
    %505 = vmatprep.mubr.f32.mxu0 0.0
    %506 = vmatmul.mubr.f32.gmra.mrb[0].mxu0 %v414
    %v507 = vpop.f32.mrb[0].mxu0
    %v508 = vadd.f32 %v396, %v507
    %v509 = vpop.f32.mrb[0].mxu0
    %510 = vdwg.mxu0
    %517 = vrot.lane.b32.xlu0 %v483, 96
    %v518 = vpop.permute.xlu0 %517
    %519 = vrot.lane.b32.xlu0 %v488, 96
    %v520 = vpop.permute.xlu0 %519
    %521 = vrot.lane.b32.xlu0 %v493, 96
    %v522 = vpop.permute.xlu0 %521
    %523 = vrot.lane.b32.xlu0 %v498, 96
    %v524 = vpop.permute.xlu0 %523
    %525 = vrot.lane.b32.xlu0 %v503, 96
    %v526 = vpop.permute.xlu0 %525
    %527 = vrot.lane.b32.xlu0 %v508, 96
    %v528 = vpop.permute.xlu0 %527
    %vm529 = vcmask 64512
    %v530 = vsel %vm529, %v483, 0
    %v532 = vsel %vm529, %v488, 0
    %v534 = vsel %vm529, %v493, 0
    %v536 = vsel %vm529, %v498, 0
    %v538 = vsel %vm529, %v503, 0
    %v540 = vsel %vm529, %v508, 0
    %v542 = vsel %vm529, %v518, 0
    %v544 = vsel %vm529, %v520, 0
    %v546 = vsel %vm529, %v522, 0
    %v548 = vsel %vm529, %v524, 0
    %v550 = vsel %vm529, %v526, 0
    %v552 = vsel %vm529, %v528, 0
    %554 = vmatprep.subr.mxu0 0.0
    %555 = vmatpush1.xpose.msra.mxu0 %v542
    %556 = vmatprep.subr.mxu0 0.0
    %557 = vmatpush1.xpose.msra.mxu0 %v544
    %558 = vmatprep.subr.mxu0 0.0
    %559 = vmatpush1.xpose.msra.mxu0 %v546
    %560 = vmatprep.subr.mxu0 0.0
    %561 = vmatpush1.xpose.msra.mxu0 %v548
    %562 = vmatprep.subr.mxu0 0.0
    %563 = vmatpush1.xpose.msra.mxu0 %v550
    %564 = vmatprep.subr.mxu0 0.0
    %565 = vmatpush1.xpose.msra.mxu0 %v552
    %566 = vmatprep.subr.mxu0 0.0
    %567 = vmatpush1.xpose.msra.mxu0 0.0
    %568 = vmatprep.subr.mxu0 0.0
    %569 = vmatpush1.xpose.msra.mxu0 0.0
    %570 = vmatprep.subr.mxu0 0.0
    %571 = vmatpush1.xpose.msra.mxu0 0.0
    %572 = vmatprep.subr.mxu0 0.0
    %573 = vmatpush1.xpose.msra.mxu0 0.0
    %574 = vmatprep.subr.mxu0 0.0
    %575 = vmatpush1.xpose.msra.mxu0 0.0
    %576 = vmatprep.subr.mxu0 0.0
    %577 = vmatpush1.xpose.msra.mxu0 0.0
    %578 = vmatprep.subr.mxu0 0.0
    %579 = vmatpush1.xpose.msra.mxu0 0.0
    %580 = vmatprep.subr.mxu0 0.0
    %581 = vmatpush1.xpose.msra.mxu0 0.0
    %582 = vmatprep.subr.mxu0 0.0
    %583 = vmatpush1.xpose.msra.mxu0 0.0
    %584 = vmatprep.subr.mxu0 0.0
    %585 = vmatpush1.xpose.msra.mxu0 0.0
    %586 = vmatprep.subr.mxu0 0.0
    %587 = vmatpush1.xpose.msra.mxu0 0.0
    %588 = vmatprep.subr.mxu0 0.0
    %589 = vmatpush1.xpose.msra.mxu0 0.0
    %590 = vmatprep.subr.mxu0 0.0
    %591 = vmatpush1.xpose.msra.mxu0 0.0
    %592 = vmatprep.subr.mxu0 0.0
    %593 = vmatpush1.xpose.msra.mxu0 0.0
    %594 = vmatprep.subr.mxu0 0.0
    %595 = vmatpush1.xpose.msra.mxu0 0.0
    %596 = vmatprep.subr.mxu0 0.0
    %597 = vmatpush1.xpose.msra.mxu0 0.0
    %598 = vmatprep.subr.mxu0 0.0
    %599 = vmatpush1.xpose.msra.mxu0 0.0
    %600 = vmatprep.subr.mxu0 0.0
    %601 = vmatpush1.xpose.msra.mxu0 0.0
    %602 = vmatprep.subr.mxu0 0.0
    %603 = vmatpush1.xpose.msra.mxu0 0.0
    %604 = vmatprep.subr.mxu0 0.0
    %605 = vmatpush1.xpose.msra.mxu0 0.0
    %606 = vmatprep.subr.mxu0 0.0
    %607 = vmatpush1.xpose.msra.mxu0 0.0
    %608 = vmatprep.subr.mxu0 0.0
    %609 = vmatpush1.xpose.msra.mxu0 0.0
    %610 = vmatprep.subr.mxu0 0.0
    %611 = vmatpush1.xpose.msra.mxu0 0.0
    %612 = vmatprep.subr.mxu0 0.0
    %613 = vmatpush1.xpose.msra.mxu0 0.0
    %614 = vmatprep.subr.mxu0 0.0
    %615 = vmatpush1.xpose.msra.mxu0 0.0
    %616 = vmatprep.subr.mxu0 0.0
    %617 = vmatpush1.xpose.msra.mxu0 0.0
    %618 = vmatprep.mubr.f32.mxu0 0.0
    %619 = vmatmul.mubr.f32.gmra.mrb[0].mxu0 %v530
    %v620 = vpop.f32.mrb[0].mxu0
    %v621 = vadd.f32 0.0, %v620
    %v622 = vpop.f32.mrb[0].mxu0
    %623 = vmatprep.mubr.f32.mxu0 0.0
    %624 = vmatmul.mubr.f32.gmra.mrb[0].mxu0 %v532
    %v625 = vpop.f32.mrb[0].mxu0
    %v626 = vadd.f32 0.0, %v625
    %v627 = vpop.f32.mrb[0].mxu0
    %628 = vmatprep.mubr.f32.mxu0 0.0
    %629 = vmatmul.mubr.f32.gmra.mrb[0].mxu0 %v534
    %v630 = vpop.f32.mrb[0].mxu0
    %v631 = vadd.f32 0.0, %v630
    %v632 = vpop.f32.mrb[0].mxu0
    %633 = vmatprep.mubr.f32.mxu0 0.0
    %634 = vmatmul.mubr.f32.gmra.mrb[0].mxu0 %v536
    %v635 = vpop.f32.mrb[0].mxu0
    %v636 = vadd.f32 0.0, %v635
    %v637 = vpop.f32.mrb[0].mxu0
    %638 = vmatprep.mubr.f32.mxu0 0.0
    %639 = vmatmul.mubr.f32.gmra.mrb[0].mxu0 %v538
    %v640 = vpop.f32.mrb[0].mxu0
    %v641 = vadd.f32 0.0, %v640
    %v642 = vpop.f32.mrb[0].mxu0
    %643 = vmatprep.mubr.f32.mxu0 0.0
    %644 = vmatmul.mubr.f32.gmra.mrb[0].mxu0 %v540
    %v645 = vpop.f32.mrb[0].mxu0
    %v646 = vadd.f32 0.0, %v645
    %v647 = vpop.f32.mrb[0].mxu0
    %648 = vdwg.mxu0
    %v649 = vmul.f32 %v621, 0.35355338
    %v650 = vmul.f32 %v626, 0.35355338
    %v651 = vmul.f32 %v631, 0.35355338
    %v652 = vmul.f32 %v636, 0.35355338
    %v653 = vmul.f32 %v641, 0.35355338
    %v654 = vmul.f32 %v646, 0.35355338
    %v655 = vadd.f32 %v649, %v282
    %v656 = vadd.f32 %v650, %v283
    %v657 = vadd.f32 %v651, %v284
    %v658 = vadd.f32 %v652, %v285
    %v659 = vadd.f32 %v653, %v286
    %v660 = vadd.f32 %v654, %v287
    %v661 = vsel %vm71, %v655, -inf
    %662 = vmax.xlane.f32.xlu0 %v661
    %v663 = vpop.xlane.xlu0 %662
    %v664 = vsel %vm71, %v656, -inf
    %665 = vmax.xlane.f32.xlu0 %v664
    %v666 = vpop.xlane.xlu0 %665
    %v667 = vsel %vm71, %v657, -inf
    %668 = vmax.xlane.f32.xlu0 %v667
    %v669 = vpop.xlane.xlu0 %668
    %v670 = vsel %vm71, %v658, -inf
    %671 = vmax.xlane.f32.xlu0 %v670
    %v672 = vpop.xlane.xlu0 %671
    %v673 = vsel %vm71, %v659, -inf
    %674 = vmax.xlane.f32.xlu0 %v673
    %v675 = vpop.xlane.xlu0 %674
    %v676 = vsel %vm71, %v660, -inf
    %677 = vmax.xlane.f32.xlu0 %v676
    %v678 = vpop.xlane.xlu0 %677
    %v679 = vsub.f32 %v655, %v663
    %v680 = vsub.f32 %v656, %v666
    %v681 = vsub.f32 %v657, %v669
    %v682 = vsub.f32 %v658, %v672
    %v683 = vsub.f32 %v659, %v675
    %v684 = vsub.f32 %v660, %v678
    %v685 = vmul.f32 %v679, 1.442695
    %v686 = vpow.pop %v685
    %v687 = vmul.f32 %v680, 1.442695
    %v688 = vpow.pop %v687
    %v689 = vmul.f32 %v681, 1.442695
    %v690 = vpow.pop %v689
    %v691 = vmul.f32 %v682, 1.442695
    %v692 = vpow.pop %v691
    %v693 = vmul.f32 %v683, 1.442695
    %v694 = vpow.pop %v693
    %v695 = vmul.f32 %v684, 1.442695
    %v696 = vpow.pop %v695
    %v697 = vsel %vm71, %v686, 0.0
    %698 = vadd.xlane.f32.xlu0 %v697
    %v699 = vpop.xlane.xlu0 %698
    %v700 = vsel %vm71, %v688, 0.0
    %701 = vadd.xlane.f32.xlu0 %v700
    %v702 = vpop.xlane.xlu0 %701
    %v703 = vsel %vm71, %v690, 0.0
    %704 = vadd.xlane.f32.xlu0 %v703
    %v705 = vpop.xlane.xlu0 %704
    %v706 = vsel %vm71, %v692, 0.0
    %707 = vadd.xlane.f32.xlu0 %v706
    %v708 = vpop.xlane.xlu0 %707
    %v709 = vsel %vm71, %v694, 0.0
    %710 = vadd.xlane.f32.xlu0 %v709
    %v711 = vpop.xlane.xlu0 %710
    %v712 = vsel %vm71, %v696, 0.0
    %713 = vadd.xlane.f32.xlu0 %v712
    %v714 = vpop.xlane.xlu0 %713
    %v715 = vrcp.pop %v699
    %v716 = vmul.f32 %v686, %v715
    %v717 = vrcp.pop %v702
    %v718 = vmul.f32 %v688, %v717
    %v719 = vrcp.pop %v705
    %v720 = vmul.f32 %v690, %v719
    %v721 = vrcp.pop %v708
    %v722 = vmul.f32 %v692, %v721
    %v723 = vrcp.pop %v711
    %v724 = vmul.f32 %v694, %v723
    %v725 = vrcp.pop %v714
    %v726 = vmul.f32 %v696, %v725
    %727 = vrot.lane.b32.xlu0 %v483, 64
    %v728 = vpop.permute.xlu0 %727
    %729 = vrot.lane.b32.xlu0 %v488, 64
    %v730 = vpop.permute.xlu0 %729
    %731 = vrot.lane.b32.xlu0 %v493, 64
    %v732 = vpop.permute.xlu0 %731
    %733 = vrot.lane.b32.xlu0 %v498, 64
    %v734 = vpop.permute.xlu0 %733
    %735 = vrot.lane.b32.xlu0 %v503, 64
    %v736 = vpop.permute.xlu0 %735
    %737 = vrot.lane.b32.xlu0 %v508, 64
    %v738 = vpop.permute.xlu0 %737
    %v746 = vsel %vm71, %v716, 0
    %v749 = vsel %vm71, %v718, 0
    %v752 = vsel %vm71, %v720, 0
    %v755 = vsel %vm71, %v722, 0
    %v758 = vsel %vm71, %v724, 0
    %v761 = vsel %vm71, %v726, 0
    %763 = vmatprep.subr.mxu0 0.0
    %764 = vmatpush1.msra.mxu0 %v728
    %765 = vmatprep.subr.mxu0 0.0
    %766 = vmatpush1.msra.mxu0 %v730
    %767 = vmatprep.subr.mxu0 0.0
    %768 = vmatpush1.msra.mxu0 %v732
    %769 = vmatprep.subr.mxu0 0.0
    %770 = vmatpush1.msra.mxu0 %v734
    %771 = vmatprep.subr.mxu0 0.0
    %772 = vmatpush1.msra.mxu0 %v736
    %773 = vmatprep.subr.mxu0 0.0
    %774 = vmatpush1.msra.mxu0 %v738
    %775 = vmatprep.subr.mxu0 0.0
    %776 = vmatpush1.msra.mxu0 0.0
    %777 = vmatprep.subr.mxu0 0.0
    %778 = vmatpush1.msra.mxu0 0.0
    %779 = vmatprep.subr.mxu0 0.0
    %780 = vmatpush1.msra.mxu0 0.0
    %781 = vmatprep.subr.mxu0 0.0
    %782 = vmatpush1.msra.mxu0 0.0
    %783 = vmatprep.subr.mxu0 0.0
    %784 = vmatpush1.msra.mxu0 0.0
    %785 = vmatprep.subr.mxu0 0.0
    %786 = vmatpush1.msra.mxu0 0.0
    %787 = vmatprep.subr.mxu0 0.0
    %788 = vmatpush1.msra.mxu0 0.0
    %789 = vmatprep.subr.mxu0 0.0
    %790 = vmatpush1.msra.mxu0 0.0
    %791 = vmatprep.subr.mxu0 0.0
    %792 = vmatpush1.msra.mxu0 0.0
    %793 = vmatprep.subr.mxu0 0.0
    %794 = vmatpush1.msra.mxu0 0.0
    %795 = vmatprep.subr.mxu0 0.0
    %796 = vmatpush1.msra.mxu0 0.0
    %797 = vmatprep.subr.mxu0 0.0
    %798 = vmatpush1.msra.mxu0 0.0
    %799 = vmatprep.subr.mxu0 0.0
    %800 = vmatpush1.msra.mxu0 0.0
    %801 = vmatprep.subr.mxu0 0.0
    %802 = vmatpush1.msra.mxu0 0.0
    %803 = vmatprep.subr.mxu0 0.0
    %804 = vmatpush1.msra.mxu0 0.0
    %805 = vmatprep.subr.mxu0 0.0
    %806 = vmatpush1.msra.mxu0 0.0
    %807 = vmatprep.subr.mxu0 0.0
    %808 = vmatpush1.msra.mxu0 0.0
    %809 = vmatprep.subr.mxu0 0.0
    %810 = vmatpush1.msra.mxu0 0.0
    %811 = vmatprep.subr.mxu0 0.0
    %812 = vmatpush1.msra.mxu0 0.0
    %813 = vmatprep.subr.mxu0 0.0
    %814 = vmatpush1.msra.mxu0 0.0
    %815 = vmatprep.subr.mxu0 0.0
    %816 = vmatpush1.msra.mxu0 0.0
    %817 = vmatprep.subr.mxu0 0.0
    %818 = vmatpush1.msra.mxu0 0.0
    %819 = vmatprep.subr.mxu0 0.0
    %820 = vmatpush1.msra.mxu0 0.0
    %821 = vmatprep.subr.mxu0 0.0
    %822 = vmatpush1.msra.mxu0 0.0
    %823 = vmatprep.subr.mxu0 0.0
    %824 = vmatpush1.msra.mxu0 0.0
    %825 = vmatprep.subr.mxu0 0.0
    %826 = vmatpush1.msra.mxu0 0.0
    %827 = vmatprep.mubr.f32.mxu0 0.0
    %828 = vmatmul.mubr.f32.gmra.mrb[0].mxu0 %v746
    %v829 = vpop.f32.mrb[0].mxu0
    %v830 = vadd.f32 0.0, %v829
    %v831 = vpop.f32.mrb[0].mxu0
    %832 = vmatprep.mubr.f32.mxu0 0.0
    %833 = vmatmul.mubr.f32.gmra.mrb[0].mxu0 %v749
    %v834 = vpop.f32.mrb[0].mxu0
    %v835 = vadd.f32 0.0, %v834
    %v836 = vpop.f32.mrb[0].mxu0
    %837 = vmatprep.mubr.f32.mxu0 0.0
    %838 = vmatmul.mubr.f32.gmra.mrb[0].mxu0 %v752
    %v839 = vpop.f32.mrb[0].mxu0
    %v840 = vadd.f32 0.0, %v839
    %v841 = vpop.f32.mrb[0].mxu0
    %842 = vmatprep.mubr.f32.mxu0 0.0
    %843 = vmatmul.mubr.f32.gmra.mrb[0].mxu0 %v755
    %v844 = vpop.f32.mrb[0].mxu0
    %v845 = vadd.f32 0.0, %v844
    %v846 = vpop.f32.mrb[0].mxu0
    %847 = vmatprep.mubr.f32.mxu0 0.0
    %848 = vmatmul.mubr.f32.gmra.mrb[0].mxu0 %v758
    %v849 = vpop.f32.mrb[0].mxu0
    %v850 = vadd.f32 0.0, %v849
    %v851 = vpop.f32.mrb[0].mxu0
    %852 = vmatprep.mubr.f32.mxu0 0.0
    %853 = vmatmul.mubr.f32.gmra.mrb[0].mxu0 %v761
    %v854 = vpop.f32.mrb[0].mxu0
    %v855 = vadd.f32 0.0, %v854
    %v856 = vpop.f32.mrb[0].mxu0
    %857 = vdwg.mxu0
    %858 = vrot.lane.b32.xlu0 %v483, 120
    %v859 = vpop.permute.xlu0 %858
    %860 = vrot.lane.b32.xlu0 %v488, 120
    %v861 = vpop.permute.xlu0 %860
    %862 = vrot.lane.b32.xlu0 %v493, 120
    %v863 = vpop.permute.xlu0 %862
    %864 = vrot.lane.b32.xlu0 %v498, 120
    %v865 = vpop.permute.xlu0 %864
    %866 = vrot.lane.b32.xlu0 %v503, 120
    %v867 = vpop.permute.xlu0 %866
    %868 = vrot.lane.b32.xlu0 %v508, 120
    %v869 = vpop.permute.xlu0 %868
    %870 = vrot.lane.b32.xlu0 %v483, 88
    %v871 = vpop.permute.xlu0 %870
    %872 = vrot.lane.b32.xlu0 %v488, 88
    %v873 = vpop.permute.xlu0 %872
    %874 = vrot.lane.b32.xlu0 %v493, 88
    %v875 = vpop.permute.xlu0 %874
    %876 = vrot.lane.b32.xlu0 %v498, 88
    %v877 = vpop.permute.xlu0 %876
    %878 = vrot.lane.b32.xlu0 %v503, 88
    %v879 = vpop.permute.xlu0 %878
    %880 = vrot.lane.b32.xlu0 %v508, 88
    %v881 = vpop.permute.xlu0 %880
    %v882 = vsel %vm529, %v859, 0
    %v884 = vsel %vm529, %v861, 0
    %v886 = vsel %vm529, %v863, 0
    %v888 = vsel %vm529, %v865, 0
    %v890 = vsel %vm529, %v867, 0
    %v892 = vsel %vm529, %v869, 0
    %v894 = vsel %vm529, %v871, 0
    %v896 = vsel %vm529, %v873, 0
    %v898 = vsel %vm529, %v875, 0
    %v900 = vsel %vm529, %v877, 0
    %v902 = vsel %vm529, %v879, 0
    %v904 = vsel %vm529, %v881, 0
    %906 = vmatprep.subr.mxu0 0.0
    %907 = vmatpush1.xpose.msra.mxu0 %v894
    %908 = vmatprep.subr.mxu0 0.0
    %909 = vmatpush1.xpose.msra.mxu0 %v896
    %910 = vmatprep.subr.mxu0 0.0
    %911 = vmatpush1.xpose.msra.mxu0 %v898
    %912 = vmatprep.subr.mxu0 0.0
    %913 = vmatpush1.xpose.msra.mxu0 %v900
    %914 = vmatprep.subr.mxu0 0.0
    %915 = vmatpush1.xpose.msra.mxu0 %v902
    %916 = vmatprep.subr.mxu0 0.0
    %917 = vmatpush1.xpose.msra.mxu0 %v904
    %918 = vmatprep.subr.mxu0 0.0
    %919 = vmatpush1.xpose.msra.mxu0 0.0
    %920 = vmatprep.subr.mxu0 0.0
    %921 = vmatpush1.xpose.msra.mxu0 0.0
    %922 = vmatprep.subr.mxu0 0.0
    %923 = vmatpush1.xpose.msra.mxu0 0.0
    %924 = vmatprep.subr.mxu0 0.0
    %925 = vmatpush1.xpose.msra.mxu0 0.0
    %926 = vmatprep.subr.mxu0 0.0
    %927 = vmatpush1.xpose.msra.mxu0 0.0
    %928 = vmatprep.subr.mxu0 0.0
    %929 = vmatpush1.xpose.msra.mxu0 0.0
    %930 = vmatprep.subr.mxu0 0.0
    %931 = vmatpush1.xpose.msra.mxu0 0.0
    %932 = vmatprep.subr.mxu0 0.0
    %933 = vmatpush1.xpose.msra.mxu0 0.0
    %934 = vmatprep.subr.mxu0 0.0
    %935 = vmatpush1.xpose.msra.mxu0 0.0
    %936 = vmatprep.subr.mxu0 0.0
    %937 = vmatpush1.xpose.msra.mxu0 0.0
    %938 = vmatprep.subr.mxu0 0.0
    %939 = vmatpush1.xpose.msra.mxu0 0.0
    %940 = vmatprep.subr.mxu0 0.0
    %941 = vmatpush1.xpose.msra.mxu0 0.0
    %942 = vmatprep.subr.mxu0 0.0
    %943 = vmatpush1.xpose.msra.mxu0 0.0
    %944 = vmatprep.subr.mxu0 0.0
    %945 = vmatpush1.xpose.msra.mxu0 0.0
    %946 = vmatprep.subr.mxu0 0.0
    %947 = vmatpush1.xpose.msra.mxu0 0.0
    %948 = vmatprep.subr.mxu0 0.0
    %949 = vmatpush1.xpose.msra.mxu0 0.0
    %950 = vmatprep.subr.mxu0 0.0
    %951 = vmatpush1.xpose.msra.mxu0 0.0
    %952 = vmatprep.subr.mxu0 0.0
    %953 = vmatpush1.xpose.msra.mxu0 0.0
    %954 = vmatprep.subr.mxu0 0.0
    %955 = vmatpush1.xpose.msra.mxu0 0.0
    %956 = vmatprep.subr.mxu0 0.0
    %957 = vmatpush1.xpose.msra.mxu0 0.0
    %958 = vmatprep.subr.mxu0 0.0
    %959 = vmatpush1.xpose.msra.mxu0 0.0
    %960 = vmatprep.subr.mxu0 0.0
    %961 = vmatpush1.xpose.msra.mxu0 0.0
    %962 = vmatprep.subr.mxu0 0.0
    %963 = vmatpush1.xpose.msra.mxu0 0.0
    %964 = vmatprep.subr.mxu0 0.0
    %965 = vmatpush1.xpose.msra.mxu0 0.0
    %966 = vmatprep.subr.mxu0 0.0
    %967 = vmatpush1.xpose.msra.mxu0 0.0
    %968 = vmatprep.subr.mxu0 0.0
    %969 = vmatpush1.xpose.msra.mxu0 0.0
    %970 = vmatprep.mubr.f32.mxu0 0.0
    %971 = vmatmul.mubr.f32.gmra.mrb[0].mxu0 %v882
    %v972 = vpop.f32.mrb[0].mxu0
    %v973 = vadd.f32 0.0, %v972
    %v974 = vpop.f32.mrb[0].mxu0
    %975 = vmatprep.mubr.f32.mxu0 0.0
    %976 = vmatmul.mubr.f32.gmra.mrb[0].mxu0 %v884
    %v977 = vpop.f32.mrb[0].mxu0
    %v978 = vadd.f32 0.0, %v977
    %v979 = vpop.f32.mrb[0].mxu0
    %980 = vmatprep.mubr.f32.mxu0 0.0
    %981 = vmatmul.mubr.f32.gmra.mrb[0].mxu0 %v886
    %v982 = vpop.f32.mrb[0].mxu0
    %v983 = vadd.f32 0.0, %v982
    %v984 = vpop.f32.mrb[0].mxu0
    %985 = vmatprep.mubr.f32.mxu0 0.0
    %986 = vmatmul.mubr.f32.gmra.mrb[0].mxu0 %v888
    %v987 = vpop.f32.mrb[0].mxu0
    %v988 = vadd.f32 0.0, %v987
    %v989 = vpop.f32.mrb[0].mxu0
    %990 = vmatprep.mubr.f32.mxu0 0.0
    %991 = vmatmul.mubr.f32.gmra.mrb[0].mxu0 %v890
    %v992 = vpop.f32.mrb[0].mxu0
    %v993 = vadd.f32 0.0, %v992
    %v994 = vpop.f32.mrb[0].mxu0
    %995 = vmatprep.mubr.f32.mxu0 0.0
    %996 = vmatmul.mubr.f32.gmra.mrb[0].mxu0 %v892
    %v997 = vpop.f32.mrb[0].mxu0
    %v998 = vadd.f32 0.0, %v997
    %v999 = vpop.f32.mrb[0].mxu0
    %1000 = vdwg.mxu0
    %v1001 = vmul.f32 %v973, 0.35355338
    %v1002 = vmul.f32 %v978, 0.35355338
    %v1003 = vmul.f32 %v983, 0.35355338
    %v1004 = vmul.f32 %v988, 0.35355338
    %v1005 = vmul.f32 %v993, 0.35355338
    %v1006 = vmul.f32 %v998, 0.35355338
    %v1007 = vadd.f32 %v1001, %v282
    %v1008 = vadd.f32 %v1002, %v283
    %v1009 = vadd.f32 %v1003, %v284
    %v1010 = vadd.f32 %v1004, %v285
    %v1011 = vadd.f32 %v1005, %v286
    %v1012 = vadd.f32 %v1006, %v287
    %v1013 = vsel %vm71, %v1007, -inf
    %1014 = vmax.xlane.f32.xlu0 %v1013
    %v1015 = vpop.xlane.xlu0 %1014
    %v1016 = vsel %vm71, %v1008, -inf
    %1017 = vmax.xlane.f32.xlu0 %v1016
    %v1018 = vpop.xlane.xlu0 %1017
    %v1019 = vsel %vm71, %v1009, -inf
    %1020 = vmax.xlane.f32.xlu0 %v1019
    %v1021 = vpop.xlane.xlu0 %1020
    %v1022 = vsel %vm71, %v1010, -inf
    %1023 = vmax.xlane.f32.xlu0 %v1022
    %v1024 = vpop.xlane.xlu0 %1023
    %v1025 = vsel %vm71, %v1011, -inf
    %1026 = vmax.xlane.f32.xlu0 %v1025
    %v1027 = vpop.xlane.xlu0 %1026
    %v1028 = vsel %vm71, %v1012, -inf
    %1029 = vmax.xlane.f32.xlu0 %v1028
    %v1030 = vpop.xlane.xlu0 %1029
    %v1031 = vsub.f32 %v1007, %v1015
    %v1032 = vsub.f32 %v1008, %v1018
    %v1033 = vsub.f32 %v1009, %v1021
    %v1034 = vsub.f32 %v1010, %v1024
    %v1035 = vsub.f32 %v1011, %v1027
    %v1036 = vsub.f32 %v1012, %v1030
    %v1037 = vmul.f32 %v1031, 1.442695
    %v1038 = vpow.pop %v1037
    %v1039 = vmul.f32 %v1032, 1.442695
    %v1040 = vpow.pop %v1039
    %v1041 = vmul.f32 %v1033, 1.442695
    %v1042 = vpow.pop %v1041
    %v1043 = vmul.f32 %v1034, 1.442695
    %v1044 = vpow.pop %v1043
    %v1045 = vmul.f32 %v1035, 1.442695
    %v1046 = vpow.pop %v1045
    %v1047 = vmul.f32 %v1036, 1.442695
    %v1048 = vpow.pop %v1047
    %v1049 = vsel %vm71, %v1038, 0.0
    %1050 = vadd.xlane.f32.xlu0 %v1049
    %v1051 = vpop.xlane.xlu0 %1050
    %v1052 = vsel %vm71, %v1040, 0.0
    %1053 = vadd.xlane.f32.xlu0 %v1052
    %v1054 = vpop.xlane.xlu0 %1053
    %v1055 = vsel %vm71, %v1042, 0.0
    %1056 = vadd.xlane.f32.xlu0 %v1055
    %v1057 = vpop.xlane.xlu0 %1056
    %v1058 = vsel %vm71, %v1044, 0.0
    %1059 = vadd.xlane.f32.xlu0 %v1058
    %v1060 = vpop.xlane.xlu0 %1059
    %v1061 = vsel %vm71, %v1046, 0.0
    %1062 = vadd.xlane.f32.xlu0 %v1061
    %v1063 = vpop.xlane.xlu0 %1062
    %v1064 = vsel %vm71, %v1048, 0.0
    %1065 = vadd.xlane.f32.xlu0 %v1064
    %v1066 = vpop.xlane.xlu0 %1065
    %v1067 = vrcp.pop %v1051
    %v1068 = vmul.f32 %v1038, %v1067
    %v1069 = vrcp.pop %v1054
    %v1070 = vmul.f32 %v1040, %v1069
    %v1071 = vrcp.pop %v1057
    %v1072 = vmul.f32 %v1042, %v1071
    %v1073 = vrcp.pop %v1060
    %v1074 = vmul.f32 %v1044, %v1073
    %v1075 = vrcp.pop %v1063
    %v1076 = vmul.f32 %v1046, %v1075
    %v1077 = vrcp.pop %v1066
    %v1078 = vmul.f32 %v1048, %v1077
    %1079 = vrot.lane.b32.xlu0 %v483, 56
    %v1080 = vpop.permute.xlu0 %1079
    %1081 = vrot.lane.b32.xlu0 %v488, 56
    %v1082 = vpop.permute.xlu0 %1081
    %1083 = vrot.lane.b32.xlu0 %v493, 56
    %v1084 = vpop.permute.xlu0 %1083
    %1085 = vrot.lane.b32.xlu0 %v498, 56
    %v1086 = vpop.permute.xlu0 %1085
    %1087 = vrot.lane.b32.xlu0 %v503, 56
    %v1088 = vpop.permute.xlu0 %1087
    %1089 = vrot.lane.b32.xlu0 %v508, 56
    %v1090 = vpop.permute.xlu0 %1089
    %v1098 = vsel %vm71, %v1068, 0
    %v1101 = vsel %vm71, %v1070, 0
    %v1104 = vsel %vm71, %v1072, 0
    %v1107 = vsel %vm71, %v1074, 0
    %v1110 = vsel %vm71, %v1076, 0
    %v1113 = vsel %vm71, %v1078, 0
    %1115 = vmatprep.subr.mxu0 0.0
    %1116 = vmatpush1.msra.mxu0 %v1080
    %1117 = vmatprep.subr.mxu0 0.0
    %1118 = vmatpush1.msra.mxu0 %v1082
    %1119 = vmatprep.subr.mxu0 0.0
    %1120 = vmatpush1.msra.mxu0 %v1084
    %1121 = vmatprep.subr.mxu0 0.0
    %1122 = vmatpush1.msra.mxu0 %v1086
    %1123 = vmatprep.subr.mxu0 0.0
    %1124 = vmatpush1.msra.mxu0 %v1088
    %1125 = vmatprep.subr.mxu0 0.0
    %1126 = vmatpush1.msra.mxu0 %v1090
    %1127 = vmatprep.subr.mxu0 0.0
    %1128 = vmatpush1.msra.mxu0 0.0
    %1129 = vmatprep.subr.mxu0 0.0
    %1130 = vmatpush1.msra.mxu0 0.0
    %1131 = vmatprep.subr.mxu0 0.0
    %1132 = vmatpush1.msra.mxu0 0.0
    %1133 = vmatprep.subr.mxu0 0.0
    %1134 = vmatpush1.msra.mxu0 0.0
    %1135 = vmatprep.subr.mxu0 0.0
    %1136 = vmatpush1.msra.mxu0 0.0
    %1137 = vmatprep.subr.mxu0 0.0
    %1138 = vmatpush1.msra.mxu0 0.0
    %1139 = vmatprep.subr.mxu0 0.0
    %1140 = vmatpush1.msra.mxu0 0.0
    %1141 = vmatprep.subr.mxu0 0.0
    %1142 = vmatpush1.msra.mxu0 0.0
    %1143 = vmatprep.subr.mxu0 0.0
    %1144 = vmatpush1.msra.mxu0 0.0
    %1145 = vmatprep.subr.mxu0 0.0
    %1146 = vmatpush1.msra.mxu0 0.0
    %1147 = vmatprep.subr.mxu0 0.0
    %1148 = vmatpush1.msra.mxu0 0.0
    %1149 = vmatprep.subr.mxu0 0.0
    %1150 = vmatpush1.msra.mxu0 0.0
    %1151 = vmatprep.subr.mxu0 0.0
    %1152 = vmatpush1.msra.mxu0 0.0
    %1153 = vmatprep.subr.mxu0 0.0
    %1154 = vmatpush1.msra.mxu0 0.0
    %1155 = vmatprep.subr.mxu0 0.0
    %1156 = vmatpush1.msra.mxu0 0.0
    %1157 = vmatprep.subr.mxu0 0.0
    %1158 = vmatpush1.msra.mxu0 0.0
    %1159 = vmatprep.subr.mxu0 0.0
    %1160 = vmatpush1.msra.mxu0 0.0
    %1161 = vmatprep.subr.mxu0 0.0
    %1162 = vmatpush1.msra.mxu0 0.0
    %1163 = vmatprep.subr.mxu0 0.0
    %1164 = vmatpush1.msra.mxu0 0.0
    %1165 = vmatprep.subr.mxu0 0.0
    %1166 = vmatpush1.msra.mxu0 0.0
    %1167 = vmatprep.subr.mxu0 0.0
    %1168 = vmatpush1.msra.mxu0 0.0
    %1169 = vmatprep.subr.mxu0 0.0
    %1170 = vmatpush1.msra.mxu0 0.0
    %1171 = vmatprep.subr.mxu0 0.0
    %1172 = vmatpush1.msra.mxu0 0.0
    %1173 = vmatprep.subr.mxu0 0.0
    %1174 = vmatpush1.msra.mxu0 0.0
    %1175 = vmatprep.subr.mxu0 0.0
    %1176 = vmatpush1.msra.mxu0 0.0
    %1177 = vmatprep.subr.mxu0 0.0
    %1178 = vmatpush1.msra.mxu0 0.0
    %1179 = vmatprep.mubr.f32.mxu0 0.0
    %1180 = vmatmul.mubr.f32.gmra.mrb[0].mxu0 %v1098
    %v1181 = vpop.f32.mrb[0].mxu0
    %v1182 = vadd.f32 0.0, %v1181
    %v1183 = vpop.f32.mrb[0].mxu0
    %1184 = vmatprep.mubr.f32.mxu0 0.0
    %1185 = vmatmul.mubr.f32.gmra.mrb[0].mxu0 %v1101
    %v1186 = vpop.f32.mrb[0].mxu0
    %v1187 = vadd.f32 0.0, %v1186
    %v1188 = vpop.f32.mrb[0].mxu0
    %1189 = vmatprep.mubr.f32.mxu0 0.0
    %1190 = vmatmul.mubr.f32.gmra.mrb[0].mxu0 %v1104
    %v1191 = vpop.f32.mrb[0].mxu0
    %v1192 = vadd.f32 0.0, %v1191
    %v1193 = vpop.f32.mrb[0].mxu0
    %1194 = vmatprep.mubr.f32.mxu0 0.0
    %1195 = vmatmul.mubr.f32.gmra.mrb[0].mxu0 %v1107
    %v1196 = vpop.f32.mrb[0].mxu0
    %v1197 = vadd.f32 0.0, %v1196
    %v1198 = vpop.f32.mrb[0].mxu0
    %1199 = vmatprep.mubr.f32.mxu0 0.0
    %1200 = vmatmul.mubr.f32.gmra.mrb[0].mxu0 %v1110
    %v1201 = vpop.f32.mrb[0].mxu0
    %v1202 = vadd.f32 0.0, %v1201
    %v1203 = vpop.f32.mrb[0].mxu0
    %1204 = vmatprep.mubr.f32.mxu0 0.0
    %1205 = vmatmul.mubr.f32.gmra.mrb[0].mxu0 %v1113
    %v1206 = vpop.f32.mrb[0].mxu0
    %v1207 = vadd.f32 0.0, %v1206
    %v1208 = vpop.f32.mrb[0].mxu0
    %1209 = vdwg.mxu0
    %1210 = vrot.lane.b32.xlu0 %v483, 112
    %v1211 = vpop.permute.xlu0 %1210
    %1212 = vrot.lane.b32.xlu0 %v488, 112
    %v1213 = vpop.permute.xlu0 %1212
    %1214 = vrot.lane.b32.xlu0 %v493, 112
    %v1215 = vpop.permute.xlu0 %1214
    %1216 = vrot.lane.b32.xlu0 %v498, 112
    %v1217 = vpop.permute.xlu0 %1216
    %1218 = vrot.lane.b32.xlu0 %v503, 112
    %v1219 = vpop.permute.xlu0 %1218
    %1220 = vrot.lane.b32.xlu0 %v508, 112
    %v1221 = vpop.permute.xlu0 %1220
    %1222 = vrot.lane.b32.xlu0 %v483, 80
    %v1223 = vpop.permute.xlu0 %1222
    %1224 = vrot.lane.b32.xlu0 %v488, 80
    %v1225 = vpop.permute.xlu0 %1224
    %1226 = vrot.lane.b32.xlu0 %v493, 80
    %v1227 = vpop.permute.xlu0 %1226
    %1228 = vrot.lane.b32.xlu0 %v498, 80
    %v1229 = vpop.permute.xlu0 %1228
    %1230 = vrot.lane.b32.xlu0 %v503, 80
    %v1231 = vpop.permute.xlu0 %1230
    %1232 = vrot.lane.b32.xlu0 %v508, 80
    %v1233 = vpop.permute.xlu0 %1232
    %v1234 = vsel %vm529, %v1211, 0
    %v1236 = vsel %vm529, %v1213, 0
    %v1238 = vsel %vm529, %v1215, 0
    %v1240 = vsel %vm529, %v1217, 0
    %v1242 = vsel %vm529, %v1219, 0
    %v1244 = vsel %vm529, %v1221, 0
    %v1246 = vsel %vm529, %v1223, 0
    %v1248 = vsel %vm529, %v1225, 0
    %v1250 = vsel %vm529, %v1227, 0
    %v1252 = vsel %vm529, %v1229, 0
    %v1254 = vsel %vm529, %v1231, 0
    %v1256 = vsel %vm529, %v1233, 0
    %1258 = vmatprep.subr.mxu0 0.0
    %1259 = vmatpush1.xpose.msra.mxu0 %v1246
    %1260 = vmatprep.subr.mxu0 0.0
    %1261 = vmatpush1.xpose.msra.mxu0 %v1248
    %1262 = vmatprep.subr.mxu0 0.0
    %1263 = vmatpush1.xpose.msra.mxu0 %v1250
    %1264 = vmatprep.subr.mxu0 0.0
    %1265 = vmatpush1.xpose.msra.mxu0 %v1252
    %1266 = vmatprep.subr.mxu0 0.0
    %1267 = vmatpush1.xpose.msra.mxu0 %v1254
    %1268 = vmatprep.subr.mxu0 0.0
    %1269 = vmatpush1.xpose.msra.mxu0 %v1256
    %1270 = vmatprep.subr.mxu0 0.0
    %1271 = vmatpush1.xpose.msra.mxu0 0.0
    %1272 = vmatprep.subr.mxu0 0.0
    %1273 = vmatpush1.xpose.msra.mxu0 0.0
    %1274 = vmatprep.subr.mxu0 0.0
    %1275 = vmatpush1.xpose.msra.mxu0 0.0
    %1276 = vmatprep.subr.mxu0 0.0
    %1277 = vmatpush1.xpose.msra.mxu0 0.0
    %1278 = vmatprep.subr.mxu0 0.0
    %1279 = vmatpush1.xpose.msra.mxu0 0.0
    %1280 = vmatprep.subr.mxu0 0.0
    %1281 = vmatpush1.xpose.msra.mxu0 0.0
    %1282 = vmatprep.subr.mxu0 0.0
    %1283 = vmatpush1.xpose.msra.mxu0 0.0
    %1284 = vmatprep.subr.mxu0 0.0
    %1285 = vmatpush1.xpose.msra.mxu0 0.0
    %1286 = vmatprep.subr.mxu0 0.0
    %1287 = vmatpush1.xpose.msra.mxu0 0.0
    %1288 = vmatprep.subr.mxu0 0.0
    %1289 = vmatpush1.xpose.msra.mxu0 0.0
    %1290 = vmatprep.subr.mxu0 0.0
    %1291 = vmatpush1.xpose.msra.mxu0 0.0
    %1292 = vmatprep.subr.mxu0 0.0
    %1293 = vmatpush1.xpose.msra.mxu0 0.0
    %1294 = vmatprep.subr.mxu0 0.0
    %1295 = vmatpush1.xpose.msra.mxu0 0.0
    %1296 = vmatprep.subr.mxu0 0.0
    %1297 = vmatpush1.xpose.msra.mxu0 0.0
    %1298 = vmatprep.subr.mxu0 0.0
    %1299 = vmatpush1.xpose.msra.mxu0 0.0
    %1300 = vmatprep.subr.mxu0 0.0
    %1301 = vmatpush1.xpose.msra.mxu0 0.0
    %1302 = vmatprep.subr.mxu0 0.0
    %1303 = vmatpush1.xpose.msra.mxu0 0.0
    %1304 = vmatprep.subr.mxu0 0.0
    %1305 = vmatpush1.xpose.msra.mxu0 0.0
    %1306 = vmatprep.subr.mxu0 0.0
    %1307 = vmatpush1.xpose.msra.mxu0 0.0
    %1308 = vmatprep.subr.mxu0 0.0
    %1309 = vmatpush1.xpose.msra.mxu0 0.0
    %1310 = vmatprep.subr.mxu0 0.0
    %1311 = vmatpush1.xpose.msra.mxu0 0.0
    %1312 = vmatprep.subr.mxu0 0.0
    %1313 = vmatpush1.xpose.msra.mxu0 0.0
    %1314 = vmatprep.subr.mxu0 0.0
    %1315 = vmatpush1.xpose.msra.mxu0 0.0
    %1316 = vmatprep.subr.mxu0 0.0
    %1317 = vmatpush1.xpose.msra.mxu0 0.0
    %1318 = vmatprep.subr.mxu0 0.0
    %1319 = vmatpush1.xpose.msra.mxu0 0.0
    %1320 = vmatprep.subr.mxu0 0.0
    %1321 = vmatpush1.xpose.msra.mxu0 0.0
    %1322 = vmatprep.mubr.f32.mxu0 0.0
    %1323 = vmatmul.mubr.f32.gmra.mrb[0].mxu0 %v1234
    %v1324 = vpop.f32.mrb[0].mxu0
    %v1325 = vadd.f32 0.0, %v1324
    %v1326 = vpop.f32.mrb[0].mxu0
    %1327 = vmatprep.mubr.f32.mxu0 0.0
    %1328 = vmatmul.mubr.f32.gmra.mrb[0].mxu0 %v1236
    %v1329 = vpop.f32.mrb[0].mxu0
    %v1330 = vadd.f32 0.0, %v1329
    %v1331 = vpop.f32.mrb[0].mxu0
    %1332 = vmatprep.mubr.f32.mxu0 0.0
    %1333 = vmatmul.mubr.f32.gmra.mrb[0].mxu0 %v1238
    %v1334 = vpop.f32.mrb[0].mxu0
    %v1335 = vadd.f32 0.0, %v1334
    %v1336 = vpop.f32.mrb[0].mxu0
    %1337 = vmatprep.mubr.f32.mxu0 0.0
    %1338 = vmatmul.mubr.f32.gmra.mrb[0].mxu0 %v1240
    %v1339 = vpop.f32.mrb[0].mxu0
    %v1340 = vadd.f32 0.0, %v1339
    %v1341 = vpop.f32.mrb[0].mxu0
    %1342 = vmatprep.mubr.f32.mxu0 0.0
    %1343 = vmatmul.mubr.f32.gmra.mrb[0].mxu0 %v1242
    %v1344 = vpop.f32.mrb[0].mxu0
    %v1345 = vadd.f32 0.0, %v1344
    %v1346 = vpop.f32.mrb[0].mxu0
    %1347 = vmatprep.mubr.f32.mxu0 0.0
    %1348 = vmatmul.mubr.f32.gmra.mrb[0].mxu0 %v1244
    %v1349 = vpop.f32.mrb[0].mxu0
    %v1350 = vadd.f32 0.0, %v1349
    %v1351 = vpop.f32.mrb[0].mxu0
    %1352 = vdwg.mxu0
    %v1353 = vmul.f32 %v1325, 0.35355338
    %v1354 = vmul.f32 %v1330, 0.35355338
    %v1355 = vmul.f32 %v1335, 0.35355338
    %v1356 = vmul.f32 %v1340, 0.35355338
    %v1357 = vmul.f32 %v1345, 0.35355338
    %v1358 = vmul.f32 %v1350, 0.35355338
    %v1359 = vadd.f32 %v1353, %v282
    %v1360 = vadd.f32 %v1354, %v283
    %v1361 = vadd.f32 %v1355, %v284
    %v1362 = vadd.f32 %v1356, %v285
    %v1363 = vadd.f32 %v1357, %v286
    %v1364 = vadd.f32 %v1358, %v287
    %v1365 = vsel %vm71, %v1359, -inf
    %1366 = vmax.xlane.f32.xlu0 %v1365
    %v1367 = vpop.xlane.xlu0 %1366
    %v1368 = vsel %vm71, %v1360, -inf
    %1369 = vmax.xlane.f32.xlu0 %v1368
    %v1370 = vpop.xlane.xlu0 %1369
    %v1371 = vsel %vm71, %v1361, -inf
    %1372 = vmax.xlane.f32.xlu0 %v1371
    %v1373 = vpop.xlane.xlu0 %1372
    %v1374 = vsel %vm71, %v1362, -inf
    %1375 = vmax.xlane.f32.xlu0 %v1374
    %v1376 = vpop.xlane.xlu0 %1375
    %v1377 = vsel %vm71, %v1363, -inf
    %1378 = vmax.xlane.f32.xlu0 %v1377
    %v1379 = vpop.xlane.xlu0 %1378
    %v1380 = vsel %vm71, %v1364, -inf
    %1381 = vmax.xlane.f32.xlu0 %v1380
    %v1382 = vpop.xlane.xlu0 %1381
    %v1383 = vsub.f32 %v1359, %v1367
    %v1384 = vsub.f32 %v1360, %v1370
    %v1385 = vsub.f32 %v1361, %v1373
    %v1386 = vsub.f32 %v1362, %v1376
    %v1387 = vsub.f32 %v1363, %v1379
    %v1388 = vsub.f32 %v1364, %v1382
    %v1389 = vmul.f32 %v1383, 1.442695
    %v1390 = vpow.pop %v1389
    %v1391 = vmul.f32 %v1384, 1.442695
    %v1392 = vpow.pop %v1391
    %v1393 = vmul.f32 %v1385, 1.442695
    %v1394 = vpow.pop %v1393
    %v1395 = vmul.f32 %v1386, 1.442695
    %v1396 = vpow.pop %v1395
    %v1397 = vmul.f32 %v1387, 1.442695
    %v1398 = vpow.pop %v1397
    %v1399 = vmul.f32 %v1388, 1.442695
    %v1400 = vpow.pop %v1399
    %v1401 = vsel %vm71, %v1390, 0.0
    %1402 = vadd.xlane.f32.xlu0 %v1401
    %v1403 = vpop.xlane.xlu0 %1402
    %v1404 = vsel %vm71, %v1392, 0.0
    %1405 = vadd.xlane.f32.xlu0 %v1404
    %v1406 = vpop.xlane.xlu0 %1405
    %v1407 = vsel %vm71, %v1394, 0.0
    %1408 = vadd.xlane.f32.xlu0 %v1407
    %v1409 = vpop.xlane.xlu0 %1408
    %v1410 = vsel %vm71, %v1396, 0.0
    %1411 = vadd.xlane.f32.xlu0 %v1410
    %v1412 = vpop.xlane.xlu0 %1411
    %v1413 = vsel %vm71, %v1398, 0.0
    %1414 = vadd.xlane.f32.xlu0 %v1413
    %v1415 = vpop.xlane.xlu0 %1414
    %v1416 = vsel %vm71, %v1400, 0.0
    %1417 = vadd.xlane.f32.xlu0 %v1416
    %v1418 = vpop.xlane.xlu0 %1417
    %v1419 = vrcp.pop %v1403
    %v1420 = vmul.f32 %v1390, %v1419
    %v1421 = vrcp.pop %v1406
    %v1422 = vmul.f32 %v1392, %v1421
    %v1423 = vrcp.pop %v1409
    %v1424 = vmul.f32 %v1394, %v1423
    %v1425 = vrcp.pop %v1412
    %v1426 = vmul.f32 %v1396, %v1425
    %v1427 = vrcp.pop %v1415
    %v1428 = vmul.f32 %v1398, %v1427
    %v1429 = vrcp.pop %v1418
    %v1430 = vmul.f32 %v1400, %v1429
    %1431 = vrot.lane.b32.xlu0 %v483, 48
    %v1432 = vpop.permute.xlu0 %1431
    %1433 = vrot.lane.b32.xlu0 %v488, 48
    %v1434 = vpop.permute.xlu0 %1433
    %1435 = vrot.lane.b32.xlu0 %v493, 48
    %v1436 = vpop.permute.xlu0 %1435
    %1437 = vrot.lane.b32.xlu0 %v498, 48
    %v1438 = vpop.permute.xlu0 %1437
    %1439 = vrot.lane.b32.xlu0 %v503, 48
    %v1440 = vpop.permute.xlu0 %1439
    %1441 = vrot.lane.b32.xlu0 %v508, 48
    %v1442 = vpop.permute.xlu0 %1441
    %v1450 = vsel %vm71, %v1420, 0
    %v1453 = vsel %vm71, %v1422, 0
    %v1456 = vsel %vm71, %v1424, 0
    %v1459 = vsel %vm71, %v1426, 0
    %v1462 = vsel %vm71, %v1428, 0
    %v1465 = vsel %vm71, %v1430, 0
    %1467 = vmatprep.subr.mxu0 0.0
    %1468 = vmatpush1.msra.mxu0 %v1432
    %1469 = vmatprep.subr.mxu0 0.0
    %1470 = vmatpush1.msra.mxu0 %v1434
    %1471 = vmatprep.subr.mxu0 0.0
    %1472 = vmatpush1.msra.mxu0 %v1436
    %1473 = vmatprep.subr.mxu0 0.0
    %1474 = vmatpush1.msra.mxu0 %v1438
    %1475 = vmatprep.subr.mxu0 0.0
    %1476 = vmatpush1.msra.mxu0 %v1440
    %1477 = vmatprep.subr.mxu0 0.0
    %1478 = vmatpush1.msra.mxu0 %v1442
    %1479 = vmatprep.subr.mxu0 0.0
    %1480 = vmatpush1.msra.mxu0 0.0
    %1481 = vmatprep.subr.mxu0 0.0
    %1482 = vmatpush1.msra.mxu0 0.0
    %1483 = vmatprep.subr.mxu0 0.0
    %1484 = vmatpush1.msra.mxu0 0.0
    %1485 = vmatprep.subr.mxu0 0.0
    %1486 = vmatpush1.msra.mxu0 0.0
    %1487 = vmatprep.subr.mxu0 0.0
    %1488 = vmatpush1.msra.mxu0 0.0
    %1489 = vmatprep.subr.mxu0 0.0
    %1490 = vmatpush1.msra.mxu0 0.0
    %1491 = vmatprep.subr.mxu0 0.0
    %1492 = vmatpush1.msra.mxu0 0.0
    %1493 = vmatprep.subr.mxu0 0.0
    %1494 = vmatpush1.msra.mxu0 0.0
    %1495 = vmatprep.subr.mxu0 0.0
    %1496 = vmatpush1.msra.mxu0 0.0
    %1497 = vmatprep.subr.mxu0 0.0
    %1498 = vmatpush1.msra.mxu0 0.0
    %1499 = vmatprep.subr.mxu0 0.0
    %1500 = vmatpush1.msra.mxu0 0.0
    %1501 = vmatprep.subr.mxu0 0.0
    %1502 = vmatpush1.msra.mxu0 0.0
    %1503 = vmatprep.subr.mxu0 0.0
    %1504 = vmatpush1.msra.mxu0 0.0
    %1505 = vmatprep.subr.mxu0 0.0
    %1506 = vmatpush1.msra.mxu0 0.0
    %1507 = vmatprep.subr.mxu0 0.0
    %1508 = vmatpush1.msra.mxu0 0.0
    %1509 = vmatprep.subr.mxu0 0.0
    %1510 = vmatpush1.msra.mxu0 0.0
    %1511 = vmatprep.subr.mxu0 0.0
    %1512 = vmatpush1.msra.mxu0 0.0
    %1513 = vmatprep.subr.mxu0 0.0
    %1514 = vmatpush1.msra.mxu0 0.0
    %1515 = vmatprep.subr.mxu0 0.0
    %1516 = vmatpush1.msra.mxu0 0.0
    %1517 = vmatprep.subr.mxu0 0.0
    %1518 = vmatpush1.msra.mxu0 0.0
    %1519 = vmatprep.subr.mxu0 0.0
    %1520 = vmatpush1.msra.mxu0 0.0
    %1521 = vmatprep.subr.mxu0 0.0
    %1522 = vmatpush1.msra.mxu0 0.0
    %1523 = vmatprep.subr.mxu0 0.0
    %1524 = vmatpush1.msra.mxu0 0.0
    %1525 = vmatprep.subr.mxu0 0.0
    %1526 = vmatpush1.msra.mxu0 0.0
    %1527 = vmatprep.subr.mxu0 0.0
    %1528 = vmatpush1.msra.mxu0 0.0
    %1529 = vmatprep.subr.mxu0 0.0
    %1530 = vmatpush1.msra.mxu0 0.0
    %1531 = vmatprep.mubr.f32.mxu0 0.0
    %1532 = vmatmul.mubr.f32.gmra.mrb[0].mxu0 %v1450
    %v1533 = vpop.f32.mrb[0].mxu0
    %v1534 = vadd.f32 0.0, %v1533
    %v1535 = vpop.f32.mrb[0].mxu0
    %1536 = vmatprep.mubr.f32.mxu0 0.0
    %1537 = vmatmul.mubr.f32.gmra.mrb[0].mxu0 %v1453
    %v1538 = vpop.f32.mrb[0].mxu0
    %v1539 = vadd.f32 0.0, %v1538
    %v1540 = vpop.f32.mrb[0].mxu0
    %1541 = vmatprep.mubr.f32.mxu0 0.0
    %1542 = vmatmul.mubr.f32.gmra.mrb[0].mxu0 %v1456
    %v1543 = vpop.f32.mrb[0].mxu0
    %v1544 = vadd.f32 0.0, %v1543
    %v1545 = vpop.f32.mrb[0].mxu0
    %1546 = vmatprep.mubr.f32.mxu0 0.0
    %1547 = vmatmul.mubr.f32.gmra.mrb[0].mxu0 %v1459
    %v1548 = vpop.f32.mrb[0].mxu0
    %v1549 = vadd.f32 0.0, %v1548
    %v1550 = vpop.f32.mrb[0].mxu0
    %1551 = vmatprep.mubr.f32.mxu0 0.0
    %1552 = vmatmul.mubr.f32.gmra.mrb[0].mxu0 %v1462
    %v1553 = vpop.f32.mrb[0].mxu0
    %v1554 = vadd.f32 0.0, %v1553
    %v1555 = vpop.f32.mrb[0].mxu0
    %1556 = vmatprep.mubr.f32.mxu0 0.0
    %1557 = vmatmul.mubr.f32.gmra.mrb[0].mxu0 %v1465
    %v1558 = vpop.f32.mrb[0].mxu0
    %v1559 = vadd.f32 0.0, %v1558
    %v1560 = vpop.f32.mrb[0].mxu0
    %1561 = vdwg.mxu0
    %1562 = vrot.lane.b32.xlu0 %v483, 104
    %v1563 = vpop.permute.xlu0 %1562
    %1564 = vrot.lane.b32.xlu0 %v488, 104
    %v1565 = vpop.permute.xlu0 %1564
    %1566 = vrot.lane.b32.xlu0 %v493, 104
    %v1567 = vpop.permute.xlu0 %1566
    %1568 = vrot.lane.b32.xlu0 %v498, 104
    %v1569 = vpop.permute.xlu0 %1568
    %1570 = vrot.lane.b32.xlu0 %v503, 104
    %v1571 = vpop.permute.xlu0 %1570
    %1572 = vrot.lane.b32.xlu0 %v508, 104
    %v1573 = vpop.permute.xlu0 %1572
    %1574 = vrot.lane.b32.xlu0 %v483, 72
    %v1575 = vpop.permute.xlu0 %1574
    %1576 = vrot.lane.b32.xlu0 %v488, 72
    %v1577 = vpop.permute.xlu0 %1576
    %1578 = vrot.lane.b32.xlu0 %v493, 72
    %v1579 = vpop.permute.xlu0 %1578
    %1580 = vrot.lane.b32.xlu0 %v498, 72
    %v1581 = vpop.permute.xlu0 %1580
    %1582 = vrot.lane.b32.xlu0 %v503, 72
    %v1583 = vpop.permute.xlu0 %1582
    %1584 = vrot.lane.b32.xlu0 %v508, 72
    %v1585 = vpop.permute.xlu0 %1584
    %v1586 = vsel %vm529, %v1563, 0
    %v1588 = vsel %vm529, %v1565, 0
    %v1590 = vsel %vm529, %v1567, 0
    %v1592 = vsel %vm529, %v1569, 0
    %v1594 = vsel %vm529, %v1571, 0
    %v1596 = vsel %vm529, %v1573, 0
    %v1598 = vsel %vm529, %v1575, 0
    %v1600 = vsel %vm529, %v1577, 0
    %v1602 = vsel %vm529, %v1579, 0
    %v1604 = vsel %vm529, %v1581, 0
    %v1606 = vsel %vm529, %v1583, 0
    %v1608 = vsel %vm529, %v1585, 0
    %1610 = vmatprep.subr.mxu0 0.0
    %1611 = vmatpush1.xpose.msra.mxu0 %v1598
    %1612 = vmatprep.subr.mxu0 0.0
    %1613 = vmatpush1.xpose.msra.mxu0 %v1600
    %1614 = vmatprep.subr.mxu0 0.0
    %1615 = vmatpush1.xpose.msra.mxu0 %v1602
    %1616 = vmatprep.subr.mxu0 0.0
    %1617 = vmatpush1.xpose.msra.mxu0 %v1604
    %1618 = vmatprep.subr.mxu0 0.0
    %1619 = vmatpush1.xpose.msra.mxu0 %v1606
    %1620 = vmatprep.subr.mxu0 0.0
    %1621 = vmatpush1.xpose.msra.mxu0 %v1608
    %1622 = vmatprep.subr.mxu0 0.0
    %1623 = vmatpush1.xpose.msra.mxu0 0.0
    %1624 = vmatprep.subr.mxu0 0.0
    %1625 = vmatpush1.xpose.msra.mxu0 0.0
    %1626 = vmatprep.subr.mxu0 0.0
    %1627 = vmatpush1.xpose.msra.mxu0 0.0
    %1628 = vmatprep.subr.mxu0 0.0
    %1629 = vmatpush1.xpose.msra.mxu0 0.0
    %1630 = vmatprep.subr.mxu0 0.0
    %1631 = vmatpush1.xpose.msra.mxu0 0.0
    %1632 = vmatprep.subr.mxu0 0.0
    %1633 = vmatpush1.xpose.msra.mxu0 0.0
    %1634 = vmatprep.subr.mxu0 0.0
    %1635 = vmatpush1.xpose.msra.mxu0 0.0
    %1636 = vmatprep.subr.mxu0 0.0
    %1637 = vmatpush1.xpose.msra.mxu0 0.0
    %1638 = vmatprep.subr.mxu0 0.0
    %1639 = vmatpush1.xpose.msra.mxu0 0.0
    %1640 = vmatprep.subr.mxu0 0.0
    %1641 = vmatpush1.xpose.msra.mxu0 0.0
    %1642 = vmatprep.subr.mxu0 0.0
    %1643 = vmatpush1.xpose.msra.mxu0 0.0
    %1644 = vmatprep.subr.mxu0 0.0
    %1645 = vmatpush1.xpose.msra.mxu0 0.0
    %1646 = vmatprep.subr.mxu0 0.0
    %1647 = vmatpush1.xpose.msra.mxu0 0.0
    %1648 = vmatprep.subr.mxu0 0.0
    %1649 = vmatpush1.xpose.msra.mxu0 0.0
    %1650 = vmatprep.subr.mxu0 0.0
    %1651 = vmatpush1.xpose.msra.mxu0 0.0
    %1652 = vmatprep.subr.mxu0 0.0
    %1653 = vmatpush1.xpose.msra.mxu0 0.0
    %1654 = vmatprep.subr.mxu0 0.0
    %1655 = vmatpush1.xpose.msra.mxu0 0.0
    %1656 = vmatprep.subr.mxu0 0.0
    %1657 = vmatpush1.xpose.msra.mxu0 0.0
    %1658 = vmatprep.subr.mxu0 0.0
    %1659 = vmatpush1.xpose.msra.mxu0 0.0
    %1660 = vmatprep.subr.mxu0 0.0
    %1661 = vmatpush1.xpose.msra.mxu0 0.0
    %1662 = vmatprep.subr.mxu0 0.0
    %1663 = vmatpush1.xpose.msra.mxu0 0.0
    %1664 = vmatprep.subr.mxu0 0.0
    %1665 = vmatpush1.xpose.msra.mxu0 0.0
    %1666 = vmatprep.subr.mxu0 0.0
    %1667 = vmatpush1.xpose.msra.mxu0 0.0
    %1668 = vmatprep.subr.mxu0 0.0
    %1669 = vmatpush1.xpose.msra.mxu0 0.0
    %1670 = vmatprep.subr.mxu0 0.0
    %1671 = vmatpush1.xpose.msra.mxu0 0.0
    %1672 = vmatprep.subr.mxu0 0.0
    %1673 = vmatpush1.xpose.msra.mxu0 0.0
    %1674 = vmatprep.mubr.f32.mxu0 0.0
    %1675 = vmatmul.mubr.f32.gmra.mrb[0].mxu0 %v1586
    %v1676 = vpop.f32.mrb[0].mxu0
    %v1677 = vadd.f32 0.0, %v1676
    %v1678 = vpop.f32.mrb[0].mxu0
    %1679 = vmatprep.mubr.f32.mxu0 0.0
    %1680 = vmatmul.mubr.f32.gmra.mrb[0].mxu0 %v1588
    %v1681 = vpop.f32.mrb[0].mxu0
    %v1682 = vadd.f32 0.0, %v1681
    %v1683 = vpop.f32.mrb[0].mxu0
    %1684 = vmatprep.mubr.f32.mxu0 0.0
    %1685 = vmatmul.mubr.f32.gmra.mrb[0].mxu0 %v1590
    %v1686 = vpop.f32.mrb[0].mxu0
    %v1687 = vadd.f32 0.0, %v1686
    %v1688 = vpop.f32.mrb[0].mxu0
    %1689 = vmatprep.mubr.f32.mxu0 0.0
    %1690 = vmatmul.mubr.f32.gmra.mrb[0].mxu0 %v1592
    %v1691 = vpop.f32.mrb[0].mxu0
    %v1692 = vadd.f32 0.0, %v1691
    %v1693 = vpop.f32.mrb[0].mxu0
    %1694 = vmatprep.mubr.f32.mxu0 0.0
    %1695 = vmatmul.mubr.f32.gmra.mrb[0].mxu0 %v1594
    %v1696 = vpop.f32.mrb[0].mxu0
    %v1697 = vadd.f32 0.0, %v1696
    %v1698 = vpop.f32.mrb[0].mxu0
    %1699 = vmatprep.mubr.f32.mxu0 0.0
    %1700 = vmatmul.mubr.f32.gmra.mrb[0].mxu0 %v1596
    %v1701 = vpop.f32.mrb[0].mxu0
    %v1702 = vadd.f32 0.0, %v1701
    %v1703 = vpop.f32.mrb[0].mxu0
    %1704 = vdwg.mxu0
    %v1705 = vmul.f32 %v1677, 0.35355338
    %v1706 = vmul.f32 %v1682, 0.35355338
    %v1707 = vmul.f32 %v1687, 0.35355338
    %v1708 = vmul.f32 %v1692, 0.35355338
    %v1709 = vmul.f32 %v1697, 0.35355338
    %v1710 = vmul.f32 %v1702, 0.35355338
    %v1711 = vadd.f32 %v1705, %v282
    %v1712 = vadd.f32 %v1706, %v283
    %v1713 = vadd.f32 %v1707, %v284
    %v1714 = vadd.f32 %v1708, %v285
    %v1715 = vadd.f32 %v1709, %v286
    %v1716 = vadd.f32 %v1710, %v287
    %v1717 = vsel %vm71, %v1711, -inf
    %1718 = vmax.xlane.f32.xlu0 %v1717
    %v1719 = vpop.xlane.xlu0 %1718
    %v1720 = vsel %vm71, %v1712, -inf
    %1721 = vmax.xlane.f32.xlu0 %v1720
    %v1722 = vpop.xlane.xlu0 %1721
    %v1723 = vsel %vm71, %v1713, -inf
    %1724 = vmax.xlane.f32.xlu0 %v1723
    %v1725 = vpop.xlane.xlu0 %1724
    %v1726 = vsel %vm71, %v1714, -inf
    %1727 = vmax.xlane.f32.xlu0 %v1726
    %v1728 = vpop.xlane.xlu0 %1727
    %v1729 = vsel %vm71, %v1715, -inf
    %1730 = vmax.xlane.f32.xlu0 %v1729
    %v1731 = vpop.xlane.xlu0 %1730
    %v1732 = vsel %vm71, %v1716, -inf
    %1733 = vmax.xlane.f32.xlu0 %v1732
    %v1734 = vpop.xlane.xlu0 %1733
    %v1735 = vsub.f32 %v1711, %v1719
    %v1736 = vsub.f32 %v1712, %v1722
    %v1737 = vsub.f32 %v1713, %v1725
    %v1738 = vsub.f32 %v1714, %v1728
    %v1739 = vsub.f32 %v1715, %v1731
    %v1740 = vsub.f32 %v1716, %v1734
    %v1741 = vmul.f32 %v1735, 1.442695
    %v1742 = vpow.pop %v1741
    %v1743 = vmul.f32 %v1736, 1.442695
    %v1744 = vpow.pop %v1743
    %v1745 = vmul.f32 %v1737, 1.442695
    %v1746 = vpow.pop %v1745
    %v1747 = vmul.f32 %v1738, 1.442695
    %v1748 = vpow.pop %v1747
    %v1749 = vmul.f32 %v1739, 1.442695
    %v1750 = vpow.pop %v1749
    %v1751 = vmul.f32 %v1740, 1.442695
    %v1752 = vpow.pop %v1751
    %v1753 = vsel %vm71, %v1742, 0.0
    %1754 = vadd.xlane.f32.xlu0 %v1753
    %v1755 = vpop.xlane.xlu0 %1754
    %v1756 = vsel %vm71, %v1744, 0.0
    %1757 = vadd.xlane.f32.xlu0 %v1756
    %v1758 = vpop.xlane.xlu0 %1757
    %v1759 = vsel %vm71, %v1746, 0.0
    %1760 = vadd.xlane.f32.xlu0 %v1759
    %v1761 = vpop.xlane.xlu0 %1760
    %v1762 = vsel %vm71, %v1748, 0.0
    %1763 = vadd.xlane.f32.xlu0 %v1762
    %v1764 = vpop.xlane.xlu0 %1763
    %v1765 = vsel %vm71, %v1750, 0.0
    %1766 = vadd.xlane.f32.xlu0 %v1765
    %v1767 = vpop.xlane.xlu0 %1766
    %v1768 = vsel %vm71, %v1752, 0.0
    %1769 = vadd.xlane.f32.xlu0 %v1768
    %v1770 = vpop.xlane.xlu0 %1769
    %v1771 = vrcp.pop %v1755
    %v1772 = vmul.f32 %v1742, %v1771
    %v1773 = vrcp.pop %v1758
    %v1774 = vmul.f32 %v1744, %v1773
    %v1775 = vrcp.pop %v1761
    %v1776 = vmul.f32 %v1746, %v1775
    %v1777 = vrcp.pop %v1764
    %v1778 = vmul.f32 %v1748, %v1777
    %v1779 = vrcp.pop %v1767
    %v1780 = vmul.f32 %v1750, %v1779
    %v1781 = vrcp.pop %v1770
    %v1782 = vmul.f32 %v1752, %v1781
    %1783 = vrot.lane.b32.xlu0 %v483, 40
    %v1784 = vpop.permute.xlu0 %1783
    %1785 = vrot.lane.b32.xlu0 %v488, 40
    %v1786 = vpop.permute.xlu0 %1785
    %1787 = vrot.lane.b32.xlu0 %v493, 40
    %v1788 = vpop.permute.xlu0 %1787
    %1789 = vrot.lane.b32.xlu0 %v498, 40
    %v1790 = vpop.permute.xlu0 %1789
    %1791 = vrot.lane.b32.xlu0 %v503, 40
    %v1792 = vpop.permute.xlu0 %1791
    %1793 = vrot.lane.b32.xlu0 %v508, 40
    %v1794 = vpop.permute.xlu0 %1793
    %v1802 = vsel %vm71, %v1772, 0
    %v1805 = vsel %vm71, %v1774, 0
    %v1808 = vsel %vm71, %v1776, 0
    %v1811 = vsel %vm71, %v1778, 0
    %v1814 = vsel %vm71, %v1780, 0
    %v1817 = vsel %vm71, %v1782, 0
    %1819 = vmatprep.subr.mxu0 0.0
    %1820 = vmatpush1.msra.mxu0 %v1784
    %1821 = vmatprep.subr.mxu0 0.0
    %1822 = vmatpush1.msra.mxu0 %v1786
    %1823 = vmatprep.subr.mxu0 0.0
    %1824 = vmatpush1.msra.mxu0 %v1788
    %1825 = vmatprep.subr.mxu0 0.0
    %1826 = vmatpush1.msra.mxu0 %v1790
    %1827 = vmatprep.subr.mxu0 0.0
    %1828 = vmatpush1.msra.mxu0 %v1792
    %1829 = vmatprep.subr.mxu0 0.0
    %1830 = vmatpush1.msra.mxu0 %v1794
    %1831 = vmatprep.subr.mxu0 0.0
    %1832 = vmatpush1.msra.mxu0 0.0
    %1833 = vmatprep.subr.mxu0 0.0
    %1834 = vmatpush1.msra.mxu0 0.0
    %1835 = vmatprep.subr.mxu0 0.0
    %1836 = vmatpush1.msra.mxu0 0.0
    %1837 = vmatprep.subr.mxu0 0.0
    %1838 = vmatpush1.msra.mxu0 0.0
    %1839 = vmatprep.subr.mxu0 0.0
    %1840 = vmatpush1.msra.mxu0 0.0
    %1841 = vmatprep.subr.mxu0 0.0
    %1842 = vmatpush1.msra.mxu0 0.0
    %1843 = vmatprep.subr.mxu0 0.0
    %1844 = vmatpush1.msra.mxu0 0.0
    %1845 = vmatprep.subr.mxu0 0.0
    %1846 = vmatpush1.msra.mxu0 0.0
    %1847 = vmatprep.subr.mxu0 0.0
    %1848 = vmatpush1.msra.mxu0 0.0
    %1849 = vmatprep.subr.mxu0 0.0
    %1850 = vmatpush1.msra.mxu0 0.0
    %1851 = vmatprep.subr.mxu0 0.0
    %1852 = vmatpush1.msra.mxu0 0.0
    %1853 = vmatprep.subr.mxu0 0.0
    %1854 = vmatpush1.msra.mxu0 0.0
    %1855 = vmatprep.subr.mxu0 0.0
    %1856 = vmatpush1.msra.mxu0 0.0
    %1857 = vmatprep.subr.mxu0 0.0
    %1858 = vmatpush1.msra.mxu0 0.0
    %1859 = vmatprep.subr.mxu0 0.0
    %1860 = vmatpush1.msra.mxu0 0.0
    %1861 = vmatprep.subr.mxu0 0.0
    %1862 = vmatpush1.msra.mxu0 0.0
    %1863 = vmatprep.subr.mxu0 0.0
    %1864 = vmatpush1.msra.mxu0 0.0
    %1865 = vmatprep.subr.mxu0 0.0
    %1866 = vmatpush1.msra.mxu0 0.0
    %1867 = vmatprep.subr.mxu0 0.0
    %1868 = vmatpush1.msra.mxu0 0.0
    %1869 = vmatprep.subr.mxu0 0.0
    %1870 = vmatpush1.msra.mxu0 0.0
    %1871 = vmatprep.subr.mxu0 0.0
    %1872 = vmatpush1.msra.mxu0 0.0
    %1873 = vmatprep.subr.mxu0 0.0
    %1874 = vmatpush1.msra.mxu0 0.0
    %1875 = vmatprep.subr.mxu0 0.0
    %1876 = vmatpush1.msra.mxu0 0.0
    %1877 = vmatprep.subr.mxu0 0.0
    %1878 = vmatpush1.msra.mxu0 0.0
    %1879 = vmatprep.subr.mxu0 0.0
    %1880 = vmatpush1.msra.mxu0 0.0
    %1881 = vmatprep.subr.mxu0 0.0
    %1882 = vmatpush1.msra.mxu0 0.0
    %1883 = vmatprep.mubr.f32.mxu0 0.0
    %1884 = vmatmul.mubr.f32.gmra.mrb[0].mxu0 %v1802
    %v1885 = vpop.f32.mrb[0].mxu0
    %v1886 = vadd.f32 0.0, %v1885
    %v1887 = vpop.f32.mrb[0].mxu0
    %1888 = vmatprep.mubr.f32.mxu0 0.0
    %1889 = vmatmul.mubr.f32.gmra.mrb[0].mxu0 %v1805
    %v1890 = vpop.f32.mrb[0].mxu0
    %v1891 = vadd.f32 0.0, %v1890
    %v1892 = vpop.f32.mrb[0].mxu0
    %1893 = vmatprep.mubr.f32.mxu0 0.0
    %1894 = vmatmul.mubr.f32.gmra.mrb[0].mxu0 %v1808
    %v1895 = vpop.f32.mrb[0].mxu0
    %v1896 = vadd.f32 0.0, %v1895
    %v1897 = vpop.f32.mrb[0].mxu0
    %1898 = vmatprep.mubr.f32.mxu0 0.0
    %1899 = vmatmul.mubr.f32.gmra.mrb[0].mxu0 %v1811
    %v1900 = vpop.f32.mrb[0].mxu0
    %v1901 = vadd.f32 0.0, %v1900
    %v1902 = vpop.f32.mrb[0].mxu0
    %1903 = vmatprep.mubr.f32.mxu0 0.0
    %1904 = vmatmul.mubr.f32.gmra.mrb[0].mxu0 %v1814
    %v1905 = vpop.f32.mrb[0].mxu0
    %v1906 = vadd.f32 0.0, %v1905
    %v1907 = vpop.f32.mrb[0].mxu0
    %1908 = vmatprep.mubr.f32.mxu0 0.0
    %1909 = vmatmul.mubr.f32.gmra.mrb[0].mxu0 %v1817
    %v1910 = vpop.f32.mrb[0].mxu0
    %v1911 = vadd.f32 0.0, %v1910
    %v1912 = vpop.f32.mrb[0].mxu0
    %1913 = vdwg.mxu0
    %1920 = vrot.lane.b32.xlu0 %v1182, 8
    %v1921 = vpop.permute.xlu0 %1920
    %1922 = vrot.lane.b32.xlu0 %v1187, 8
    %v1923 = vpop.permute.xlu0 %1922
    %1924 = vrot.lane.b32.xlu0 %v1192, 8
    %v1925 = vpop.permute.xlu0 %1924
    %1926 = vrot.lane.b32.xlu0 %v1197, 8
    %v1927 = vpop.permute.xlu0 %1926
    %1928 = vrot.lane.b32.xlu0 %v1202, 8
    %v1929 = vpop.permute.xlu0 %1928
    %1930 = vrot.lane.b32.xlu0 %v1207, 8
    %v1931 = vpop.permute.xlu0 %1930
    %1944 = vrot.lane.b32.xlu0 %v1534, 16
    %v1945 = vpop.permute.xlu0 %1944
    %1946 = vrot.lane.b32.xlu0 %v1539, 16
    %v1947 = vpop.permute.xlu0 %1946
    %1948 = vrot.lane.b32.xlu0 %v1544, 16
    %v1949 = vpop.permute.xlu0 %1948
    %1950 = vrot.lane.b32.xlu0 %v1549, 16
    %v1951 = vpop.permute.xlu0 %1950
    %1952 = vrot.lane.b32.xlu0 %v1554, 16
    %v1953 = vpop.permute.xlu0 %1952
    %1954 = vrot.lane.b32.xlu0 %v1559, 16
    %v1955 = vpop.permute.xlu0 %1954
    %1968 = vrot.lane.b32.xlu0 %v1886, 24
    %v1969 = vpop.permute.xlu0 %1968
    %1970 = vrot.lane.b32.xlu0 %v1891, 24
    %v1971 = vpop.permute.xlu0 %1970
    %1972 = vrot.lane.b32.xlu0 %v1896, 24
    %v1973 = vpop.permute.xlu0 %1972
    %1974 = vrot.lane.b32.xlu0 %v1901, 24
    %v1975 = vpop.permute.xlu0 %1974
    %1976 = vrot.lane.b32.xlu0 %v1906, 24
    %v1977 = vpop.permute.xlu0 %1976
    %1978 = vrot.lane.b32.xlu0 %v1911, 24
    %v1979 = vpop.permute.xlu0 %1978
    %v1986 = vsel %vm529, %v830, %v1921
    %v1987 = vsel %vm529, %v835, %v1923
    %v1988 = vsel %vm529, %v840, %v1925
    %v1989 = vsel %vm529, %v845, %v1927
    %v1990 = vsel %vm529, %v850, %v1929
    %v1991 = vsel %vm529, %v855, %v1931
    %vm1992 = vcmask 130048
    %v1993 = vsel %vm1992, %v1986, %v1945
    %v1994 = vsel %vm1992, %v1987, %v1947
    %v1995 = vsel %vm1992, %v1988, %v1949
    %v1996 = vsel %vm1992, %v1989, %v1951
    %v1997 = vsel %vm1992, %v1990, %v1953
    %v1998 = vsel %vm1992, %v1991, %v1955
    %vm1999 = vcmask 195584
    %v2000 = vsel %vm1999, %v1993, %v1969
    %v2001 = vsel %vm1999, %v1994, %v1971
    %v2002 = vsel %vm1999, %v1995, %v1973
    %v2003 = vsel %vm1999, %v1996, %v1975
    %v2004 = vsel %vm1999, %v1997, %v1977
    %v2005 = vsel %vm1999, %v1998, %v1979
    %v2006 = vld [vmem:[%s8] sm:$0xff]
    %v2007 = vld [vmem:[%s8 + $0x8] sm:$0xff]
    %v2008 = vld [vmem:[%s8 + $0x10] sm:$0xff]
    %v2009 = vld [vmem:[%s8 + $0x18] sm:$0xff]
    %v2010 = vld [vmem:[%s9] sm:$0x1]
    %v2012 = vlaneseq
    %v2013 = vshrl.u32 %v2012, 7
    %v2014 = vsub.s32 0, %v2013
    %v2015 = vrot.slane %v2010, %v2014
    %v2018 = vsel %vm169, %v2000, 0
    %v2021 = vsel %vm169, %v2001, 0
    %v2024 = vsel %vm169, %v2002, 0
    %v2027 = vsel %vm169, %v2003, 0
    %v2030 = vsel %vm169, %v2004, 0
    %v2033 = vsel %vm169, %v2005, 0
    %2035 = vmatprep.subr.mxu0 0.0
    %2036 = vmatpush1.msra.mxu0 %v2006
    %2037 = vmatprep.subr.mxu0 0.0
    %2038 = vmatpush1.msra.mxu0 %v2007
    %2039 = vmatprep.subr.mxu0 0.0
    %2040 = vmatpush1.msra.mxu0 %v2008
    %2041 = vmatprep.subr.mxu0 0.0
    %2042 = vmatpush1.msra.mxu0 %v2009
    %2043 = vmatprep.subr.mxu0 0.0
    %2044 = vmatpush1.msra.mxu0 0.0
    %2045 = vmatprep.subr.mxu0 0.0
    %2046 = vmatpush1.msra.mxu0 0.0
    %2047 = vmatprep.subr.mxu0 0.0
    %2048 = vmatpush1.msra.mxu0 0.0
    %2049 = vmatprep.subr.mxu0 0.0
    %2050 = vmatpush1.msra.mxu0 0.0
    %2051 = vmatprep.subr.mxu0 0.0
    %2052 = vmatpush1.msra.mxu0 0.0
    %2053 = vmatprep.subr.mxu0 0.0
    %2054 = vmatpush1.msra.mxu0 0.0
    %2055 = vmatprep.subr.mxu0 0.0
    %2056 = vmatpush1.msra.mxu0 0.0
    %2057 = vmatprep.subr.mxu0 0.0
    %2058 = vmatpush1.msra.mxu0 0.0
    %2059 = vmatprep.subr.mxu0 0.0
    %2060 = vmatpush1.msra.mxu0 0.0
    %2061 = vmatprep.subr.mxu0 0.0
    %2062 = vmatpush1.msra.mxu0 0.0
    %2063 = vmatprep.subr.mxu0 0.0
    %2064 = vmatpush1.msra.mxu0 0.0
    %2065 = vmatprep.subr.mxu0 0.0
    %2066 = vmatpush1.msra.mxu0 0.0
    %2067 = vmatprep.subr.mxu0 0.0
    %2068 = vmatpush1.msra.mxu0 0.0
    %2069 = vmatprep.subr.mxu0 0.0
    %2070 = vmatpush1.msra.mxu0 0.0
    %2071 = vmatprep.subr.mxu0 0.0
    %2072 = vmatpush1.msra.mxu0 0.0
    %2073 = vmatprep.subr.mxu0 0.0
    %2074 = vmatpush1.msra.mxu0 0.0
    %2075 = vmatprep.subr.mxu0 0.0
    %2076 = vmatpush1.msra.mxu0 0.0
    %2077 = vmatprep.subr.mxu0 0.0
    %2078 = vmatpush1.msra.mxu0 0.0
    %2079 = vmatprep.subr.mxu0 0.0
    %2080 = vmatpush1.msra.mxu0 0.0
    %2081 = vmatprep.subr.mxu0 0.0
    %2082 = vmatpush1.msra.mxu0 0.0
    %2083 = vmatprep.subr.mxu0 0.0
    %2084 = vmatpush1.msra.mxu0 0.0
    %2085 = vmatprep.subr.mxu0 0.0
    %2086 = vmatpush1.msra.mxu0 0.0
    %2087 = vmatprep.subr.mxu0 0.0
    %2088 = vmatpush1.msra.mxu0 0.0
    %2089 = vmatprep.subr.mxu0 0.0
    %2090 = vmatpush1.msra.mxu0 0.0
    %2091 = vmatprep.subr.mxu0 0.0
    %2092 = vmatpush1.msra.mxu0 0.0
    %2093 = vmatprep.subr.mxu0 0.0
    %2094 = vmatpush1.msra.mxu0 0.0
    %2095 = vmatprep.subr.mxu0 0.0
    %2096 = vmatpush1.msra.mxu0 0.0
    %2097 = vmatprep.subr.mxu0 0.0
    %2098 = vmatpush1.msra.mxu0 0.0
    %2099 = vmatprep.mubr.f32.mxu0 0.0
    %2100 = vmatmul.mubr.f32.gmra.mrb[0].mxu0 %v2018
    %v2101 = vpop.f32.mrb[0].mxu0
    %v2102 = vadd.f32 %v2015, %v2101
    %v2103 = vpop.f32.mrb[0].mxu0
    %2104 = vmatprep.mubr.f32.mxu0 0.0
    %2105 = vmatmul.mubr.f32.gmra.mrb[0].mxu0 %v2021
    %v2106 = vpop.f32.mrb[0].mxu0
    %v2107 = vadd.f32 %v2015, %v2106
    %v2108 = vpop.f32.mrb[0].mxu0
    %2109 = vmatprep.mubr.f32.mxu0 0.0
    %2110 = vmatmul.mubr.f32.gmra.mrb[0].mxu0 %v2024
    %v2111 = vpop.f32.mrb[0].mxu0
    %v2112 = vadd.f32 %v2015, %v2111
    %v2113 = vpop.f32.mrb[0].mxu0
    %2114 = vmatprep.mubr.f32.mxu0 0.0
    %2115 = vmatmul.mubr.f32.gmra.mrb[0].mxu0 %v2027
    %v2116 = vpop.f32.mrb[0].mxu0
    %v2117 = vadd.f32 %v2015, %v2116
    %v2118 = vpop.f32.mrb[0].mxu0
    %2119 = vmatprep.mubr.f32.mxu0 0.0
    %2120 = vmatmul.mubr.f32.gmra.mrb[0].mxu0 %v2030
    %v2121 = vpop.f32.mrb[0].mxu0
    %v2122 = vadd.f32 %v2015, %v2121
    %v2123 = vpop.f32.mrb[0].mxu0
    %2124 = vmatprep.mubr.f32.mxu0 0.0
    %2125 = vmatmul.mubr.f32.gmra.mrb[0].mxu0 %v2033
    %v2126 = vpop.f32.mrb[0].mxu0
    %v2127 = vadd.f32 %v2015, %v2126
    %v2128 = vpop.f32.mrb[0].mxu0
    %2129 = vdwg.mxu0
    %v2130 = vadd.f32 %v197, %v2102
    %v2131 = vadd.f32 %v198, %v2107
    %v2132 = vadd.f32 %v199, %v2112
    %v2133 = vadd.f32 %v200, %v2117
    %v2134 = vadd.f32 %v201, %v2122
    %v2135 = vadd.f32 %v202, %v2127
    %v2136 = vld [vmem:[%s10] sm:$0x3]
    %v2137 = vsel %vm169, %v2130, 0.0
    %2138 = vadd.xlane.f32.xlu0 %v2137
    %v2139 = vpop.xlane.xlu0 %2138
    %v2140 = vsel %vm169, %v2131, 0.0
    %2141 = vadd.xlane.f32.xlu0 %v2140
    %v2142 = vpop.xlane.xlu0 %2141
    %v2143 = vsel %vm169, %v2132, 0.0
    %2144 = vadd.xlane.f32.xlu0 %v2143
    %v2145 = vpop.xlane.xlu0 %2144
    %v2146 = vsel %vm169, %v2133, 0.0
    %2147 = vadd.xlane.f32.xlu0 %v2146
    %v2148 = vpop.xlane.xlu0 %2147
    %v2149 = vsel %vm169, %v2134, 0.0
    %2150 = vadd.xlane.f32.xlu0 %v2149
    %v2151 = vpop.xlane.xlu0 %2150
    %v2152 = vsel %vm169, %v2135, 0.0
    %2153 = vadd.xlane.f32.xlu0 %v2152
    %v2154 = vpop.xlane.xlu0 %2153
    %v2155 = vmul.f32 %v2139, 0.03125
    %v2156 = vmul.f32 %v2142, 0.03125
    %v2157 = vmul.f32 %v2145, 0.03125
    %v2158 = vmul.f32 %v2148, 0.03125
    %v2159 = vmul.f32 %v2151, 0.03125
    %v2160 = vmul.f32 %v2154, 0.03125
    %v2161 = vsub.f32 %v2130, %v2155
    %v2162 = vsub.f32 %v2131, %v2156
    %v2163 = vsub.f32 %v2132, %v2157
    %v2164 = vsub.f32 %v2133, %v2158
    %v2165 = vsub.f32 %v2134, %v2159
    %v2166 = vsub.f32 %v2135, %v2160
    %v2167 = vmul.f32 %v2161, %v2161
    %v2168 = vmul.f32 %v2162, %v2162
    %v2169 = vmul.f32 %v2163, %v2163
    %v2170 = vmul.f32 %v2164, %v2164
    %v2171 = vmul.f32 %v2165, %v2165
    %v2172 = vmul.f32 %v2166, %v2166
    %v2173 = vsel %vm169, %v2167, 0.0
    %2174 = vadd.xlane.f32.xlu0 %v2173
    %v2175 = vpop.xlane.xlu0 %2174
    %v2176 = vsel %vm169, %v2168, 0.0
    %2177 = vadd.xlane.f32.xlu0 %v2176
    %v2178 = vpop.xlane.xlu0 %2177
    %v2179 = vsel %vm169, %v2169, 0.0
    %2180 = vadd.xlane.f32.xlu0 %v2179
    %v2181 = vpop.xlane.xlu0 %2180
    %v2182 = vsel %vm169, %v2170, 0.0
    %2183 = vadd.xlane.f32.xlu0 %v2182
    %v2184 = vpop.xlane.xlu0 %2183
    %v2185 = vsel %vm169, %v2171, 0.0
    %2186 = vadd.xlane.f32.xlu0 %v2185
    %v2187 = vpop.xlane.xlu0 %2186
    %v2188 = vsel %vm169, %v2172, 0.0
    %2189 = vadd.xlane.f32.xlu0 %v2188
    %v2190 = vpop.xlane.xlu0 %2189
    %v2191 = vmul.f32 %v2175, 0.03125
    %v2192 = vmul.f32 %v2178, 0.03125
    %v2193 = vmul.f32 %v2181, 0.03125
    %v2194 = vmul.f32 %v2184, 0.03125
    %v2195 = vmul.f32 %v2187, 0.03125
    %v2196 = vmul.f32 %v2190, 0.03125
    %v2197 = vadd.f32 %v2191, 1e-12
    %v2198 = vadd.f32 %v2192, 1e-12
    %v2199 = vadd.f32 %v2193, 1e-12
    %v2200 = vadd.f32 %v2194, 1e-12
    %v2201 = vadd.f32 %v2195, 1e-12
    %v2202 = vadd.f32 %v2196, 1e-12
    %v2203 = vrsqrt.pop %v2197
    %v2204 = vrsqrt.pop %v2198
    %v2205 = vrsqrt.pop %v2199
    %v2206 = vrsqrt.pop %v2200
    %v2207 = vrsqrt.pop %v2201
    %v2208 = vrsqrt.pop %v2202
    %v2209 = vmul.f32 %v2161, %v2203
    %v2210 = vmul.f32 %v2162, %v2204
    %v2211 = vmul.f32 %v2163, %v2205
    %v2212 = vmul.f32 %v2164, %v2206
    %v2213 = vmul.f32 %v2165, %v2207
    %v2214 = vmul.f32 %v2166, %v2208
    %v2215 = vlaneseq
    %v2216 = vshrl.u32 %v2215, 7
    %v2217 = vsub.s32 0, %v2216
    %v2218 = vrot.slane %v2136, %v2217
    %v2219 = vmul.f32 %v2209, %v2218
    %v2220 = vmul.f32 %v2210, %v2218
    %v2221 = vmul.f32 %v2211, %v2218
    %v2222 = vmul.f32 %v2212, %v2218
    %v2223 = vmul.f32 %v2213, %v2218
    %v2224 = vmul.f32 %v2214, %v2218
    %v2225 = vlaneseq
    %v2226 = vshrl.u32 %v2225, 7
    %v2227 = vsub.s32 1, %v2226
    %v2228 = vrot.slane %v2136, %v2227
    %v2229 = vadd.f32 %v2219, %v2228
    %v2230 = vadd.f32 %v2220, %v2228
    %v2231 = vadd.f32 %v2221, %v2228
    %v2232 = vadd.f32 %v2222, %v2228
    %v2233 = vadd.f32 %v2223, %v2228
    %v2234 = vadd.f32 %v2224, %v2228
    %v2235 = vld [vmem:[%s11] sm:$0xff]
    %v2236 = vld [vmem:[%s11 + $0x8] sm:$0xff]
    %v2237 = vld [vmem:[%s11 + $0x10] sm:$0xff]
    %v2238 = vld [vmem:[%s11 + $0x18] sm:$0xff]
    %v2239 = vld [vmem:[%s12] sm:$0x1]
    %v2241 = vlaneseq
    %v2242 = vshrl.u32 %v2241, 7
    %v2243 = vsub.s32 0, %v2242
    %v2244 = vrot.slane %v2239, %v2243
    %v2247 = vsel %vm169, %v2229, 0
    %v2250 = vsel %vm169, %v2230, 0
    %v2253 = vsel %vm169, %v2231, 0
    %v2256 = vsel %vm169, %v2232, 0
    %v2259 = vsel %vm169, %v2233, 0
    %v2262 = vsel %vm169, %v2234, 0
    %2264 = vmatprep.subr.mxu0 0.0
    %2265 = vmatpush1.msra.mxu0 %v2235
    %2266 = vmatprep.subr.mxu0 0.0
    %2267 = vmatpush1.msra.mxu0 %v2236
    %2268 = vmatprep.subr.mxu0 0.0
    %2269 = vmatpush1.msra.mxu0 %v2237
    %2270 = vmatprep.subr.mxu0 0.0
    %2271 = vmatpush1.msra.mxu0 %v2238
    %2272 = vmatprep.subr.mxu0 0.0
    %2273 = vmatpush1.msra.mxu0 0.0
    %2274 = vmatprep.subr.mxu0 0.0
    %2275 = vmatpush1.msra.mxu0 0.0
    %2276 = vmatprep.subr.mxu0 0.0
    %2277 = vmatpush1.msra.mxu0 0.0
    %2278 = vmatprep.subr.mxu0 0.0
    %2279 = vmatpush1.msra.mxu0 0.0
    %2280 = vmatprep.subr.mxu0 0.0
    %2281 = vmatpush1.msra.mxu0 0.0
    %2282 = vmatprep.subr.mxu0 0.0
    %2283 = vmatpush1.msra.mxu0 0.0
    %2284 = vmatprep.subr.mxu0 0.0
    %2285 = vmatpush1.msra.mxu0 0.0
    %2286 = vmatprep.subr.mxu0 0.0
    %2287 = vmatpush1.msra.mxu0 0.0
    %2288 = vmatprep.subr.mxu0 0.0
    %2289 = vmatpush1.msra.mxu0 0.0
    %2290 = vmatprep.subr.mxu0 0.0
    %2291 = vmatpush1.msra.mxu0 0.0
    %2292 = vmatprep.subr.mxu0 0.0
    %2293 = vmatpush1.msra.mxu0 0.0
    %2294 = vmatprep.subr.mxu0 0.0
    %2295 = vmatpush1.msra.mxu0 0.0
    %2296 = vmatprep.subr.mxu0 0.0
    %2297 = vmatpush1.msra.mxu0 0.0
    %2298 = vmatprep.subr.mxu0 0.0
    %2299 = vmatpush1.msra.mxu0 0.0
    %2300 = vmatprep.subr.mxu0 0.0
    %2301 = vmatpush1.msra.mxu0 0.0
    %2302 = vmatprep.subr.mxu0 0.0
    %2303 = vmatpush1.msra.mxu0 0.0
    %2304 = vmatprep.subr.mxu0 0.0
    %2305 = vmatpush1.msra.mxu0 0.0
    %2306 = vmatprep.subr.mxu0 0.0
    %2307 = vmatpush1.msra.mxu0 0.0
    %2308 = vmatprep.subr.mxu0 0.0
    %2309 = vmatpush1.msra.mxu0 0.0
    %2310 = vmatprep.subr.mxu0 0.0
    %2311 = vmatpush1.msra.mxu0 0.0
    %2312 = vmatprep.subr.mxu0 0.0
    %2313 = vmatpush1.msra.mxu0 0.0
    %2314 = vmatprep.subr.mxu0 0.0
    %2315 = vmatpush1.msra.mxu0 0.0
    %2316 = vmatprep.subr.mxu0 0.0
    %2317 = vmatpush1.msra.mxu0 0.0
    %2318 = vmatprep.subr.mxu0 0.0
    %2319 = vmatpush1.msra.mxu0 0.0
    %2320 = vmatprep.subr.mxu0 0.0
    %2321 = vmatpush1.msra.mxu0 0.0
    %2322 = vmatprep.subr.mxu0 0.0
    %2323 = vmatpush1.msra.mxu0 0.0
    %2324 = vmatprep.subr.mxu0 0.0
    %2325 = vmatpush1.msra.mxu0 0.0
    %2326 = vmatprep.subr.mxu0 0.0
    %2327 = vmatpush1.msra.mxu0 0.0
    %2328 = vmatprep.mubr.f32.mxu0 0.0
    %2329 = vmatmul.mubr.f32.gmra.mrb[0].mxu0 %v2247
    %v2330 = vpop.f32.mrb[0].mxu0
    %v2331 = vadd.f32 %v2244, %v2330
    %v2332 = vpop.f32.mrb[0].mxu0
    %2333 = vmatprep.mubr.f32.mxu0 0.0
    %2334 = vmatmul.mubr.f32.gmra.mrb[0].mxu0 %v2250
    %v2335 = vpop.f32.mrb[0].mxu0
    %v2336 = vadd.f32 %v2244, %v2335
    %v2337 = vpop.f32.mrb[0].mxu0
    %2338 = vmatprep.mubr.f32.mxu0 0.0
    %2339 = vmatmul.mubr.f32.gmra.mrb[0].mxu0 %v2253
    %v2340 = vpop.f32.mrb[0].mxu0
    %v2341 = vadd.f32 %v2244, %v2340
    %v2342 = vpop.f32.mrb[0].mxu0
    %2343 = vmatprep.mubr.f32.mxu0 0.0
    %2344 = vmatmul.mubr.f32.gmra.mrb[0].mxu0 %v2256
    %v2345 = vpop.f32.mrb[0].mxu0
    %v2346 = vadd.f32 %v2244, %v2345
    %v2347 = vpop.f32.mrb[0].mxu0
    %2348 = vmatprep.mubr.f32.mxu0 0.0
    %2349 = vmatmul.mubr.f32.gmra.mrb[0].mxu0 %v2259
    %v2350 = vpop.f32.mrb[0].mxu0
    %v2351 = vadd.f32 %v2244, %v2350
    %v2352 = vpop.f32.mrb[0].mxu0
    %2353 = vmatprep.mubr.f32.mxu0 0.0
    %2354 = vmatmul.mubr.f32.gmra.mrb[0].mxu0 %v2262
    %v2355 = vpop.f32.mrb[0].mxu0
    %v2356 = vadd.f32 %v2244, %v2355
    %v2357 = vpop.f32.mrb[0].mxu0
    %2358 = vdwg.mxu0
    %v2359 = vmul.f32 %v2331, 0.5
    %v2360 = vmul.f32 %v2336, 0.5
    %v2361 = vmul.f32 %v2341, 0.5
    %v2362 = vmul.f32 %v2346, 0.5
    %v2363 = vmul.f32 %v2351, 0.5
    %v2364 = vmul.f32 %v2356, 0.5
    %v2365 = vmul.f32 %v2331, 0.70710677
    %v2366 = vmul.f32 %v2336, 0.70710677
    %v2367 = vmul.f32 %v2341, 0.70710677
    %v2368 = vmul.f32 %v2346, 0.70710677
    %v2369 = vmul.f32 %v2351, 0.70710677
    %v2370 = vmul.f32 %v2356, 0.70710677
    %v2371 = verf.f32.pop %v2365
    %v2372 = verf.f32.pop %v2366
    %v2373 = verf.f32.pop %v2367
    %v2374 = verf.f32.pop %v2368
    %v2375 = verf.f32.pop %v2369
    %v2376 = verf.f32.pop %v2370
    %v2377 = vadd.f32 %v2371, 1.0
    %v2378 = vadd.f32 %v2372, 1.0
    %v2379 = vadd.f32 %v2373, 1.0
    %v2380 = vadd.f32 %v2374, 1.0
    %v2381 = vadd.f32 %v2375, 1.0
    %v2382 = vadd.f32 %v2376, 1.0
    %v2383 = vmul.f32 %v2359, %v2377
    %v2384 = vmul.f32 %v2360, %v2378
    %v2385 = vmul.f32 %v2361, %v2379
    %v2386 = vmul.f32 %v2362, %v2380
    %v2387 = vmul.f32 %v2363, %v2381
    %v2388 = vmul.f32 %v2364, %v2382
    %v2389 = vld [vmem:[%s13] sm:$0xff]
    %v2390 = vld [vmem:[%s13 + $0x8] sm:$0xff]
    %v2391 = vld [vmem:[%s13 + $0x10] sm:$0xff]
    %v2392 = vld [vmem:[%s13 + $0x18] sm:$0xff]
    %v2393 = vld [vmem:[%s13 + $0x20] sm:$0xff]
    %v2394 = vld [vmem:[%s13 + $0x28] sm:$0xff]
    %v2395 = vld [vmem:[%s13 + $0x30] sm:$0xff]
    %v2396 = vld [vmem:[%s13 + $0x38] sm:$0xff]
    %vm2397 = vcmask 523264
    %v2399 = vsel %vm2397, %v2383, 0
    %v2402 = vsel %vm2397, %v2384, 0
    %v2405 = vsel %vm2397, %v2385, 0
    %v2408 = vsel %vm2397, %v2386, 0
    %v2411 = vsel %vm2397, %v2387, 0
    %v2414 = vsel %vm2397, %v2388, 0
    %2416 = vmatprep.subr.mxu0 0.0
    %2417 = vmatpush1.msra.mxu0 %v2389
    %2418 = vmatprep.subr.mxu0 0.0
    %2419 = vmatpush1.msra.mxu0 %v2390
    %2420 = vmatprep.subr.mxu0 0.0
    %2421 = vmatpush1.msra.mxu0 %v2391
    %2422 = vmatprep.subr.mxu0 0.0
    %2423 = vmatpush1.msra.mxu0 %v2392
    %2424 = vmatprep.subr.mxu0 0.0
    %2425 = vmatpush1.msra.mxu0 %v2393
    %2426 = vmatprep.subr.mxu0 0.0
    %2427 = vmatpush1.msra.mxu0 %v2394
    %2428 = vmatprep.subr.mxu0 0.0
    %2429 = vmatpush1.msra.mxu0 %v2395
    %2430 = vmatprep.subr.mxu0 0.0
    %2431 = vmatpush1.msra.mxu0 %v2396
    %2432 = vmatprep.subr.mxu0 0.0
    %2433 = vmatpush1.msra.mxu0 0.0
    %2434 = vmatprep.subr.mxu0 0.0
    %2435 = vmatpush1.msra.mxu0 0.0
    %2436 = vmatprep.subr.mxu0 0.0
    %2437 = vmatpush1.msra.mxu0 0.0
    %2438 = vmatprep.subr.mxu0 0.0
    %2439 = vmatpush1.msra.mxu0 0.0
    %2440 = vmatprep.subr.mxu0 0.0
    %2441 = vmatpush1.msra.mxu0 0.0
    %2442 = vmatprep.subr.mxu0 0.0
    %2443 = vmatpush1.msra.mxu0 0.0
    %2444 = vmatprep.subr.mxu0 0.0
    %2445 = vmatpush1.msra.mxu0 0.0
    %2446 = vmatprep.subr.mxu0 0.0
    %2447 = vmatpush1.msra.mxu0 0.0
    %2448 = vmatprep.subr.mxu0 0.0
    %2449 = vmatpush1.msra.mxu0 0.0
    %2450 = vmatprep.subr.mxu0 0.0
    %2451 = vmatpush1.msra.mxu0 0.0
    %2452 = vmatprep.subr.mxu0 0.0
    %2453 = vmatpush1.msra.mxu0 0.0
    %2454 = vmatprep.subr.mxu0 0.0
    %2455 = vmatpush1.msra.mxu0 0.0
    %2456 = vmatprep.subr.mxu0 0.0
    %2457 = vmatpush1.msra.mxu0 0.0
    %2458 = vmatprep.subr.mxu0 0.0
    %2459 = vmatpush1.msra.mxu0 0.0
    %2460 = vmatprep.subr.mxu0 0.0
    %2461 = vmatpush1.msra.mxu0 0.0
    %2462 = vmatprep.subr.mxu0 0.0
    %2463 = vmatpush1.msra.mxu0 0.0
    %2464 = vmatprep.subr.mxu0 0.0
    %2465 = vmatpush1.msra.mxu0 0.0
    %2466 = vmatprep.subr.mxu0 0.0
    %2467 = vmatpush1.msra.mxu0 0.0
    %2468 = vmatprep.subr.mxu0 0.0
    %2469 = vmatpush1.msra.mxu0 0.0
    %2470 = vmatprep.subr.mxu0 0.0
    %2471 = vmatpush1.msra.mxu0 0.0
    %2472 = vmatprep.subr.mxu0 0.0
    %2473 = vmatpush1.msra.mxu0 0.0
    %2474 = vmatprep.subr.mxu0 0.0
    %2475 = vmatpush1.msra.mxu0 0.0
    %2476 = vmatprep.subr.mxu0 0.0
    %2477 = vmatpush1.msra.mxu0 0.0
    %2478 = vmatprep.subr.mxu0 0.0
    %2479 = vmatpush1.msra.mxu0 0.0
    %2480 = vmatprep.mubr.f32.mxu0 0.0
    %2481 = vmatmul.mubr.f32.gmra.mrb[0].mxu0 %v2399
    %v2482 = vpop.f32.mrb[0].mxu0
    %v2483 = vadd.f32 0.0, %v2482
    %v2484 = vpop.f32.mrb[0].mxu0
    %2485 = vmatprep.mubr.f32.mxu0 0.0
    %2486 = vmatmul.mubr.f32.gmra.mrb[0].mxu0 %v2402
    %v2487 = vpop.f32.mrb[0].mxu0
    %v2488 = vadd.f32 0.0, %v2487
    %v2489 = vpop.f32.mrb[0].mxu0
    %2490 = vmatprep.mubr.f32.mxu0 0.0
    %2491 = vmatmul.mubr.f32.gmra.mrb[0].mxu0 %v2405
    %v2492 = vpop.f32.mrb[0].mxu0
    %v2493 = vadd.f32 0.0, %v2492
    %v2494 = vpop.f32.mrb[0].mxu0
    %2495 = vmatprep.mubr.f32.mxu0 0.0
    %2496 = vmatmul.mubr.f32.gmra.mrb[0].mxu0 %v2408
    %v2497 = vpop.f32.mrb[0].mxu0
    %v2498 = vadd.f32 0.0, %v2497
    %v2499 = vpop.f32.mrb[0].mxu0
    %2500 = vmatprep.mubr.f32.mxu0 0.0
    %2501 = vmatmul.mubr.f32.gmra.mrb[0].mxu0 %v2411
    %v2502 = vpop.f32.mrb[0].mxu0
    %v2503 = vadd.f32 0.0, %v2502
    %v2504 = vpop.f32.mrb[0].mxu0
    %2505 = vmatprep.mubr.f32.mxu0 0.0
    %2506 = vmatmul.mubr.f32.gmra.mrb[0].mxu0 %v2414
    %v2507 = vpop.f32.mrb[0].mxu0
    %v2508 = vadd.f32 0.0, %v2507
    %v2509 = vpop.f32.mrb[0].mxu0
    %2510 = vdwg.mxu0
    %v2511 = vadd.f32 %v2130, %v2483
    %v2512 = vadd.f32 %v2131, %v2488
    %v2513 = vadd.f32 %v2132, %v2493
    %v2514 = vadd.f32 %v2133, %v2498
    %v2515 = vadd.f32 %v2134, %v2503
    %v2516 = vadd.f32 %v2135, %v2508
    %v2517 = vld [vmem:[%s14] sm:$0x1]
    %v2519 = vlaneseq
    %v2520 = vshrl.u32 %v2519, 7
    %v2521 = vsub.s32 0, %v2520
    %v2522 = vrot.slane %v2517, %v2521
    %v2524 = vadd.f32 %v2511, %v2522
    %v2525 = vadd.f32 %v2512, %v2522
    %v2526 = vadd.f32 %v2513, %v2522
    %v2527 = vadd.f32 %v2514, %v2522
    %v2528 = vadd.f32 %v2515, %v2522
    %v2529 = vadd.f32 %v2516, %v2522
    %s2530 = scalar_lea.vmem %s5, 2
    %v2531 = vld [vmem:[%s2530] sm:$0x3]
    %v2532 = vsel %vm169, %v2524, 0.0
    %2533 = vadd.xlane.f32.xlu0 %v2532
    %v2534 = vpop.xlane.xlu0 %2533
    %v2535 = vsel %vm169, %v2525, 0.0
    %2536 = vadd.xlane.f32.xlu0 %v2535
    %v2537 = vpop.xlane.xlu0 %2536
    %v2538 = vsel %vm169, %v2526, 0.0
    %2539 = vadd.xlane.f32.xlu0 %v2538
    %v2540 = vpop.xlane.xlu0 %2539
    %v2541 = vsel %vm169, %v2527, 0.0
    %2542 = vadd.xlane.f32.xlu0 %v2541
    %v2543 = vpop.xlane.xlu0 %2542
    %v2544 = vsel %vm169, %v2528, 0.0
    %2545 = vadd.xlane.f32.xlu0 %v2544
    %v2546 = vpop.xlane.xlu0 %2545
    %v2547 = vsel %vm169, %v2529, 0.0
    %2548 = vadd.xlane.f32.xlu0 %v2547
    %v2549 = vpop.xlane.xlu0 %2548
    %v2550 = vmul.f32 %v2534, 0.03125
    %v2551 = vmul.f32 %v2537, 0.03125
    %v2552 = vmul.f32 %v2540, 0.03125
    %v2553 = vmul.f32 %v2543, 0.03125
    %v2554 = vmul.f32 %v2546, 0.03125
    %v2555 = vmul.f32 %v2549, 0.03125
    %v2556 = vsub.f32 %v2524, %v2550
    %v2557 = vsub.f32 %v2525, %v2551
    %v2558 = vsub.f32 %v2526, %v2552
    %v2559 = vsub.f32 %v2527, %v2553
    %v2560 = vsub.f32 %v2528, %v2554
    %v2561 = vsub.f32 %v2529, %v2555
    %v2562 = vmul.f32 %v2556, %v2556
    %v2563 = vmul.f32 %v2557, %v2557
    %v2564 = vmul.f32 %v2558, %v2558
    %v2565 = vmul.f32 %v2559, %v2559
    %v2566 = vmul.f32 %v2560, %v2560
    %v2567 = vmul.f32 %v2561, %v2561
    %v2568 = vsel %vm169, %v2562, 0.0
    %2569 = vadd.xlane.f32.xlu0 %v2568
    %v2570 = vpop.xlane.xlu0 %2569
    %v2571 = vsel %vm169, %v2563, 0.0
    %2572 = vadd.xlane.f32.xlu0 %v2571
    %v2573 = vpop.xlane.xlu0 %2572
    %v2574 = vsel %vm169, %v2564, 0.0
    %2575 = vadd.xlane.f32.xlu0 %v2574
    %v2576 = vpop.xlane.xlu0 %2575
    %v2577 = vsel %vm169, %v2565, 0.0
    %2578 = vadd.xlane.f32.xlu0 %v2577
    %v2579 = vpop.xlane.xlu0 %2578
    %v2580 = vsel %vm169, %v2566, 0.0
    %2581 = vadd.xlane.f32.xlu0 %v2580
    %v2582 = vpop.xlane.xlu0 %2581
    %v2583 = vsel %vm169, %v2567, 0.0
    %2584 = vadd.xlane.f32.xlu0 %v2583
    %v2585 = vpop.xlane.xlu0 %2584
    %v2586 = vmul.f32 %v2570, 0.03125
    %v2587 = vmul.f32 %v2573, 0.03125
    %v2588 = vmul.f32 %v2576, 0.03125
    %v2589 = vmul.f32 %v2579, 0.03125
    %v2590 = vmul.f32 %v2582, 0.03125
    %v2591 = vmul.f32 %v2585, 0.03125
    %v2592 = vadd.f32 %v2586, 1e-12
    %v2593 = vadd.f32 %v2587, 1e-12
    %v2594 = vadd.f32 %v2588, 1e-12
    %v2595 = vadd.f32 %v2589, 1e-12
    %v2596 = vadd.f32 %v2590, 1e-12
    %v2597 = vadd.f32 %v2591, 1e-12
    %v2598 = vrsqrt.pop %v2592
    %v2599 = vrsqrt.pop %v2593
    %v2600 = vrsqrt.pop %v2594
    %v2601 = vrsqrt.pop %v2595
    %v2602 = vrsqrt.pop %v2596
    %v2603 = vrsqrt.pop %v2597
    %v2604 = vmul.f32 %v2556, %v2598
    %v2605 = vmul.f32 %v2557, %v2599
    %v2606 = vmul.f32 %v2558, %v2600
    %v2607 = vmul.f32 %v2559, %v2601
    %v2608 = vmul.f32 %v2560, %v2602
    %v2609 = vmul.f32 %v2561, %v2603
    %v2610 = vlaneseq
    %v2611 = vshrl.u32 %v2610, 7
    %v2612 = vsub.s32 0, %v2611
    %v2613 = vrot.slane %v2531, %v2612
    %v2614 = vmul.f32 %v2604, %v2613
    %v2615 = vmul.f32 %v2605, %v2613
    %v2616 = vmul.f32 %v2606, %v2613
    %v2617 = vmul.f32 %v2607, %v2613
    %v2618 = vmul.f32 %v2608, %v2613
    %v2619 = vmul.f32 %v2609, %v2613
    %v2620 = vlaneseq
    %v2621 = vshrl.u32 %v2620, 7
    %v2622 = vsub.s32 1, %v2621
    %v2623 = vrot.slane %v2531, %v2622
    %v2624 = vadd.f32 %v2614, %v2623
    %v2625 = vadd.f32 %v2615, %v2623
    %v2626 = vadd.f32 %v2616, %v2623
    %v2627 = vadd.f32 %v2617, %v2623
    %v2628 = vadd.f32 %v2618, %v2623
    %v2629 = vadd.f32 %v2619, %v2623
    %s2630 = scalar_lea.vmem %s6, 32
    %v2631 = vld [vmem:[%s2630] sm:$0xff]
    %v2632 = vld [vmem:[%s2630 + $0x8] sm:$0xff]
    %v2633 = vld [vmem:[%s2630 + $0x10] sm:$0xff]
    %v2634 = vld [vmem:[%s2630 + $0x18] sm:$0xff]
    %s2635 = scalar_lea.vmem %s7, 1
    %v2636 = vld [vmem:[%s2635] sm:$0x1]
    %v2638 = vlaneseq
    %v2639 = vshrl.u32 %v2638, 7
    %v2640 = vsub.s32 0, %v2639
    %v2641 = vrot.slane %v2636, %v2640
    %v2644 = vsel %vm169, %v2624, 0
    %v2647 = vsel %vm169, %v2625, 0
    %v2650 = vsel %vm169, %v2626, 0
    %v2653 = vsel %vm169, %v2627, 0
    %v2656 = vsel %vm169, %v2628, 0
    %v2659 = vsel %vm169, %v2629, 0
    %2661 = vmatprep.subr.mxu0 0.0
    %2662 = vmatpush1.msra.mxu0 %v2631
    %2663 = vmatprep.subr.mxu0 0.0
    %2664 = vmatpush1.msra.mxu0 %v2632
    %2665 = vmatprep.subr.mxu0 0.0
    %2666 = vmatpush1.msra.mxu0 %v2633
    %2667 = vmatprep.subr.mxu0 0.0
    %2668 = vmatpush1.msra.mxu0 %v2634
    %2669 = vmatprep.subr.mxu0 0.0
    %2670 = vmatpush1.msra.mxu0 0.0
    %2671 = vmatprep.subr.mxu0 0.0
    %2672 = vmatpush1.msra.mxu0 0.0
    %2673 = vmatprep.subr.mxu0 0.0
    %2674 = vmatpush1.msra.mxu0 0.0
    %2675 = vmatprep.subr.mxu0 0.0
    %2676 = vmatpush1.msra.mxu0 0.0
    %2677 = vmatprep.subr.mxu0 0.0
    %2678 = vmatpush1.msra.mxu0 0.0
    %2679 = vmatprep.subr.mxu0 0.0
    %2680 = vmatpush1.msra.mxu0 0.0
    %2681 = vmatprep.subr.mxu0 0.0
    %2682 = vmatpush1.msra.mxu0 0.0
    %2683 = vmatprep.subr.mxu0 0.0
    %2684 = vmatpush1.msra.mxu0 0.0
    %2685 = vmatprep.subr.mxu0 0.0
    %2686 = vmatpush1.msra.mxu0 0.0
    %2687 = vmatprep.subr.mxu0 0.0
    %2688 = vmatpush1.msra.mxu0 0.0
    %2689 = vmatprep.subr.mxu0 0.0
    %2690 = vmatpush1.msra.mxu0 0.0
    %2691 = vmatprep.subr.mxu0 0.0
    %2692 = vmatpush1.msra.mxu0 0.0
    %2693 = vmatprep.subr.mxu0 0.0
    %2694 = vmatpush1.msra.mxu0 0.0
    %2695 = vmatprep.subr.mxu0 0.0
    %2696 = vmatpush1.msra.mxu0 0.0
    %2697 = vmatprep.subr.mxu0 0.0
    %2698 = vmatpush1.msra.mxu0 0.0
    %2699 = vmatprep.subr.mxu0 0.0
    %2700 = vmatpush1.msra.mxu0 0.0
    %2701 = vmatprep.subr.mxu0 0.0
    %2702 = vmatpush1.msra.mxu0 0.0
    %2703 = vmatprep.subr.mxu0 0.0
    %2704 = vmatpush1.msra.mxu0 0.0
    %2705 = vmatprep.subr.mxu0 0.0
    %2706 = vmatpush1.msra.mxu0 0.0
    %2707 = vmatprep.subr.mxu0 0.0
    %2708 = vmatpush1.msra.mxu0 0.0
    %2709 = vmatprep.subr.mxu0 0.0
    %2710 = vmatpush1.msra.mxu0 0.0
    %2711 = vmatprep.subr.mxu0 0.0
    %2712 = vmatpush1.msra.mxu0 0.0
    %2713 = vmatprep.subr.mxu0 0.0
    %2714 = vmatpush1.msra.mxu0 0.0
    %2715 = vmatprep.subr.mxu0 0.0
    %2716 = vmatpush1.msra.mxu0 0.0
    %2717 = vmatprep.subr.mxu0 0.0
    %2718 = vmatpush1.msra.mxu0 0.0
    %2719 = vmatprep.subr.mxu0 0.0
    %2720 = vmatpush1.msra.mxu0 0.0
    %2721 = vmatprep.subr.mxu0 0.0
    %2722 = vmatpush1.msra.mxu0 0.0
    %2723 = vmatprep.subr.mxu0 0.0
    %2724 = vmatpush1.msra.mxu0 0.0
    %2725 = vmatprep.mubr.f32.mxu0 0.0
    %2726 = vmatmul.mubr.f32.gmra.mrb[0].mxu0 %v2644
    %v2727 = vpop.f32.mrb[0].mxu0
    %v2728 = vadd.f32 %v2641, %v2727
    %v2729 = vpop.f32.mrb[0].mxu0
    %2730 = vmatprep.mubr.f32.mxu0 0.0
    %2731 = vmatmul.mubr.f32.gmra.mrb[0].mxu0 %v2647
    %v2732 = vpop.f32.mrb[0].mxu0
    %v2733 = vadd.f32 %v2641, %v2732
    %v2734 = vpop.f32.mrb[0].mxu0
    %2735 = vmatprep.mubr.f32.mxu0 0.0
    %2736 = vmatmul.mubr.f32.gmra.mrb[0].mxu0 %v2650
    %v2737 = vpop.f32.mrb[0].mxu0
    %v2738 = vadd.f32 %v2641, %v2737
    %v2739 = vpop.f32.mrb[0].mxu0
    %2740 = vmatprep.mubr.f32.mxu0 0.0
    %2741 = vmatmul.mubr.f32.gmra.mrb[0].mxu0 %v2653
    %v2742 = vpop.f32.mrb[0].mxu0
    %v2743 = vadd.f32 %v2641, %v2742
    %v2744 = vpop.f32.mrb[0].mxu0
    %2745 = vmatprep.mubr.f32.mxu0 0.0
    %2746 = vmatmul.mubr.f32.gmra.mrb[0].mxu0 %v2656
    %v2747 = vpop.f32.mrb[0].mxu0
    %v2748 = vadd.f32 %v2641, %v2747
    %v2749 = vpop.f32.mrb[0].mxu0
    %2750 = vmatprep.mubr.f32.mxu0 0.0
    %2751 = vmatmul.mubr.f32.gmra.mrb[0].mxu0 %v2659
    %v2752 = vpop.f32.mrb[0].mxu0
    %v2753 = vadd.f32 %v2641, %v2752
    %v2754 = vpop.f32.mrb[0].mxu0
    %2755 = vdwg.mxu0
    %2762 = vrot.lane.b32.xlu0 %v2728, 96
    %v2763 = vpop.permute.xlu0 %2762
    %2764 = vrot.lane.b32.xlu0 %v2733, 96
    %v2765 = vpop.permute.xlu0 %2764
    %2766 = vrot.lane.b32.xlu0 %v2738, 96
    %v2767 = vpop.permute.xlu0 %2766
    %2768 = vrot.lane.b32.xlu0 %v2743, 96
    %v2769 = vpop.permute.xlu0 %2768
    %2770 = vrot.lane.b32.xlu0 %v2748, 96
    %v2771 = vpop.permute.xlu0 %2770
    %2772 = vrot.lane.b32.xlu0 %v2753, 96
    %v2773 = vpop.permute.xlu0 %2772
    %v2774 = vsel %vm529, %v2728, 0
    %v2776 = vsel %vm529, %v2733, 0
    %v2778 = vsel %vm529, %v2738, 0
    %v2780 = vsel %vm529, %v2743, 0
    %v2782 = vsel %vm529, %v2748, 0
    %v2784 = vsel %vm529, %v2753, 0
    %v2786 = vsel %vm529, %v2763, 0
    %v2788 = vsel %vm529, %v2765, 0
    %v2790 = vsel %vm529, %v2767, 0
    %v2792 = vsel %vm529, %v2769, 0
    %v2794 = vsel %vm529, %v2771, 0
    %v2796 = vsel %vm529, %v2773, 0
    %2798 = vmatprep.subr.mxu0 0.0
    %2799 = vmatpush1.xpose.msra.mxu0 %v2786
    %2800 = vmatprep.subr.mxu0 0.0
    %2801 = vmatpush1.xpose.msra.mxu0 %v2788
    %2802 = vmatprep.subr.mxu0 0.0
    %2803 = vmatpush1.xpose.msra.mxu0 %v2790
    %2804 = vmatprep.subr.mxu0 0.0
    %2805 = vmatpush1.xpose.msra.mxu0 %v2792
    %2806 = vmatprep.subr.mxu0 0.0
    %2807 = vmatpush1.xpose.msra.mxu0 %v2794
    %2808 = vmatprep.subr.mxu0 0.0
    %2809 = vmatpush1.xpose.msra.mxu0 %v2796
    %2810 = vmatprep.subr.mxu0 0.0
    %2811 = vmatpush1.xpose.msra.mxu0 0.0
    %2812 = vmatprep.subr.mxu0 0.0
    %2813 = vmatpush1.xpose.msra.mxu0 0.0
    %2814 = vmatprep.subr.mxu0 0.0
    %2815 = vmatpush1.xpose.msra.mxu0 0.0
    %2816 = vmatprep.subr.mxu0 0.0
    %2817 = vmatpush1.xpose.msra.mxu0 0.0
    %2818 = vmatprep.subr.mxu0 0.0
    %2819 = vmatpush1.xpose.msra.mxu0 0.0
    %2820 = vmatprep.subr.mxu0 0.0
    %2821 = vmatpush1.xpose.msra.mxu0 0.0
    %2822 = vmatprep.subr.mxu0 0.0
    %2823 = vmatpush1.xpose.msra.mxu0 0.0
    %2824 = vmatprep.subr.mxu0 0.0
    %2825 = vmatpush1.xpose.msra.mxu0 0.0
    %2826 = vmatprep.subr.mxu0 0.0
    %2827 = vmatpush1.xpose.msra.mxu0 0.0
    %2828 = vmatprep.subr.mxu0 0.0
    %2829 = vmatpush1.xpose.msra.mxu0 0.0
    %2830 = vmatprep.subr.mxu0 0.0
    %2831 = vmatpush1.xpose.msra.mxu0 0.0
    %2832 = vmatprep.subr.mxu0 0.0
    %2833 = vmatpush1.xpose.msra.mxu0 0.0
    %2834 = vmatprep.subr.mxu0 0.0
    %2835 = vmatpush1.xpose.msra.mxu0 0.0
    %2836 = vmatprep.subr.mxu0 0.0
    %2837 = vmatpush1.xpose.msra.mxu0 0.0
    %2838 = vmatprep.subr.mxu0 0.0
    %2839 = vmatpush1.xpose.msra.mxu0 0.0
    %2840 = vmatprep.subr.mxu0 0.0
    %2841 = vmatpush1.xpose.msra.mxu0 0.0
    %2842 = vmatprep.subr.mxu0 0.0
    %2843 = vmatpush1.xpose.msra.mxu0 0.0
    %2844 = vmatprep.subr.mxu0 0.0
    %2845 = vmatpush1.xpose.msra.mxu0 0.0
    %2846 = vmatprep.subr.mxu0 0.0
    %2847 = vmatpush1.xpose.msra.mxu0 0.0
    %2848 = vmatprep.subr.mxu0 0.0
    %2849 = vmatpush1.xpose.msra.mxu0 0.0
    %2850 = vmatprep.subr.mxu0 0.0
    %2851 = vmatpush1.xpose.msra.mxu0 0.0
    %2852 = vmatprep.subr.mxu0 0.0
    %2853 = vmatpush1.xpose.msra.mxu0 0.0
    %2854 = vmatprep.subr.mxu0 0.0
    %2855 = vmatpush1.xpose.msra.mxu0 0.0
    %2856 = vmatprep.subr.mxu0 0.0
    %2857 = vmatpush1.xpose.msra.mxu0 0.0
    %2858 = vmatprep.subr.mxu0 0.0
    %2859 = vmatpush1.xpose.msra.mxu0 0.0
    %2860 = vmatprep.subr.mxu0 0.0
    %2861 = vmatpush1.xpose.msra.mxu0 0.0
    %2862 = vmatprep.mubr.f32.mxu0 0.0
    %2863 = vmatmul.mubr.f32.gmra.mrb[0].mxu0 %v2774
    %v2864 = vpop.f32.mrb[0].mxu0
    %v2865 = vadd.f32 0.0, %v2864
    %v2866 = vpop.f32.mrb[0].mxu0
    %2867 = vmatprep.mubr.f32.mxu0 0.0
    %2868 = vmatmul.mubr.f32.gmra.mrb[0].mxu0 %v2776
    %v2869 = vpop.f32.mrb[0].mxu0
    %v2870 = vadd.f32 0.0, %v2869
    %v2871 = vpop.f32.mrb[0].mxu0
    %2872 = vmatprep.mubr.f32.mxu0 0.0
    %2873 = vmatmul.mubr.f32.gmra.mrb[0].mxu0 %v2778
    %v2874 = vpop.f32.mrb[0].mxu0
    %v2875 = vadd.f32 0.0, %v2874
    %v2876 = vpop.f32.mrb[0].mxu0
    %2877 = vmatprep.mubr.f32.mxu0 0.0
    %2878 = vmatmul.mubr.f32.gmra.mrb[0].mxu0 %v2780
    %v2879 = vpop.f32.mrb[0].mxu0
    %v2880 = vadd.f32 0.0, %v2879
    %v2881 = vpop.f32.mrb[0].mxu0
    %2882 = vmatprep.mubr.f32.mxu0 0.0
    %2883 = vmatmul.mubr.f32.gmra.mrb[0].mxu0 %v2782
    %v2884 = vpop.f32.mrb[0].mxu0
    %v2885 = vadd.f32 0.0, %v2884
    %v2886 = vpop.f32.mrb[0].mxu0
    %2887 = vmatprep.mubr.f32.mxu0 0.0
    %2888 = vmatmul.mubr.f32.gmra.mrb[0].mxu0 %v2784
    %v2889 = vpop.f32.mrb[0].mxu0
    %v2890 = vadd.f32 0.0, %v2889
    %v2891 = vpop.f32.mrb[0].mxu0
    %2892 = vdwg.mxu0
    %v2893 = vmul.f32 %v2865, 0.35355338
    %v2894 = vmul.f32 %v2870, 0.35355338
    %v2895 = vmul.f32 %v2875, 0.35355338
    %v2896 = vmul.f32 %v2880, 0.35355338
    %v2897 = vmul.f32 %v2885, 0.35355338
    %v2898 = vmul.f32 %v2890, 0.35355338
    %v2899 = vadd.f32 %v2893, %v282
    %v2900 = vadd.f32 %v2894, %v283
    %v2901 = vadd.f32 %v2895, %v284
    %v2902 = vadd.f32 %v2896, %v285
    %v2903 = vadd.f32 %v2897, %v286
    %v2904 = vadd.f32 %v2898, %v287
    %v2905 = vsel %vm71, %v2899, -inf
    %2906 = vmax.xlane.f32.xlu0 %v2905
    %v2907 = vpop.xlane.xlu0 %2906
    %v2908 = vsel %vm71, %v2900, -inf
    %2909 = vmax.xlane.f32.xlu0 %v2908
    %v2910 = vpop.xlane.xlu0 %2909
    %v2911 = vsel %vm71, %v2901, -inf
    %2912 = vmax.xlane.f32.xlu0 %v2911
    %v2913 = vpop.xlane.xlu0 %2912
    %v2914 = vsel %vm71, %v2902, -inf
    %2915 = vmax.xlane.f32.xlu0 %v2914
    %v2916 = vpop.xlane.xlu0 %2915
    %v2917 = vsel %vm71, %v2903, -inf
    %2918 = vmax.xlane.f32.xlu0 %v2917
    %v2919 = vpop.xlane.xlu0 %2918
    %v2920 = vsel %vm71, %v2904, -inf
    %2921 = vmax.xlane.f32.xlu0 %v2920
    %v2922 = vpop.xlane.xlu0 %2921
    %v2923 = vsub.f32 %v2899, %v2907
    %v2924 = vsub.f32 %v2900, %v2910
    %v2925 = vsub.f32 %v2901, %v2913
    %v2926 = vsub.f32 %v2902, %v2916
    %v2927 = vsub.f32 %v2903, %v2919
    %v2928 = vsub.f32 %v2904, %v2922
    %v2929 = vmul.f32 %v2923, 1.442695
    %v2930 = vpow.pop %v2929
    %v2931 = vmul.f32 %v2924, 1.442695
    %v2932 = vpow.pop %v2931
    %v2933 = vmul.f32 %v2925, 1.442695
    %v2934 = vpow.pop %v2933
    %v2935 = vmul.f32 %v2926, 1.442695
    %v2936 = vpow.pop %v2935
    %v2937 = vmul.f32 %v2927, 1.442695
    %v2938 = vpow.pop %v2937
    %v2939 = vmul.f32 %v2928, 1.442695
    %v2940 = vpow.pop %v2939
    %v2941 = vsel %vm71, %v2930, 0.0
    %2942 = vadd.xlane.f32.xlu0 %v2941
    %v2943 = vpop.xlane.xlu0 %2942
    %v2944 = vsel %vm71, %v2932, 0.0
    %2945 = vadd.xlane.f32.xlu0 %v2944
    %v2946 = vpop.xlane.xlu0 %2945
    %v2947 = vsel %vm71, %v2934, 0.0
    %2948 = vadd.xlane.f32.xlu0 %v2947
    %v2949 = vpop.xlane.xlu0 %2948
    %v2950 = vsel %vm71, %v2936, 0.0
    %2951 = vadd.xlane.f32.xlu0 %v2950
    %v2952 = vpop.xlane.xlu0 %2951
    %v2953 = vsel %vm71, %v2938, 0.0
    %2954 = vadd.xlane.f32.xlu0 %v2953
    %v2955 = vpop.xlane.xlu0 %2954
    %v2956 = vsel %vm71, %v2940, 0.0
    %2957 = vadd.xlane.f32.xlu0 %v2956
    %v2958 = vpop.xlane.xlu0 %2957
    %v2959 = vrcp.pop %v2943
    %v2960 = vmul.f32 %v2930, %v2959
    %v2961 = vrcp.pop %v2946
    %v2962 = vmul.f32 %v2932, %v2961
    %v2963 = vrcp.pop %v2949
    %v2964 = vmul.f32 %v2934, %v2963
    %v2965 = vrcp.pop %v2952
    %v2966 = vmul.f32 %v2936, %v2965
    %v2967 = vrcp.pop %v2955
    %v2968 = vmul.f32 %v2938, %v2967
    %v2969 = vrcp.pop %v2958
    %v2970 = vmul.f32 %v2940, %v2969
    %2971 = vrot.lane.b32.xlu0 %v2728, 64
    %v2972 = vpop.permute.xlu0 %2971
    %2973 = vrot.lane.b32.xlu0 %v2733, 64
    %v2974 = vpop.permute.xlu0 %2973
    %2975 = vrot.lane.b32.xlu0 %v2738, 64
    %v2976 = vpop.permute.xlu0 %2975
    %2977 = vrot.lane.b32.xlu0 %v2743, 64
    %v2978 = vpop.permute.xlu0 %2977
    %2979 = vrot.lane.b32.xlu0 %v2748, 64
    %v2980 = vpop.permute.xlu0 %2979
    %2981 = vrot.lane.b32.xlu0 %v2753, 64
    %v2982 = vpop.permute.xlu0 %2981
    %v2990 = vsel %vm71, %v2960, 0
    %v2993 = vsel %vm71, %v2962, 0
    %v2996 = vsel %vm71, %v2964, 0
    %v2999 = vsel %vm71, %v2966, 0
    %v3002 = vsel %vm71, %v2968, 0
    %v3005 = vsel %vm71, %v2970, 0
    %3007 = vmatprep.subr.mxu0 0.0
    %3008 = vmatpush1.msra.mxu0 %v2972
    %3009 = vmatprep.subr.mxu0 0.0
    %3010 = vmatpush1.msra.mxu0 %v2974
    %3011 = vmatprep.subr.mxu0 0.0
    %3012 = vmatpush1.msra.mxu0 %v2976
    %3013 = vmatprep.subr.mxu0 0.0
    %3014 = vmatpush1.msra.mxu0 %v2978
    %3015 = vmatprep.subr.mxu0 0.0
    %3016 = vmatpush1.msra.mxu0 %v2980
    %3017 = vmatprep.subr.mxu0 0.0
    %3018 = vmatpush1.msra.mxu0 %v2982
    %3019 = vmatprep.subr.mxu0 0.0
    %3020 = vmatpush1.msra.mxu0 0.0
    %3021 = vmatprep.subr.mxu0 0.0
    %3022 = vmatpush1.msra.mxu0 0.0
    %3023 = vmatprep.subr.mxu0 0.0
    %3024 = vmatpush1.msra.mxu0 0.0
    %3025 = vmatprep.subr.mxu0 0.0
    %3026 = vmatpush1.msra.mxu0 0.0
    %3027 = vmatprep.subr.mxu0 0.0
    %3028 = vmatpush1.msra.mxu0 0.0
    %3029 = vmatprep.subr.mxu0 0.0
    %3030 = vmatpush1.msra.mxu0 0.0
    %3031 = vmatprep.subr.mxu0 0.0
    %3032 = vmatpush1.msra.mxu0 0.0
    %3033 = vmatprep.subr.mxu0 0.0
    %3034 = vmatpush1.msra.mxu0 0.0
    %3035 = vmatprep.subr.mxu0 0.0
    %3036 = vmatpush1.msra.mxu0 0.0
    %3037 = vmatprep.subr.mxu0 0.0
    %3038 = vmatpush1.msra.mxu0 0.0
    %3039 = vmatprep.subr.mxu0 0.0
    %3040 = vmatpush1.msra.mxu0 0.0
    %3041 = vmatprep.subr.mxu0 0.0
    %3042 = vmatpush1.msra.mxu0 0.0
    %3043 = vmatprep.subr.mxu0 0.0
    %3044 = vmatpush1.msra.mxu0 0.0
    %3045 = vmatprep.subr.mxu0 0.0
    %3046 = vmatpush1.msra.mxu0 0.0
    %3047 = vmatprep.subr.mxu0 0.0
    %3048 = vmatpush1.msra.mxu0 0.0
    %3049 = vmatprep.subr.mxu0 0.0
    %3050 = vmatpush1.msra.mxu0 0.0
    %3051 = vmatprep.subr.mxu0 0.0
    %3052 = vmatpush1.msra.mxu0 0.0
    %3053 = vmatprep.subr.mxu0 0.0
    %3054 = vmatpush1.msra.mxu0 0.0
    %3055 = vmatprep.subr.mxu0 0.0
    %3056 = vmatpush1.msra.mxu0 0.0
    %3057 = vmatprep.subr.mxu0 0.0
    %3058 = vmatpush1.msra.mxu0 0.0
    %3059 = vmatprep.subr.mxu0 0.0
    %3060 = vmatpush1.msra.mxu0 0.0
    %3061 = vmatprep.subr.mxu0 0.0
    %3062 = vmatpush1.msra.mxu0 0.0
    %3063 = vmatprep.subr.mxu0 0.0
    %3064 = vmatpush1.msra.mxu0 0.0
    %3065 = vmatprep.subr.mxu0 0.0
    %3066 = vmatpush1.msra.mxu0 0.0
    %3067 = vmatprep.subr.mxu0 0.0
    %3068 = vmatpush1.msra.mxu0 0.0
    %3069 = vmatprep.subr.mxu0 0.0
    %3070 = vmatpush1.msra.mxu0 0.0
    %3071 = vmatprep.mubr.f32.mxu0 0.0
    %3072 = vmatmul.mubr.f32.gmra.mrb[0].mxu0 %v2990
    %v3073 = vpop.f32.mrb[0].mxu0
    %v3074 = vadd.f32 0.0, %v3073
    %v3075 = vpop.f32.mrb[0].mxu0
    %3076 = vmatprep.mubr.f32.mxu0 0.0
    %3077 = vmatmul.mubr.f32.gmra.mrb[0].mxu0 %v2993
    %v3078 = vpop.f32.mrb[0].mxu0
    %v3079 = vadd.f32 0.0, %v3078
    %v3080 = vpop.f32.mrb[0].mxu0
    %3081 = vmatprep.mubr.f32.mxu0 0.0
    %3082 = vmatmul.mubr.f32.gmra.mrb[0].mxu0 %v2996
    %v3083 = vpop.f32.mrb[0].mxu0
    %v3084 = vadd.f32 0.0, %v3083
    %v3085 = vpop.f32.mrb[0].mxu0
    %3086 = vmatprep.mubr.f32.mxu0 0.0
    %3087 = vmatmul.mubr.f32.gmra.mrb[0].mxu0 %v2999
    %v3088 = vpop.f32.mrb[0].mxu0
    %v3089 = vadd.f32 0.0, %v3088
    %v3090 = vpop.f32.mrb[0].mxu0
    %3091 = vmatprep.mubr.f32.mxu0 0.0
    %3092 = vmatmul.mubr.f32.gmra.mrb[0].mxu0 %v3002
    %v3093 = vpop.f32.mrb[0].mxu0
    %v3094 = vadd.f32 0.0, %v3093
    %v3095 = vpop.f32.mrb[0].mxu0
    %3096 = vmatprep.mubr.f32.mxu0 0.0
    %3097 = vmatmul.mubr.f32.gmra.mrb[0].mxu0 %v3005
    %v3098 = vpop.f32.mrb[0].mxu0
    %v3099 = vadd.f32 0.0, %v3098
    %v3100 = vpop.f32.mrb[0].mxu0
    %3101 = vdwg.mxu0
    %3102 = vrot.lane.b32.xlu0 %v2728, 120
    %v3103 = vpop.permute.xlu0 %3102
    %3104 = vrot.lane.b32.xlu0 %v2733, 120
    %v3105 = vpop.permute.xlu0 %3104
    %3106 = vrot.lane.b32.xlu0 %v2738, 120
    %v3107 = vpop.permute.xlu0 %3106
    %3108 = vrot.lane.b32.xlu0 %v2743, 120
    %v3109 = vpop.permute.xlu0 %3108
    %3110 = vrot.lane.b32.xlu0 %v2748, 120
    %v3111 = vpop.permute.xlu0 %3110
    %3112 = vrot.lane.b32.xlu0 %v2753, 120
    %v3113 = vpop.permute.xlu0 %3112
    %3114 = vrot.lane.b32.xlu0 %v2728, 88
    %v3115 = vpop.permute.xlu0 %3114
    %3116 = vrot.lane.b32.xlu0 %v2733, 88
    %v3117 = vpop.permute.xlu0 %3116
    %3118 = vrot.lane.b32.xlu0 %v2738, 88
    %v3119 = vpop.permute.xlu0 %3118
    %3120 = vrot.lane.b32.xlu0 %v2743, 88
    %v3121 = vpop.permute.xlu0 %3120
    %3122 = vrot.lane.b32.xlu0 %v2748, 88
    %v3123 = vpop.permute.xlu0 %3122
    %3124 = vrot.lane.b32.xlu0 %v2753, 88
    %v3125 = vpop.permute.xlu0 %3124
    %v3126 = vsel %vm529, %v3103, 0
    %v3128 = vsel %vm529, %v3105, 0
    %v3130 = vsel %vm529, %v3107, 0
    %v3132 = vsel %vm529, %v3109, 0
    %v3134 = vsel %vm529, %v3111, 0
    %v3136 = vsel %vm529, %v3113, 0
    %v3138 = vsel %vm529, %v3115, 0
    %v3140 = vsel %vm529, %v3117, 0
    %v3142 = vsel %vm529, %v3119, 0
    %v3144 = vsel %vm529, %v3121, 0
    %v3146 = vsel %vm529, %v3123, 0
    %v3148 = vsel %vm529, %v3125, 0
    %3150 = vmatprep.subr.mxu0 0.0
    %3151 = vmatpush1.xpose.msra.mxu0 %v3138
    %3152 = vmatprep.subr.mxu0 0.0
    %3153 = vmatpush1.xpose.msra.mxu0 %v3140
    %3154 = vmatprep.subr.mxu0 0.0
    %3155 = vmatpush1.xpose.msra.mxu0 %v3142
    %3156 = vmatprep.subr.mxu0 0.0
    %3157 = vmatpush1.xpose.msra.mxu0 %v3144
    %3158 = vmatprep.subr.mxu0 0.0
    %3159 = vmatpush1.xpose.msra.mxu0 %v3146
    %3160 = vmatprep.subr.mxu0 0.0
    %3161 = vmatpush1.xpose.msra.mxu0 %v3148
    %3162 = vmatprep.subr.mxu0 0.0
    %3163 = vmatpush1.xpose.msra.mxu0 0.0
    %3164 = vmatprep.subr.mxu0 0.0
    %3165 = vmatpush1.xpose.msra.mxu0 0.0
    %3166 = vmatprep.subr.mxu0 0.0
    %3167 = vmatpush1.xpose.msra.mxu0 0.0
    %3168 = vmatprep.subr.mxu0 0.0
    %3169 = vmatpush1.xpose.msra.mxu0 0.0
    %3170 = vmatprep.subr.mxu0 0.0
    %3171 = vmatpush1.xpose.msra.mxu0 0.0
    %3172 = vmatprep.subr.mxu0 0.0
    %3173 = vmatpush1.xpose.msra.mxu0 0.0
    %3174 = vmatprep.subr.mxu0 0.0
    %3175 = vmatpush1.xpose.msra.mxu0 0.0
    %3176 = vmatprep.subr.mxu0 0.0
    %3177 = vmatpush1.xpose.msra.mxu0 0.0
    %3178 = vmatprep.subr.mxu0 0.0
    %3179 = vmatpush1.xpose.msra.mxu0 0.0
    %3180 = vmatprep.subr.mxu0 0.0
    %3181 = vmatpush1.xpose.msra.mxu0 0.0
    %3182 = vmatprep.subr.mxu0 0.0
    %3183 = vmatpush1.xpose.msra.mxu0 0.0
    %3184 = vmatprep.subr.mxu0 0.0
    %3185 = vmatpush1.xpose.msra.mxu0 0.0
    %3186 = vmatprep.subr.mxu0 0.0
    %3187 = vmatpush1.xpose.msra.mxu0 0.0
    %3188 = vmatprep.subr.mxu0 0.0
    %3189 = vmatpush1.xpose.msra.mxu0 0.0
    %3190 = vmatprep.subr.mxu0 0.0
    %3191 = vmatpush1.xpose.msra.mxu0 0.0
    %3192 = vmatprep.subr.mxu0 0.0
    %3193 = vmatpush1.xpose.msra.mxu0 0.0
    %3194 = vmatprep.subr.mxu0 0.0
    %3195 = vmatpush1.xpose.msra.mxu0 0.0
    %3196 = vmatprep.subr.mxu0 0.0
    %3197 = vmatpush1.xpose.msra.mxu0 0.0
    %3198 = vmatprep.subr.mxu0 0.0
    %3199 = vmatpush1.xpose.msra.mxu0 0.0
    %3200 = vmatprep.subr.mxu0 0.0
    %3201 = vmatpush1.xpose.msra.mxu0 0.0
    %3202 = vmatprep.subr.mxu0 0.0
    %3203 = vmatpush1.xpose.msra.mxu0 0.0
    %3204 = vmatprep.subr.mxu0 0.0
    %3205 = vmatpush1.xpose.msra.mxu0 0.0
    %3206 = vmatprep.subr.mxu0 0.0
    %3207 = vmatpush1.xpose.msra.mxu0 0.0
    %3208 = vmatprep.subr.mxu0 0.0
    %3209 = vmatpush1.xpose.msra.mxu0 0.0
    %3210 = vmatprep.subr.mxu0 0.0
    %3211 = vmatpush1.xpose.msra.mxu0 0.0
    %3212 = vmatprep.subr.mxu0 0.0
    %3213 = vmatpush1.xpose.msra.mxu0 0.0
    %3214 = vmatprep.mubr.f32.mxu0 0.0
    %3215 = vmatmul.mubr.f32.gmra.mrb[0].mxu0 %v3126
    %v3216 = vpop.f32.mrb[0].mxu0
    %v3217 = vadd.f32 0.0, %v3216
    %v3218 = vpop.f32.mrb[0].mxu0
    %3219 = vmatprep.mubr.f32.mxu0 0.0
    %3220 = vmatmul.mubr.f32.gmra.mrb[0].mxu0 %v3128
    %v3221 = vpop.f32.mrb[0].mxu0
    %v3222 = vadd.f32 0.0, %v3221
    %v3223 = vpop.f32.mrb[0].mxu0
    %3224 = vmatprep.mubr.f32.mxu0 0.0
    %3225 = vmatmul.mubr.f32.gmra.mrb[0].mxu0 %v3130
    %v3226 = vpop.f32.mrb[0].mxu0
    %v3227 = vadd.f32 0.0, %v3226
    %v3228 = vpop.f32.mrb[0].mxu0
    %3229 = vmatprep.mubr.f32.mxu0 0.0
    %3230 = vmatmul.mubr.f32.gmra.mrb[0].mxu0 %v3132
    %v3231 = vpop.f32.mrb[0].mxu0
    %v3232 = vadd.f32 0.0, %v3231
    %v3233 = vpop.f32.mrb[0].mxu0
    %3234 = vmatprep.mubr.f32.mxu0 0.0
    %3235 = vmatmul.mubr.f32.gmra.mrb[0].mxu0 %v3134
    %v3236 = vpop.f32.mrb[0].mxu0
    %v3237 = vadd.f32 0.0, %v3236
    %v3238 = vpop.f32.mrb[0].mxu0
    %3239 = vmatprep.mubr.f32.mxu0 0.0
    %3240 = vmatmul.mubr.f32.gmra.mrb[0].mxu0 %v3136
    %v3241 = vpop.f32.mrb[0].mxu0
    %v3242 = vadd.f32 0.0, %v3241
    %v3243 = vpop.f32.mrb[0].mxu0
    %3244 = vdwg.mxu0
    %v3245 = vmul.f32 %v3217, 0.35355338
    %v3246 = vmul.f32 %v3222, 0.35355338
    %v3247 = vmul.f32 %v3227, 0.35355338
    %v3248 = vmul.f32 %v3232, 0.35355338
    %v3249 = vmul.f32 %v3237, 0.35355338
    %v3250 = vmul.f32 %v3242, 0.35355338
    %v3251 = vadd.f32 %v3245, %v282
    %v3252 = vadd.f32 %v3246, %v283
    %v3253 = vadd.f32 %v3247, %v284
    %v3254 = vadd.f32 %v3248, %v285
    %v3255 = vadd.f32 %v3249, %v286
    %v3256 = vadd.f32 %v3250, %v287
    %v3257 = vsel %vm71, %v3251, -inf
    %3258 = vmax.xlane.f32.xlu0 %v3257
    %v3259 = vpop.xlane.xlu0 %3258
    %v3260 = vsel %vm71, %v3252, -inf
    %3261 = vmax.xlane.f32.xlu0 %v3260
    %v3262 = vpop.xlane.xlu0 %3261
    %v3263 = vsel %vm71, %v3253, -inf
    %3264 = vmax.xlane.f32.xlu0 %v3263
    %v3265 = vpop.xlane.xlu0 %3264
    %v3266 = vsel %vm71, %v3254, -inf
    %3267 = vmax.xlane.f32.xlu0 %v3266
    %v3268 = vpop.xlane.xlu0 %3267
    %v3269 = vsel %vm71, %v3255, -inf
    %3270 = vmax.xlane.f32.xlu0 %v3269
    %v3271 = vpop.xlane.xlu0 %3270
    %v3272 = vsel %vm71, %v3256, -inf
    %3273 = vmax.xlane.f32.xlu0 %v3272
    %v3274 = vpop.xlane.xlu0 %3273
    %v3275 = vsub.f32 %v3251, %v3259
    %v3276 = vsub.f32 %v3252, %v3262
    %v3277 = vsub.f32 %v3253, %v3265
    %v3278 = vsub.f32 %v3254, %v3268
    %v3279 = vsub.f32 %v3255, %v3271
    %v3280 = vsub.f32 %v3256, %v3274
    %v3281 = vmul.f32 %v3275, 1.442695
    %v3282 = vpow.pop %v3281
    %v3283 = vmul.f32 %v3276, 1.442695
    %v3284 = vpow.pop %v3283
    %v3285 = vmul.f32 %v3277, 1.442695
    %v3286 = vpow.pop %v3285
    %v3287 = vmul.f32 %v3278, 1.442695
    %v3288 = vpow.pop %v3287
    %v3289 = vmul.f32 %v3279, 1.442695
    %v3290 = vpow.pop %v3289
    %v3291 = vmul.f32 %v3280, 1.442695
    %v3292 = vpow.pop %v3291
    %v3293 = vsel %vm71, %v3282, 0.0
    %3294 = vadd.xlane.f32.xlu0 %v3293
    %v3295 = vpop.xlane.xlu0 %3294
    %v3296 = vsel %vm71, %v3284, 0.0
    %3297 = vadd.xlane.f32.xlu0 %v3296
    %v3298 = vpop.xlane.xlu0 %3297
    %v3299 = vsel %vm71, %v3286, 0.0
    %3300 = vadd.xlane.f32.xlu0 %v3299
    %v3301 = vpop.xlane.xlu0 %3300
    %v3302 = vsel %vm71, %v3288, 0.0
    %3303 = vadd.xlane.f32.xlu0 %v3302
    %v3304 = vpop.xlane.xlu0 %3303
    %v3305 = vsel %vm71, %v3290, 0.0
    %3306 = vadd.xlane.f32.xlu0 %v3305
    %v3307 = vpop.xlane.xlu0 %3306
    %v3308 = vsel %vm71, %v3292, 0.0
    %3309 = vadd.xlane.f32.xlu0 %v3308
    %v3310 = vpop.xlane.xlu0 %3309
    %v3311 = vrcp.pop %v3295
    %v3312 = vmul.f32 %v3282, %v3311
    %v3313 = vrcp.pop %v3298
    %v3314 = vmul.f32 %v3284, %v3313
    %v3315 = vrcp.pop %v3301
    %v3316 = vmul.f32 %v3286, %v3315
    %v3317 = vrcp.pop %v3304
    %v3318 = vmul.f32 %v3288, %v3317
    %v3319 = vrcp.pop %v3307
    %v3320 = vmul.f32 %v3290, %v3319
    %v3321 = vrcp.pop %v3310
    %v3322 = vmul.f32 %v3292, %v3321
    %3323 = vrot.lane.b32.xlu0 %v2728, 56
    %v3324 = vpop.permute.xlu0 %3323
    %3325 = vrot.lane.b32.xlu0 %v2733, 56
    %v3326 = vpop.permute.xlu0 %3325
    %3327 = vrot.lane.b32.xlu0 %v2738, 56
    %v3328 = vpop.permute.xlu0 %3327
    %3329 = vrot.lane.b32.xlu0 %v2743, 56
    %v3330 = vpop.permute.xlu0 %3329
    %3331 = vrot.lane.b32.xlu0 %v2748, 56
    %v3332 = vpop.permute.xlu0 %3331
    %3333 = vrot.lane.b32.xlu0 %v2753, 56
    %v3334 = vpop.permute.xlu0 %3333
    %v3342 = vsel %vm71, %v3312, 0
    %v3345 = vsel %vm71, %v3314, 0
    %v3348 = vsel %vm71, %v3316, 0
    %v3351 = vsel %vm71, %v3318, 0
    %v3354 = vsel %vm71, %v3320, 0
    %v3357 = vsel %vm71, %v3322, 0
    %3359 = vmatprep.subr.mxu0 0.0
    %3360 = vmatpush1.msra.mxu0 %v3324
    %3361 = vmatprep.subr.mxu0 0.0
    %3362 = vmatpush1.msra.mxu0 %v3326
    %3363 = vmatprep.subr.mxu0 0.0
    %3364 = vmatpush1.msra.mxu0 %v3328
    %3365 = vmatprep.subr.mxu0 0.0
    %3366 = vmatpush1.msra.mxu0 %v3330
    %3367 = vmatprep.subr.mxu0 0.0
    %3368 = vmatpush1.msra.mxu0 %v3332
    %3369 = vmatprep.subr.mxu0 0.0
    %3370 = vmatpush1.msra.mxu0 %v3334
    %3371 = vmatprep.subr.mxu0 0.0
    %3372 = vmatpush1.msra.mxu0 0.0
    %3373 = vmatprep.subr.mxu0 0.0
    %3374 = vmatpush1.msra.mxu0 0.0
    %3375 = vmatprep.subr.mxu0 0.0
    %3376 = vmatpush1.msra.mxu0 0.0
    %3377 = vmatprep.subr.mxu0 0.0
    %3378 = vmatpush1.msra.mxu0 0.0
    %3379 = vmatprep.subr.mxu0 0.0
    %3380 = vmatpush1.msra.mxu0 0.0
    %3381 = vmatprep.subr.mxu0 0.0
    %3382 = vmatpush1.msra.mxu0 0.0
    %3383 = vmatprep.subr.mxu0 0.0
    %3384 = vmatpush1.msra.mxu0 0.0
    %3385 = vmatprep.subr.mxu0 0.0
    %3386 = vmatpush1.msra.mxu0 0.0
    %3387 = vmatprep.subr.mxu0 0.0
    %3388 = vmatpush1.msra.mxu0 0.0
    %3389 = vmatprep.subr.mxu0 0.0
    %3390 = vmatpush1.msra.mxu0 0.0
    %3391 = vmatprep.subr.mxu0 0.0
    %3392 = vmatpush1.msra.mxu0 0.0
    %3393 = vmatprep.subr.mxu0 0.0
    %3394 = vmatpush1.msra.mxu0 0.0
    %3395 = vmatprep.subr.mxu0 0.0
    %3396 = vmatpush1.msra.mxu0 0.0
    %3397 = vmatprep.subr.mxu0 0.0
    %3398 = vmatpush1.msra.mxu0 0.0
    %3399 = vmatprep.subr.mxu0 0.0
    %3400 = vmatpush1.msra.mxu0 0.0
    %3401 = vmatprep.subr.mxu0 0.0
    %3402 = vmatpush1.msra.mxu0 0.0
    %3403 = vmatprep.subr.mxu0 0.0
    %3404 = vmatpush1.msra.mxu0 0.0
    %3405 = vmatprep.subr.mxu0 0.0
    %3406 = vmatpush1.msra.mxu0 0.0
    %3407 = vmatprep.subr.mxu0 0.0
    %3408 = vmatpush1.msra.mxu0 0.0
    %3409 = vmatprep.subr.mxu0 0.0
    %3410 = vmatpush1.msra.mxu0 0.0
    %3411 = vmatprep.subr.mxu0 0.0
    %3412 = vmatpush1.msra.mxu0 0.0
    %3413 = vmatprep.subr.mxu0 0.0
    %3414 = vmatpush1.msra.mxu0 0.0
    %3415 = vmatprep.subr.mxu0 0.0
    %3416 = vmatpush1.msra.mxu0 0.0
    %3417 = vmatprep.subr.mxu0 0.0
    %3418 = vmatpush1.msra.mxu0 0.0
    %3419 = vmatprep.subr.mxu0 0.0
    %3420 = vmatpush1.msra.mxu0 0.0
    %3421 = vmatprep.subr.mxu0 0.0
    %3422 = vmatpush1.msra.mxu0 0.0
    %3423 = vmatprep.mubr.f32.mxu0 0.0
    %3424 = vmatmul.mubr.f32.gmra.mrb[0].mxu0 %v3342
    %v3425 = vpop.f32.mrb[0].mxu0
    %v3426 = vadd.f32 0.0, %v3425
    %v3427 = vpop.f32.mrb[0].mxu0
    %3428 = vmatprep.mubr.f32.mxu0 0.0
    %3429 = vmatmul.mubr.f32.gmra.mrb[0].mxu0 %v3345
    %v3430 = vpop.f32.mrb[0].mxu0
    %v3431 = vadd.f32 0.0, %v3430
    %v3432 = vpop.f32.mrb[0].mxu0
    %3433 = vmatprep.mubr.f32.mxu0 0.0
    %3434 = vmatmul.mubr.f32.gmra.mrb[0].mxu0 %v3348
    %v3435 = vpop.f32.mrb[0].mxu0
    %v3436 = vadd.f32 0.0, %v3435
    %v3437 = vpop.f32.mrb[0].mxu0
    %3438 = vmatprep.mubr.f32.mxu0 0.0
    %3439 = vmatmul.mubr.f32.gmra.mrb[0].mxu0 %v3351
    %v3440 = vpop.f32.mrb[0].mxu0
    %v3441 = vadd.f32 0.0, %v3440
    %v3442 = vpop.f32.mrb[0].mxu0
    %3443 = vmatprep.mubr.f32.mxu0 0.0
    %3444 = vmatmul.mubr.f32.gmra.mrb[0].mxu0 %v3354
    %v3445 = vpop.f32.mrb[0].mxu0
    %v3446 = vadd.f32 0.0, %v3445
    %v3447 = vpop.f32.mrb[0].mxu0
    %3448 = vmatprep.mubr.f32.mxu0 0.0
    %3449 = vmatmul.mubr.f32.gmra.mrb[0].mxu0 %v3357
    %v3450 = vpop.f32.mrb[0].mxu0
    %v3451 = vadd.f32 0.0, %v3450
    %v3452 = vpop.f32.mrb[0].mxu0
    %3453 = vdwg.mxu0
    %3454 = vrot.lane.b32.xlu0 %v2728, 112
    %v3455 = vpop.permute.xlu0 %3454
    %3456 = vrot.lane.b32.xlu0 %v2733, 112
    %v3457 = vpop.permute.xlu0 %3456
    %3458 = vrot.lane.b32.xlu0 %v2738, 112
    %v3459 = vpop.permute.xlu0 %3458
    %3460 = vrot.lane.b32.xlu0 %v2743, 112
    %v3461 = vpop.permute.xlu0 %3460
    %3462 = vrot.lane.b32.xlu0 %v2748, 112
    %v3463 = vpop.permute.xlu0 %3462
    %3464 = vrot.lane.b32.xlu0 %v2753, 112
    %v3465 = vpop.permute.xlu0 %3464
    %3466 = vrot.lane.b32.xlu0 %v2728, 80
    %v3467 = vpop.permute.xlu0 %3466
    %3468 = vrot.lane.b32.xlu0 %v2733, 80
    %v3469 = vpop.permute.xlu0 %3468
    %3470 = vrot.lane.b32.xlu0 %v2738, 80
    %v3471 = vpop.permute.xlu0 %3470
    %3472 = vrot.lane.b32.xlu0 %v2743, 80
    %v3473 = vpop.permute.xlu0 %3472
    %3474 = vrot.lane.b32.xlu0 %v2748, 80
    %v3475 = vpop.permute.xlu0 %3474
    %3476 = vrot.lane.b32.xlu0 %v2753, 80
    %v3477 = vpop.permute.xlu0 %3476
    %v3478 = vsel %vm529, %v3455, 0
    %v3480 = vsel %vm529, %v3457, 0
    %v3482 = vsel %vm529, %v3459, 0
    %v3484 = vsel %vm529, %v3461, 0
    %v3486 = vsel %vm529, %v3463, 0
    %v3488 = vsel %vm529, %v3465, 0
    %v3490 = vsel %vm529, %v3467, 0
    %v3492 = vsel %vm529, %v3469, 0
    %v3494 = vsel %vm529, %v3471, 0
    %v3496 = vsel %vm529, %v3473, 0
    %v3498 = vsel %vm529, %v3475, 0
    %v3500 = vsel %vm529, %v3477, 0
    %3502 = vmatprep.subr.mxu0 0.0
    %3503 = vmatpush1.xpose.msra.mxu0 %v3490
    %3504 = vmatprep.subr.mxu0 0.0
    %3505 = vmatpush1.xpose.msra.mxu0 %v3492
    %3506 = vmatprep.subr.mxu0 0.0
    %3507 = vmatpush1.xpose.msra.mxu0 %v3494
    %3508 = vmatprep.subr.mxu0 0.0
    %3509 = vmatpush1.xpose.msra.mxu0 %v3496
    %3510 = vmatprep.subr.mxu0 0.0
    %3511 = vmatpush1.xpose.msra.mxu0 %v3498
    %3512 = vmatprep.subr.mxu0 0.0
    %3513 = vmatpush1.xpose.msra.mxu0 %v3500
    %3514 = vmatprep.subr.mxu0 0.0
    %3515 = vmatpush1.xpose.msra.mxu0 0.0
    %3516 = vmatprep.subr.mxu0 0.0
    %3517 = vmatpush1.xpose.msra.mxu0 0.0
    %3518 = vmatprep.subr.mxu0 0.0
    %3519 = vmatpush1.xpose.msra.mxu0 0.0
    %3520 = vmatprep.subr.mxu0 0.0
    %3521 = vmatpush1.xpose.msra.mxu0 0.0
    %3522 = vmatprep.subr.mxu0 0.0
    %3523 = vmatpush1.xpose.msra.mxu0 0.0
    %3524 = vmatprep.subr.mxu0 0.0
    %3525 = vmatpush1.xpose.msra.mxu0 0.0
    %3526 = vmatprep.subr.mxu0 0.0
    %3527 = vmatpush1.xpose.msra.mxu0 0.0
    %3528 = vmatprep.subr.mxu0 0.0
    %3529 = vmatpush1.xpose.msra.mxu0 0.0
    %3530 = vmatprep.subr.mxu0 0.0
    %3531 = vmatpush1.xpose.msra.mxu0 0.0
    %3532 = vmatprep.subr.mxu0 0.0
    %3533 = vmatpush1.xpose.msra.mxu0 0.0
    %3534 = vmatprep.subr.mxu0 0.0
    %3535 = vmatpush1.xpose.msra.mxu0 0.0
    %3536 = vmatprep.subr.mxu0 0.0
    %3537 = vmatpush1.xpose.msra.mxu0 0.0
    %3538 = vmatprep.subr.mxu0 0.0
    %3539 = vmatpush1.xpose.msra.mxu0 0.0
    %3540 = vmatprep.subr.mxu0 0.0
    %3541 = vmatpush1.xpose.msra.mxu0 0.0
    %3542 = vmatprep.subr.mxu0 0.0
    %3543 = vmatpush1.xpose.msra.mxu0 0.0
    %3544 = vmatprep.subr.mxu0 0.0
    %3545 = vmatpush1.xpose.msra.mxu0 0.0
    %3546 = vmatprep.subr.mxu0 0.0
    %3547 = vmatpush1.xpose.msra.mxu0 0.0
    %3548 = vmatprep.subr.mxu0 0.0
    %3549 = vmatpush1.xpose.msra.mxu0 0.0
    %3550 = vmatprep.subr.mxu0 0.0
    %3551 = vmatpush1.xpose.msra.mxu0 0.0
    %3552 = vmatprep.subr.mxu0 0.0
    %3553 = vmatpush1.xpose.msra.mxu0 0.0
    %3554 = vmatprep.subr.mxu0 0.0
    %3555 = vmatpush1.xpose.msra.mxu0 0.0
    %3556 = vmatprep.subr.mxu0 0.0
    %3557 = vmatpush1.xpose.msra.mxu0 0.0
    %3558 = vmatprep.subr.mxu0 0.0
    %3559 = vmatpush1.xpose.msra.mxu0 0.0
    %3560 = vmatprep.subr.mxu0 0.0
    %3561 = vmatpush1.xpose.msra.mxu0 0.0
    %3562 = vmatprep.subr.mxu0 0.0
    %3563 = vmatpush1.xpose.msra.mxu0 0.0
    %3564 = vmatprep.subr.mxu0 0.0
    %3565 = vmatpush1.xpose.msra.mxu0 0.0
    %3566 = vmatprep.mubr.f32.mxu0 0.0
    %3567 = vmatmul.mubr.f32.gmra.mrb[0].mxu0 %v3478
    %v3568 = vpop.f32.mrb[0].mxu0
    %v3569 = vadd.f32 0.0, %v3568
    %v3570 = vpop.f32.mrb[0].mxu0
    %3571 = vmatprep.mubr.f32.mxu0 0.0
    %3572 = vmatmul.mubr.f32.gmra.mrb[0].mxu0 %v3480
    %v3573 = vpop.f32.mrb[0].mxu0
    %v3574 = vadd.f32 0.0, %v3573
    %v3575 = vpop.f32.mrb[0].mxu0
    %3576 = vmatprep.mubr.f32.mxu0 0.0
    %3577 = vmatmul.mubr.f32.gmra.mrb[0].mxu0 %v3482
    %v3578 = vpop.f32.mrb[0].mxu0
    %v3579 = vadd.f32 0.0, %v3578
    %v3580 = vpop.f32.mrb[0].mxu0
    %3581 = vmatprep.mubr.f32.mxu0 0.0
    %3582 = vmatmul.mubr.f32.gmra.mrb[0].mxu0 %v3484
    %v3583 = vpop.f32.mrb[0].mxu0
    %v3584 = vadd.f32 0.0, %v3583
    %v3585 = vpop.f32.mrb[0].mxu0
    %3586 = vmatprep.mubr.f32.mxu0 0.0
    %3587 = vmatmul.mubr.f32.gmra.mrb[0].mxu0 %v3486
    %v3588 = vpop.f32.mrb[0].mxu0
    %v3589 = vadd.f32 0.0, %v3588
    %v3590 = vpop.f32.mrb[0].mxu0
    %3591 = vmatprep.mubr.f32.mxu0 0.0
    %3592 = vmatmul.mubr.f32.gmra.mrb[0].mxu0 %v3488
    %v3593 = vpop.f32.mrb[0].mxu0
    %v3594 = vadd.f32 0.0, %v3593
    %v3595 = vpop.f32.mrb[0].mxu0
    %3596 = vdwg.mxu0
    %v3597 = vmul.f32 %v3569, 0.35355338
    %v3598 = vmul.f32 %v3574, 0.35355338
    %v3599 = vmul.f32 %v3579, 0.35355338
    %v3600 = vmul.f32 %v3584, 0.35355338
    %v3601 = vmul.f32 %v3589, 0.35355338
    %v3602 = vmul.f32 %v3594, 0.35355338
    %v3603 = vadd.f32 %v3597, %v282
    %v3604 = vadd.f32 %v3598, %v283
    %v3605 = vadd.f32 %v3599, %v284
    %v3606 = vadd.f32 %v3600, %v285
    %v3607 = vadd.f32 %v3601, %v286
    %v3608 = vadd.f32 %v3602, %v287
    %v3609 = vsel %vm71, %v3603, -inf
    %3610 = vmax.xlane.f32.xlu0 %v3609
    %v3611 = vpop.xlane.xlu0 %3610
    %v3612 = vsel %vm71, %v3604, -inf
    %3613 = vmax.xlane.f32.xlu0 %v3612
    %v3614 = vpop.xlane.xlu0 %3613
    %v3615 = vsel %vm71, %v3605, -inf
    %3616 = vmax.xlane.f32.xlu0 %v3615
    %v3617 = vpop.xlane.xlu0 %3616
    %v3618 = vsel %vm71, %v3606, -inf
    %3619 = vmax.xlane.f32.xlu0 %v3618
    %v3620 = vpop.xlane.xlu0 %3619
    %v3621 = vsel %vm71, %v3607, -inf
    %3622 = vmax.xlane.f32.xlu0 %v3621
    %v3623 = vpop.xlane.xlu0 %3622
    %v3624 = vsel %vm71, %v3608, -inf
    %3625 = vmax.xlane.f32.xlu0 %v3624
    %v3626 = vpop.xlane.xlu0 %3625
    %v3627 = vsub.f32 %v3603, %v3611
    %v3628 = vsub.f32 %v3604, %v3614
    %v3629 = vsub.f32 %v3605, %v3617
    %v3630 = vsub.f32 %v3606, %v3620
    %v3631 = vsub.f32 %v3607, %v3623
    %v3632 = vsub.f32 %v3608, %v3626
    %v3633 = vmul.f32 %v3627, 1.442695
    %v3634 = vpow.pop %v3633
    %v3635 = vmul.f32 %v3628, 1.442695
    %v3636 = vpow.pop %v3635
    %v3637 = vmul.f32 %v3629, 1.442695
    %v3638 = vpow.pop %v3637
    %v3639 = vmul.f32 %v3630, 1.442695
    %v3640 = vpow.pop %v3639
    %v3641 = vmul.f32 %v3631, 1.442695
    %v3642 = vpow.pop %v3641
    %v3643 = vmul.f32 %v3632, 1.442695
    %v3644 = vpow.pop %v3643
    %v3645 = vsel %vm71, %v3634, 0.0
    %3646 = vadd.xlane.f32.xlu0 %v3645
    %v3647 = vpop.xlane.xlu0 %3646
    %v3648 = vsel %vm71, %v3636, 0.0
    %3649 = vadd.xlane.f32.xlu0 %v3648
    %v3650 = vpop.xlane.xlu0 %3649
    %v3651 = vsel %vm71, %v3638, 0.0
    %3652 = vadd.xlane.f32.xlu0 %v3651
    %v3653 = vpop.xlane.xlu0 %3652
    %v3654 = vsel %vm71, %v3640, 0.0
    %3655 = vadd.xlane.f32.xlu0 %v3654
    %v3656 = vpop.xlane.xlu0 %3655
    %v3657 = vsel %vm71, %v3642, 0.0
    %3658 = vadd.xlane.f32.xlu0 %v3657
    %v3659 = vpop.xlane.xlu0 %3658
    %v3660 = vsel %vm71, %v3644, 0.0
    %3661 = vadd.xlane.f32.xlu0 %v3660
    %v3662 = vpop.xlane.xlu0 %3661
    %v3663 = vrcp.pop %v3647
    %v3664 = vmul.f32 %v3634, %v3663
    %v3665 = vrcp.pop %v3650
    %v3666 = vmul.f32 %v3636, %v3665
    %v3667 = vrcp.pop %v3653
    %v3668 = vmul.f32 %v3638, %v3667
    %v3669 = vrcp.pop %v3656
    %v3670 = vmul.f32 %v3640, %v3669
    %v3671 = vrcp.pop %v3659
    %v3672 = vmul.f32 %v3642, %v3671
    %v3673 = vrcp.pop %v3662
    %v3674 = vmul.f32 %v3644, %v3673
    %3675 = vrot.lane.b32.xlu0 %v2728, 48
    %v3676 = vpop.permute.xlu0 %3675
    %3677 = vrot.lane.b32.xlu0 %v2733, 48
    %v3678 = vpop.permute.xlu0 %3677
    %3679 = vrot.lane.b32.xlu0 %v2738, 48
    %v3680 = vpop.permute.xlu0 %3679
    %3681 = vrot.lane.b32.xlu0 %v2743, 48
    %v3682 = vpop.permute.xlu0 %3681
    %3683 = vrot.lane.b32.xlu0 %v2748, 48
    %v3684 = vpop.permute.xlu0 %3683
    %3685 = vrot.lane.b32.xlu0 %v2753, 48
    %v3686 = vpop.permute.xlu0 %3685
    %v3694 = vsel %vm71, %v3664, 0
    %v3697 = vsel %vm71, %v3666, 0
    %v3700 = vsel %vm71, %v3668, 0
    %v3703 = vsel %vm71, %v3670, 0
    %v3706 = vsel %vm71, %v3672, 0
    %v3709 = vsel %vm71, %v3674, 0
    %3711 = vmatprep.subr.mxu0 0.0
    %3712 = vmatpush1.msra.mxu0 %v3676
    %3713 = vmatprep.subr.mxu0 0.0
    %3714 = vmatpush1.msra.mxu0 %v3678
    %3715 = vmatprep.subr.mxu0 0.0
    %3716 = vmatpush1.msra.mxu0 %v3680
    %3717 = vmatprep.subr.mxu0 0.0
    %3718 = vmatpush1.msra.mxu0 %v3682
    %3719 = vmatprep.subr.mxu0 0.0
    %3720 = vmatpush1.msra.mxu0 %v3684
    %3721 = vmatprep.subr.mxu0 0.0
    %3722 = vmatpush1.msra.mxu0 %v3686
    %3723 = vmatprep.subr.mxu0 0.0
    %3724 = vmatpush1.msra.mxu0 0.0
    %3725 = vmatprep.subr.mxu0 0.0
    %3726 = vmatpush1.msra.mxu0 0.0
    %3727 = vmatprep.subr.mxu0 0.0
    %3728 = vmatpush1.msra.mxu0 0.0
    %3729 = vmatprep.subr.mxu0 0.0
    %3730 = vmatpush1.msra.mxu0 0.0
    %3731 = vmatprep.subr.mxu0 0.0
    %3732 = vmatpush1.msra.mxu0 0.0
    %3733 = vmatprep.subr.mxu0 0.0
    %3734 = vmatpush1.msra.mxu0 0.0
    %3735 = vmatprep.subr.mxu0 0.0
    %3736 = vmatpush1.msra.mxu0 0.0
    %3737 = vmatprep.subr.mxu0 0.0
    %3738 = vmatpush1.msra.mxu0 0.0
    %3739 = vmatprep.subr.mxu0 0.0
    %3740 = vmatpush1.msra.mxu0 0.0
    %3741 = vmatprep.subr.mxu0 0.0
    %3742 = vmatpush1.msra.mxu0 0.0
    %3743 = vmatprep.subr.mxu0 0.0
    %3744 = vmatpush1.msra.mxu0 0.0
    %3745 = vmatprep.subr.mxu0 0.0
    %3746 = vmatpush1.msra.mxu0 0.0
    %3747 = vmatprep.subr.mxu0 0.0
    %3748 = vmatpush1.msra.mxu0 0.0
    %3749 = vmatprep.subr.mxu0 0.0
    %3750 = vmatpush1.msra.mxu0 0.0
    %3751 = vmatprep.subr.mxu0 0.0
    %3752 = vmatpush1.msra.mxu0 0.0
    %3753 = vmatprep.subr.mxu0 0.0
    %3754 = vmatpush1.msra.mxu0 0.0
    %3755 = vmatprep.subr.mxu0 0.0
    %3756 = vmatpush1.msra.mxu0 0.0
    %3757 = vmatprep.subr.mxu0 0.0
    %3758 = vmatpush1.msra.mxu0 0.0
    %3759 = vmatprep.subr.mxu0 0.0
    %3760 = vmatpush1.msra.mxu0 0.0
    %3761 = vmatprep.subr.mxu0 0.0
    %3762 = vmatpush1.msra.mxu0 0.0
    %3763 = vmatprep.subr.mxu0 0.0
    %3764 = vmatpush1.msra.mxu0 0.0
    %3765 = vmatprep.subr.mxu0 0.0
    %3766 = vmatpush1.msra.mxu0 0.0
    %3767 = vmatprep.subr.mxu0 0.0
    %3768 = vmatpush1.msra.mxu0 0.0
    %3769 = vmatprep.subr.mxu0 0.0
    %3770 = vmatpush1.msra.mxu0 0.0
    %3771 = vmatprep.subr.mxu0 0.0
    %3772 = vmatpush1.msra.mxu0 0.0
    %3773 = vmatprep.subr.mxu0 0.0
    %3774 = vmatpush1.msra.mxu0 0.0
    %3775 = vmatprep.mubr.f32.mxu0 0.0
    %3776 = vmatmul.mubr.f32.gmra.mrb[0].mxu0 %v3694
    %v3777 = vpop.f32.mrb[0].mxu0
    %v3778 = vadd.f32 0.0, %v3777
    %v3779 = vpop.f32.mrb[0].mxu0
    %3780 = vmatprep.mubr.f32.mxu0 0.0
    %3781 = vmatmul.mubr.f32.gmra.mrb[0].mxu0 %v3697
    %v3782 = vpop.f32.mrb[0].mxu0
    %v3783 = vadd.f32 0.0, %v3782
    %v3784 = vpop.f32.mrb[0].mxu0
    %3785 = vmatprep.mubr.f32.mxu0 0.0
    %3786 = vmatmul.mubr.f32.gmra.mrb[0].mxu0 %v3700
    %v3787 = vpop.f32.mrb[0].mxu0
    %v3788 = vadd.f32 0.0, %v3787
    %v3789 = vpop.f32.mrb[0].mxu0
    %3790 = vmatprep.mubr.f32.mxu0 0.0
    %3791 = vmatmul.mubr.f32.gmra.mrb[0].mxu0 %v3703
    %v3792 = vpop.f32.mrb[0].mxu0
    %v3793 = vadd.f32 0.0, %v3792
    %v3794 = vpop.f32.mrb[0].mxu0
    %3795 = vmatprep.mubr.f32.mxu0 0.0
    %3796 = vmatmul.mubr.f32.gmra.mrb[0].mxu0 %v3706
    %v3797 = vpop.f32.mrb[0].mxu0
    %v3798 = vadd.f32 0.0, %v3797
    %v3799 = vpop.f32.mrb[0].mxu0
    %3800 = vmatprep.mubr.f32.mxu0 0.0
    %3801 = vmatmul.mubr.f32.gmra.mrb[0].mxu0 %v3709
    %v3802 = vpop.f32.mrb[0].mxu0
    %v3803 = vadd.f32 0.0, %v3802
    %v3804 = vpop.f32.mrb[0].mxu0
    %3805 = vdwg.mxu0
    %3806 = vrot.lane.b32.xlu0 %v2728, 104
    %v3807 = vpop.permute.xlu0 %3806
    %3808 = vrot.lane.b32.xlu0 %v2733, 104
    %v3809 = vpop.permute.xlu0 %3808
    %3810 = vrot.lane.b32.xlu0 %v2738, 104
    %v3811 = vpop.permute.xlu0 %3810
    %3812 = vrot.lane.b32.xlu0 %v2743, 104
    %v3813 = vpop.permute.xlu0 %3812
    %3814 = vrot.lane.b32.xlu0 %v2748, 104
    %v3815 = vpop.permute.xlu0 %3814
    %3816 = vrot.lane.b32.xlu0 %v2753, 104
    %v3817 = vpop.permute.xlu0 %3816
    %3818 = vrot.lane.b32.xlu0 %v2728, 72
    %v3819 = vpop.permute.xlu0 %3818
    %3820 = vrot.lane.b32.xlu0 %v2733, 72
    %v3821 = vpop.permute.xlu0 %3820
    %3822 = vrot.lane.b32.xlu0 %v2738, 72
    %v3823 = vpop.permute.xlu0 %3822
    %3824 = vrot.lane.b32.xlu0 %v2743, 72
    %v3825 = vpop.permute.xlu0 %3824
    %3826 = vrot.lane.b32.xlu0 %v2748, 72
    %v3827 = vpop.permute.xlu0 %3826
    %3828 = vrot.lane.b32.xlu0 %v2753, 72
    %v3829 = vpop.permute.xlu0 %3828
    %v3830 = vsel %vm529, %v3807, 0
    %v3832 = vsel %vm529, %v3809, 0
    %v3834 = vsel %vm529, %v3811, 0
    %v3836 = vsel %vm529, %v3813, 0
    %v3838 = vsel %vm529, %v3815, 0
    %v3840 = vsel %vm529, %v3817, 0
    %v3842 = vsel %vm529, %v3819, 0
    %v3844 = vsel %vm529, %v3821, 0
    %v3846 = vsel %vm529, %v3823, 0
    %v3848 = vsel %vm529, %v3825, 0
    %v3850 = vsel %vm529, %v3827, 0
    %v3852 = vsel %vm529, %v3829, 0
    %3854 = vmatprep.subr.mxu0 0.0
    %3855 = vmatpush1.xpose.msra.mxu0 %v3842
    %3856 = vmatprep.subr.mxu0 0.0
    %3857 = vmatpush1.xpose.msra.mxu0 %v3844
    %3858 = vmatprep.subr.mxu0 0.0
    %3859 = vmatpush1.xpose.msra.mxu0 %v3846
    %3860 = vmatprep.subr.mxu0 0.0
    %3861 = vmatpush1.xpose.msra.mxu0 %v3848
    %3862 = vmatprep.subr.mxu0 0.0
    %3863 = vmatpush1.xpose.msra.mxu0 %v3850
    %3864 = vmatprep.subr.mxu0 0.0
    %3865 = vmatpush1.xpose.msra.mxu0 %v3852
    %3866 = vmatprep.subr.mxu0 0.0
    %3867 = vmatpush1.xpose.msra.mxu0 0.0
    %3868 = vmatprep.subr.mxu0 0.0
    %3869 = vmatpush1.xpose.msra.mxu0 0.0
    %3870 = vmatprep.subr.mxu0 0.0
    %3871 = vmatpush1.xpose.msra.mxu0 0.0
    %3872 = vmatprep.subr.mxu0 0.0
    %3873 = vmatpush1.xpose.msra.mxu0 0.0
    %3874 = vmatprep.subr.mxu0 0.0
    %3875 = vmatpush1.xpose.msra.mxu0 0.0
    %3876 = vmatprep.subr.mxu0 0.0
    %3877 = vmatpush1.xpose.msra.mxu0 0.0
    %3878 = vmatprep.subr.mxu0 0.0
    %3879 = vmatpush1.xpose.msra.mxu0 0.0
    %3880 = vmatprep.subr.mxu0 0.0
    %3881 = vmatpush1.xpose.msra.mxu0 0.0
    %3882 = vmatprep.subr.mxu0 0.0
    %3883 = vmatpush1.xpose.msra.mxu0 0.0
    %3884 = vmatprep.subr.mxu0 0.0
    %3885 = vmatpush1.xpose.msra.mxu0 0.0
    %3886 = vmatprep.subr.mxu0 0.0
    %3887 = vmatpush1.xpose.msra.mxu0 0.0
    %3888 = vmatprep.subr.mxu0 0.0
    %3889 = vmatpush1.xpose.msra.mxu0 0.0
    %3890 = vmatprep.subr.mxu0 0.0
    %3891 = vmatpush1.xpose.msra.mxu0 0.0
    %3892 = vmatprep.subr.mxu0 0.0
    %3893 = vmatpush1.xpose.msra.mxu0 0.0
    %3894 = vmatprep.subr.mxu0 0.0
    %3895 = vmatpush1.xpose.msra.mxu0 0.0
    %3896 = vmatprep.subr.mxu0 0.0
    %3897 = vmatpush1.xpose.msra.mxu0 0.0
    %3898 = vmatprep.subr.mxu0 0.0
    %3899 = vmatpush1.xpose.msra.mxu0 0.0
    %3900 = vmatprep.subr.mxu0 0.0
    %3901 = vmatpush1.xpose.msra.mxu0 0.0
    %3902 = vmatprep.subr.mxu0 0.0
    %3903 = vmatpush1.xpose.msra.mxu0 0.0
    %3904 = vmatprep.subr.mxu0 0.0
    %3905 = vmatpush1.xpose.msra.mxu0 0.0
    %3906 = vmatprep.subr.mxu0 0.0
    %3907 = vmatpush1.xpose.msra.mxu0 0.0
    %3908 = vmatprep.subr.mxu0 0.0
    %3909 = vmatpush1.xpose.msra.mxu0 0.0
    %3910 = vmatprep.subr.mxu0 0.0
    %3911 = vmatpush1.xpose.msra.mxu0 0.0
    %3912 = vmatprep.subr.mxu0 0.0
    %3913 = vmatpush1.xpose.msra.mxu0 0.0
    %3914 = vmatprep.subr.mxu0 0.0
    %3915 = vmatpush1.xpose.msra.mxu0 0.0
    %3916 = vmatprep.subr.mxu0 0.0
    %3917 = vmatpush1.xpose.msra.mxu0 0.0
    %3918 = vmatprep.mubr.f32.mxu0 0.0
    %3919 = vmatmul.mubr.f32.gmra.mrb[0].mxu0 %v3830
    %v3920 = vpop.f32.mrb[0].mxu0
    %v3921 = vadd.f32 0.0, %v3920
    %v3922 = vpop.f32.mrb[0].mxu0
    %3923 = vmatprep.mubr.f32.mxu0 0.0
    %3924 = vmatmul.mubr.f32.gmra.mrb[0].mxu0 %v3832
    %v3925 = vpop.f32.mrb[0].mxu0
    %v3926 = vadd.f32 0.0, %v3925
    %v3927 = vpop.f32.mrb[0].mxu0
    %3928 = vmatprep.mubr.f32.mxu0 0.0
    %3929 = vmatmul.mubr.f32.gmra.mrb[0].mxu0 %v3834
    %v3930 = vpop.f32.mrb[0].mxu0
    %v3931 = vadd.f32 0.0, %v3930
    %v3932 = vpop.f32.mrb[0].mxu0
    %3933 = vmatprep.mubr.f32.mxu0 0.0
    %3934 = vmatmul.mubr.f32.gmra.mrb[0].mxu0 %v3836
    %v3935 = vpop.f32.mrb[0].mxu0
    %v3936 = vadd.f32 0.0, %v3935
    %v3937 = vpop.f32.mrb[0].mxu0
    %3938 = vmatprep.mubr.f32.mxu0 0.0
    %3939 = vmatmul.mubr.f32.gmra.mrb[0].mxu0 %v3838
    %v3940 = vpop.f32.mrb[0].mxu0
    %v3941 = vadd.f32 0.0, %v3940
    %v3942 = vpop.f32.mrb[0].mxu0
    %3943 = vmatprep.mubr.f32.mxu0 0.0
    %3944 = vmatmul.mubr.f32.gmra.mrb[0].mxu0 %v3840
    %v3945 = vpop.f32.mrb[0].mxu0
    %v3946 = vadd.f32 0.0, %v3945
    %v3947 = vpop.f32.mrb[0].mxu0
    %3948 = vdwg.mxu0
    %v3949 = vmul.f32 %v3921, 0.35355338
    %v3950 = vmul.f32 %v3926, 0.35355338
    %v3951 = vmul.f32 %v3931, 0.35355338
    %v3952 = vmul.f32 %v3936, 0.35355338
    %v3953 = vmul.f32 %v3941, 0.35355338
    %v3954 = vmul.f32 %v3946, 0.35355338
    %v3955 = vadd.f32 %v3949, %v282
    %v3956 = vadd.f32 %v3950, %v283
    %v3957 = vadd.f32 %v3951, %v284
    %v3958 = vadd.f32 %v3952, %v285
    %v3959 = vadd.f32 %v3953, %v286
    %v3960 = vadd.f32 %v3954, %v287
    %v3961 = vsel %vm71, %v3955, -inf
    %3962 = vmax.xlane.f32.xlu0 %v3961
    %v3963 = vpop.xlane.xlu0 %3962
    %v3964 = vsel %vm71, %v3956, -inf
    %3965 = vmax.xlane.f32.xlu0 %v3964
    %v3966 = vpop.xlane.xlu0 %3965
    %v3967 = vsel %vm71, %v3957, -inf
    %3968 = vmax.xlane.f32.xlu0 %v3967
    %v3969 = vpop.xlane.xlu0 %3968
    %v3970 = vsel %vm71, %v3958, -inf
    %3971 = vmax.xlane.f32.xlu0 %v3970
    %v3972 = vpop.xlane.xlu0 %3971
    %v3973 = vsel %vm71, %v3959, -inf
    %3974 = vmax.xlane.f32.xlu0 %v3973
    %v3975 = vpop.xlane.xlu0 %3974
    %v3976 = vsel %vm71, %v3960, -inf
    %3977 = vmax.xlane.f32.xlu0 %v3976
    %v3978 = vpop.xlane.xlu0 %3977
    %v3979 = vsub.f32 %v3955, %v3963
    %v3980 = vsub.f32 %v3956, %v3966
    %v3981 = vsub.f32 %v3957, %v3969
    %v3982 = vsub.f32 %v3958, %v3972
    %v3983 = vsub.f32 %v3959, %v3975
    %v3984 = vsub.f32 %v3960, %v3978
    %v3985 = vmul.f32 %v3979, 1.442695
    %v3986 = vpow.pop %v3985
    %v3987 = vmul.f32 %v3980, 1.442695
    %v3988 = vpow.pop %v3987
    %v3989 = vmul.f32 %v3981, 1.442695
    %v3990 = vpow.pop %v3989
    %v3991 = vmul.f32 %v3982, 1.442695
    %v3992 = vpow.pop %v3991
    %v3993 = vmul.f32 %v3983, 1.442695
    %v3994 = vpow.pop %v3993
    %v3995 = vmul.f32 %v3984, 1.442695
    %v3996 = vpow.pop %v3995
    %v3997 = vsel %vm71, %v3986, 0.0
    %3998 = vadd.xlane.f32.xlu0 %v3997
    %v3999 = vpop.xlane.xlu0 %3998
    %v4000 = vsel %vm71, %v3988, 0.0
    %4001 = vadd.xlane.f32.xlu0 %v4000
    %v4002 = vpop.xlane.xlu0 %4001
    %v4003 = vsel %vm71, %v3990, 0.0
    %4004 = vadd.xlane.f32.xlu0 %v4003
    %v4005 = vpop.xlane.xlu0 %4004
    %v4006 = vsel %vm71, %v3992, 0.0
    %4007 = vadd.xlane.f32.xlu0 %v4006
    %v4008 = vpop.xlane.xlu0 %4007
    %v4009 = vsel %vm71, %v3994, 0.0
    %4010 = vadd.xlane.f32.xlu0 %v4009
    %v4011 = vpop.xlane.xlu0 %4010
    %v4012 = vsel %vm71, %v3996, 0.0
    %4013 = vadd.xlane.f32.xlu0 %v4012
    %v4014 = vpop.xlane.xlu0 %4013
    %v4015 = vrcp.pop %v3999
    %v4016 = vmul.f32 %v3986, %v4015
    %v4017 = vrcp.pop %v4002
    %v4018 = vmul.f32 %v3988, %v4017
    %v4019 = vrcp.pop %v4005
    %v4020 = vmul.f32 %v3990, %v4019
    %v4021 = vrcp.pop %v4008
    %v4022 = vmul.f32 %v3992, %v4021
    %v4023 = vrcp.pop %v4011
    %v4024 = vmul.f32 %v3994, %v4023
    %v4025 = vrcp.pop %v4014
    %v4026 = vmul.f32 %v3996, %v4025
    %4027 = vrot.lane.b32.xlu0 %v2728, 40
    %v4028 = vpop.permute.xlu0 %4027
    %4029 = vrot.lane.b32.xlu0 %v2733, 40
    %v4030 = vpop.permute.xlu0 %4029
    %4031 = vrot.lane.b32.xlu0 %v2738, 40
    %v4032 = vpop.permute.xlu0 %4031
    %4033 = vrot.lane.b32.xlu0 %v2743, 40
    %v4034 = vpop.permute.xlu0 %4033
    %4035 = vrot.lane.b32.xlu0 %v2748, 40
    %v4036 = vpop.permute.xlu0 %4035
    %4037 = vrot.lane.b32.xlu0 %v2753, 40
    %v4038 = vpop.permute.xlu0 %4037
    %v4046 = vsel %vm71, %v4016, 0
    %v4049 = vsel %vm71, %v4018, 0
    %v4052 = vsel %vm71, %v4020, 0
    %v4055 = vsel %vm71, %v4022, 0
    %v4058 = vsel %vm71, %v4024, 0
    %v4061 = vsel %vm71, %v4026, 0
    %4063 = vmatprep.subr.mxu0 0.0
    %4064 = vmatpush1.msra.mxu0 %v4028
    %4065 = vmatprep.subr.mxu0 0.0
    %4066 = vmatpush1.msra.mxu0 %v4030
    %4067 = vmatprep.subr.mxu0 0.0
    %4068 = vmatpush1.msra.mxu0 %v4032
    %4069 = vmatprep.subr.mxu0 0.0
    %4070 = vmatpush1.msra.mxu0 %v4034
    %4071 = vmatprep.subr.mxu0 0.0
    %4072 = vmatpush1.msra.mxu0 %v4036
    %4073 = vmatprep.subr.mxu0 0.0
    %4074 = vmatpush1.msra.mxu0 %v4038
    %4075 = vmatprep.subr.mxu0 0.0
    %4076 = vmatpush1.msra.mxu0 0.0
    %4077 = vmatprep.subr.mxu0 0.0
    %4078 = vmatpush1.msra.mxu0 0.0
    %4079 = vmatprep.subr.mxu0 0.0
    %4080 = vmatpush1.msra.mxu0 0.0
    %4081 = vmatprep.subr.mxu0 0.0
    %4082 = vmatpush1.msra.mxu0 0.0
    %4083 = vmatprep.subr.mxu0 0.0
    %4084 = vmatpush1.msra.mxu0 0.0
    %4085 = vmatprep.subr.mxu0 0.0
    %4086 = vmatpush1.msra.mxu0 0.0
    %4087 = vmatprep.subr.mxu0 0.0
    %4088 = vmatpush1.msra.mxu0 0.0
    %4089 = vmatprep.subr.mxu0 0.0
    %4090 = vmatpush1.msra.mxu0 0.0
    %4091 = vmatprep.subr.mxu0 0.0
    %4092 = vmatpush1.msra.mxu0 0.0
    %4093 = vmatprep.subr.mxu0 0.0
    %4094 = vmatpush1.msra.mxu0 0.0
    %4095 = vmatprep.subr.mxu0 0.0
    %4096 = vmatpush1.msra.mxu0 0.0
    %4097 = vmatprep.subr.mxu0 0.0
    %4098 = vmatpush1.msra.mxu0 0.0
    %4099 = vmatprep.subr.mxu0 0.0
    %4100 = vmatpush1.msra.mxu0 0.0
    %4101 = vmatprep.subr.mxu0 0.0
    %4102 = vmatpush1.msra.mxu0 0.0
    %4103 = vmatprep.subr.mxu0 0.0
    %4104 = vmatpush1.msra.mxu0 0.0
    %4105 = vmatprep.subr.mxu0 0.0
    %4106 = vmatpush1.msra.mxu0 0.0
    %4107 = vmatprep.subr.mxu0 0.0
    %4108 = vmatpush1.msra.mxu0 0.0
    %4109 = vmatprep.subr.mxu0 0.0
    %4110 = vmatpush1.msra.mxu0 0.0
    %4111 = vmatprep.subr.mxu0 0.0
    %4112 = vmatpush1.msra.mxu0 0.0
    %4113 = vmatprep.subr.mxu0 0.0
    %4114 = vmatpush1.msra.mxu0 0.0
    %4115 = vmatprep.subr.mxu0 0.0
    %4116 = vmatpush1.msra.mxu0 0.0
    %4117 = vmatprep.subr.mxu0 0.0
    %4118 = vmatpush1.msra.mxu0 0.0
    %4119 = vmatprep.subr.mxu0 0.0
    %4120 = vmatpush1.msra.mxu0 0.0
    %4121 = vmatprep.subr.mxu0 0.0
    %4122 = vmatpush1.msra.mxu0 0.0
    %4123 = vmatprep.subr.mxu0 0.0
    %4124 = vmatpush1.msra.mxu0 0.0
    %4125 = vmatprep.subr.mxu0 0.0
    %4126 = vmatpush1.msra.mxu0 0.0
    %4127 = vmatprep.mubr.f32.mxu0 0.0
    %4128 = vmatmul.mubr.f32.gmra.mrb[0].mxu0 %v4046
    %v4129 = vpop.f32.mrb[0].mxu0
    %v4130 = vadd.f32 0.0, %v4129
    %v4131 = vpop.f32.mrb[0].mxu0
    %4132 = vmatprep.mubr.f32.mxu0 0.0
    %4133 = vmatmul.mubr.f32.gmra.mrb[0].mxu0 %v4049
    %v4134 = vpop.f32.mrb[0].mxu0
    %v4135 = vadd.f32 0.0, %v4134
    %v4136 = vpop.f32.mrb[0].mxu0
    %4137 = vmatprep.mubr.f32.mxu0 0.0
    %4138 = vmatmul.mubr.f32.gmra.mrb[0].mxu0 %v4052
    %v4139 = vpop.f32.mrb[0].mxu0
    %v4140 = vadd.f32 0.0, %v4139
    %v4141 = vpop.f32.mrb[0].mxu0
    %4142 = vmatprep.mubr.f32.mxu0 0.0
    %4143 = vmatmul.mubr.f32.gmra.mrb[0].mxu0 %v4055
    %v4144 = vpop.f32.mrb[0].mxu0
    %v4145 = vadd.f32 0.0, %v4144
    %v4146 = vpop.f32.mrb[0].mxu0
    %4147 = vmatprep.mubr.f32.mxu0 0.0
    %4148 = vmatmul.mubr.f32.gmra.mrb[0].mxu0 %v4058
    %v4149 = vpop.f32.mrb[0].mxu0
    %v4150 = vadd.f32 0.0, %v4149
    %v4151 = vpop.f32.mrb[0].mxu0
    %4152 = vmatprep.mubr.f32.mxu0 0.0
    %4153 = vmatmul.mubr.f32.gmra.mrb[0].mxu0 %v4061
    %v4154 = vpop.f32.mrb[0].mxu0
    %v4155 = vadd.f32 0.0, %v4154
    %v4156 = vpop.f32.mrb[0].mxu0
    %4157 = vdwg.mxu0
    %4164 = vrot.lane.b32.xlu0 %v3426, 8
    %v4165 = vpop.permute.xlu0 %4164
    %4166 = vrot.lane.b32.xlu0 %v3431, 8
    %v4167 = vpop.permute.xlu0 %4166
    %4168 = vrot.lane.b32.xlu0 %v3436, 8
    %v4169 = vpop.permute.xlu0 %4168
    %4170 = vrot.lane.b32.xlu0 %v3441, 8
    %v4171 = vpop.permute.xlu0 %4170
    %4172 = vrot.lane.b32.xlu0 %v3446, 8
    %v4173 = vpop.permute.xlu0 %4172
    %4174 = vrot.lane.b32.xlu0 %v3451, 8
    %v4175 = vpop.permute.xlu0 %4174
    %4188 = vrot.lane.b32.xlu0 %v3778, 16
    %v4189 = vpop.permute.xlu0 %4188
    %4190 = vrot.lane.b32.xlu0 %v3783, 16
    %v4191 = vpop.permute.xlu0 %4190
    %4192 = vrot.lane.b32.xlu0 %v3788, 16
    %v4193 = vpop.permute.xlu0 %4192
    %4194 = vrot.lane.b32.xlu0 %v3793, 16
    %v4195 = vpop.permute.xlu0 %4194
    %4196 = vrot.lane.b32.xlu0 %v3798, 16
    %v4197 = vpop.permute.xlu0 %4196
    %4198 = vrot.lane.b32.xlu0 %v3803, 16
    %v4199 = vpop.permute.xlu0 %4198
    %4212 = vrot.lane.b32.xlu0 %v4130, 24
    %v4213 = vpop.permute.xlu0 %4212
    %4214 = vrot.lane.b32.xlu0 %v4135, 24
    %v4215 = vpop.permute.xlu0 %4214
    %4216 = vrot.lane.b32.xlu0 %v4140, 24
    %v4217 = vpop.permute.xlu0 %4216
    %4218 = vrot.lane.b32.xlu0 %v4145, 24
    %v4219 = vpop.permute.xlu0 %4218
    %4220 = vrot.lane.b32.xlu0 %v4150, 24
    %v4221 = vpop.permute.xlu0 %4220
    %4222 = vrot.lane.b32.xlu0 %v4155, 24
    %v4223 = vpop.permute.xlu0 %4222
    %v4230 = vsel %vm529, %v3074, %v4165
    %v4231 = vsel %vm529, %v3079, %v4167
    %v4232 = vsel %vm529, %v3084, %v4169
    %v4233 = vsel %vm529, %v3089, %v4171
    %v4234 = vsel %vm529, %v3094, %v4173
    %v4235 = vsel %vm529, %v3099, %v4175
    %v4236 = vsel %vm1992, %v4230, %v4189
    %v4237 = vsel %vm1992, %v4231, %v4191
    %v4238 = vsel %vm1992, %v4232, %v4193
    %v4239 = vsel %vm1992, %v4233, %v4195
    %v4240 = vsel %vm1992, %v4234, %v4197
    %v4241 = vsel %vm1992, %v4235, %v4199
    %v4242 = vsel %vm1999, %v4236, %v4213
    %v4243 = vsel %vm1999, %v4237, %v4215
    %v4244 = vsel %vm1999, %v4238, %v4217
    %v4245 = vsel %vm1999, %v4239, %v4219
    %v4246 = vsel %vm1999, %v4240, %v4221
    %v4247 = vsel %vm1999, %v4241, %v4223
    %s4248 = scalar_lea.vmem %s8, 32
    %v4249 = vld [vmem:[%s4248] sm:$0xff]
    %v4250 = vld [vmem:[%s4248 + $0x8] sm:$0xff]
    %v4251 = vld [vmem:[%s4248 + $0x10] sm:$0xff]
    %v4252 = vld [vmem:[%s4248 + $0x18] sm:$0xff]
    %s4253 = scalar_lea.vmem %s9, 1
    %v4254 = vld [vmem:[%s4253] sm:$0x1]
    %v4256 = vlaneseq
    %v4257 = vshrl.u32 %v4256, 7
    %v4258 = vsub.s32 0, %v4257
    %v4259 = vrot.slane %v4254, %v4258
    %v4262 = vsel %vm169, %v4242, 0
    %v4265 = vsel %vm169, %v4243, 0
    %v4268 = vsel %vm169, %v4244, 0
    %v4271 = vsel %vm169, %v4245, 0
    %v4274 = vsel %vm169, %v4246, 0
    %v4277 = vsel %vm169, %v4247, 0
    %4279 = vmatprep.subr.mxu0 0.0
    %4280 = vmatpush1.msra.mxu0 %v4249
    %4281 = vmatprep.subr.mxu0 0.0
    %4282 = vmatpush1.msra.mxu0 %v4250
    %4283 = vmatprep.subr.mxu0 0.0
    %4284 = vmatpush1.msra.mxu0 %v4251
    %4285 = vmatprep.subr.mxu0 0.0
    %4286 = vmatpush1.msra.mxu0 %v4252
    %4287 = vmatprep.subr.mxu0 0.0
    %4288 = vmatpush1.msra.mxu0 0.0
    %4289 = vmatprep.subr.mxu0 0.0
    %4290 = vmatpush1.msra.mxu0 0.0
    %4291 = vmatprep.subr.mxu0 0.0
    %4292 = vmatpush1.msra.mxu0 0.0
    %4293 = vmatprep.subr.mxu0 0.0
    %4294 = vmatpush1.msra.mxu0 0.0
    %4295 = vmatprep.subr.mxu0 0.0
    %4296 = vmatpush1.msra.mxu0 0.0
    %4297 = vmatprep.subr.mxu0 0.0
    %4298 = vmatpush1.msra.mxu0 0.0
    %4299 = vmatprep.subr.mxu0 0.0
    %4300 = vmatpush1.msra.mxu0 0.0
    %4301 = vmatprep.subr.mxu0 0.0
    %4302 = vmatpush1.msra.mxu0 0.0
    %4303 = vmatprep.subr.mxu0 0.0
    %4304 = vmatpush1.msra.mxu0 0.0
    %4305 = vmatprep.subr.mxu0 0.0
    %4306 = vmatpush1.msra.mxu0 0.0
    %4307 = vmatprep.subr.mxu0 0.0
    %4308 = vmatpush1.msra.mxu0 0.0
    %4309 = vmatprep.subr.mxu0 0.0
    %4310 = vmatpush1.msra.mxu0 0.0
    %4311 = vmatprep.subr.mxu0 0.0
    %4312 = vmatpush1.msra.mxu0 0.0
    %4313 = vmatprep.subr.mxu0 0.0
    %4314 = vmatpush1.msra.mxu0 0.0
    %4315 = vmatprep.subr.mxu0 0.0
    %4316 = vmatpush1.msra.mxu0 0.0
    %4317 = vmatprep.subr.mxu0 0.0
    %4318 = vmatpush1.msra.mxu0 0.0
    %4319 = vmatprep.subr.mxu0 0.0
    %4320 = vmatpush1.msra.mxu0 0.0
    %4321 = vmatprep.subr.mxu0 0.0
    %4322 = vmatpush1.msra.mxu0 0.0
    %4323 = vmatprep.subr.mxu0 0.0
    %4324 = vmatpush1.msra.mxu0 0.0
    %4325 = vmatprep.subr.mxu0 0.0
    %4326 = vmatpush1.msra.mxu0 0.0
    %4327 = vmatprep.subr.mxu0 0.0
    %4328 = vmatpush1.msra.mxu0 0.0
    %4329 = vmatprep.subr.mxu0 0.0
    %4330 = vmatpush1.msra.mxu0 0.0
    %4331 = vmatprep.subr.mxu0 0.0
    %4332 = vmatpush1.msra.mxu0 0.0
    %4333 = vmatprep.subr.mxu0 0.0
    %4334 = vmatpush1.msra.mxu0 0.0
    %4335 = vmatprep.subr.mxu0 0.0
    %4336 = vmatpush1.msra.mxu0 0.0
    %4337 = vmatprep.subr.mxu0 0.0
    %4338 = vmatpush1.msra.mxu0 0.0
    %4339 = vmatprep.subr.mxu0 0.0
    %4340 = vmatpush1.msra.mxu0 0.0
    %4341 = vmatprep.subr.mxu0 0.0
    %4342 = vmatpush1.msra.mxu0 0.0
    %4343 = vmatprep.mubr.f32.mxu0 0.0
    %4344 = vmatmul.mubr.f32.gmra.mrb[0].mxu0 %v4262
    %v4345 = vpop.f32.mrb[0].mxu0
    %v4346 = vadd.f32 %v4259, %v4345
    %v4347 = vpop.f32.mrb[0].mxu0
    %4348 = vmatprep.mubr.f32.mxu0 0.0
    %4349 = vmatmul.mubr.f32.gmra.mrb[0].mxu0 %v4265
    %v4350 = vpop.f32.mrb[0].mxu0
    %v4351 = vadd.f32 %v4259, %v4350
    %v4352 = vpop.f32.mrb[0].mxu0
    %4353 = vmatprep.mubr.f32.mxu0 0.0
    %4354 = vmatmul.mubr.f32.gmra.mrb[0].mxu0 %v4268
    %v4355 = vpop.f32.mrb[0].mxu0
    %v4356 = vadd.f32 %v4259, %v4355
    %v4357 = vpop.f32.mrb[0].mxu0
    %4358 = vmatprep.mubr.f32.mxu0 0.0
    %4359 = vmatmul.mubr.f32.gmra.mrb[0].mxu0 %v4271
    %v4360 = vpop.f32.mrb[0].mxu0
    %v4361 = vadd.f32 %v4259, %v4360
    %v4362 = vpop.f32.mrb[0].mxu0
    %4363 = vmatprep.mubr.f32.mxu0 0.0
    %4364 = vmatmul.mubr.f32.gmra.mrb[0].mxu0 %v4274
    %v4365 = vpop.f32.mrb[0].mxu0
    %v4366 = vadd.f32 %v4259, %v4365
    %v4367 = vpop.f32.mrb[0].mxu0
    %4368 = vmatprep.mubr.f32.mxu0 0.0
    %4369 = vmatmul.mubr.f32.gmra.mrb[0].mxu0 %v4277
    %v4370 = vpop.f32.mrb[0].mxu0
    %v4371 = vadd.f32 %v4259, %v4370
    %v4372 = vpop.f32.mrb[0].mxu0
    %4373 = vdwg.mxu0
    %v4374 = vadd.f32 %v2524, %v4346
    %v4375 = vadd.f32 %v2525, %v4351
    %v4376 = vadd.f32 %v2526, %v4356
    %v4377 = vadd.f32 %v2527, %v4361
    %v4378 = vadd.f32 %v2528, %v4366
    %v4379 = vadd.f32 %v2529, %v4371
    %s4380 = scalar_lea.vmem %s10, 2
    %v4381 = vld [vmem:[%s4380] sm:$0x3]
    %v4382 = vsel %vm169, %v4374, 0.0
    %4383 = vadd.xlane.f32.xlu0 %v4382
    %v4384 = vpop.xlane.xlu0 %4383
    %v4385 = vsel %vm169, %v4375, 0.0
    %4386 = vadd.xlane.f32.xlu0 %v4385
    %v4387 = vpop.xlane.xlu0 %4386
    %v4388 = vsel %vm169, %v4376, 0.0
    %4389 = vadd.xlane.f32.xlu0 %v4388
    %v4390 = vpop.xlane.xlu0 %4389
    %v4391 = vsel %vm169, %v4377, 0.0
    %4392 = vadd.xlane.f32.xlu0 %v4391
    %v4393 = vpop.xlane.xlu0 %4392
    %v4394 = vsel %vm169, %v4378, 0.0
    %4395 = vadd.xlane.f32.xlu0 %v4394
    %v4396 = vpop.xlane.xlu0 %4395
    %v4397 = vsel %vm169, %v4379, 0.0
    %4398 = vadd.xlane.f32.xlu0 %v4397
    %v4399 = vpop.xlane.xlu0 %4398
    %v4400 = vmul.f32 %v4384, 0.03125
    %v4401 = vmul.f32 %v4387, 0.03125
    %v4402 = vmul.f32 %v4390, 0.03125
    %v4403 = vmul.f32 %v4393, 0.03125
    %v4404 = vmul.f32 %v4396, 0.03125
    %v4405 = vmul.f32 %v4399, 0.03125
    %v4406 = vsub.f32 %v4374, %v4400
    %v4407 = vsub.f32 %v4375, %v4401
    %v4408 = vsub.f32 %v4376, %v4402
    %v4409 = vsub.f32 %v4377, %v4403
    %v4410 = vsub.f32 %v4378, %v4404
    %v4411 = vsub.f32 %v4379, %v4405
    %v4412 = vmul.f32 %v4406, %v4406
    %v4413 = vmul.f32 %v4407, %v4407
    %v4414 = vmul.f32 %v4408, %v4408
    %v4415 = vmul.f32 %v4409, %v4409
    %v4416 = vmul.f32 %v4410, %v4410
    %v4417 = vmul.f32 %v4411, %v4411
    %v4418 = vsel %vm169, %v4412, 0.0
    %4419 = vadd.xlane.f32.xlu0 %v4418
    %v4420 = vpop.xlane.xlu0 %4419
    %v4421 = vsel %vm169, %v4413, 0.0
    %4422 = vadd.xlane.f32.xlu0 %v4421
    %v4423 = vpop.xlane.xlu0 %4422
    %v4424 = vsel %vm169, %v4414, 0.0
    %4425 = vadd.xlane.f32.xlu0 %v4424
    %v4426 = vpop.xlane.xlu0 %4425
    %v4427 = vsel %vm169, %v4415, 0.0
    %4428 = vadd.xlane.f32.xlu0 %v4427
    %v4429 = vpop.xlane.xlu0 %4428
    %v4430 = vsel %vm169, %v4416, 0.0
    %4431 = vadd.xlane.f32.xlu0 %v4430
    %v4432 = vpop.xlane.xlu0 %4431
    %v4433 = vsel %vm169, %v4417, 0.0
    %4434 = vadd.xlane.f32.xlu0 %v4433
    %v4435 = vpop.xlane.xlu0 %4434
    %v4436 = vmul.f32 %v4420, 0.03125
    %v4437 = vmul.f32 %v4423, 0.03125
    %v4438 = vmul.f32 %v4426, 0.03125
    %v4439 = vmul.f32 %v4429, 0.03125
    %v4440 = vmul.f32 %v4432, 0.03125
    %v4441 = vmul.f32 %v4435, 0.03125
    %v4442 = vadd.f32 %v4436, 1e-12
    %v4443 = vadd.f32 %v4437, 1e-12
    %v4444 = vadd.f32 %v4438, 1e-12
    %v4445 = vadd.f32 %v4439, 1e-12
    %v4446 = vadd.f32 %v4440, 1e-12
    %v4447 = vadd.f32 %v4441, 1e-12
    %v4448 = vrsqrt.pop %v4442
    %v4449 = vrsqrt.pop %v4443
    %v4450 = vrsqrt.pop %v4444
    %v4451 = vrsqrt.pop %v4445
    %v4452 = vrsqrt.pop %v4446
    %v4453 = vrsqrt.pop %v4447
    %v4454 = vmul.f32 %v4406, %v4448
    %v4455 = vmul.f32 %v4407, %v4449
    %v4456 = vmul.f32 %v4408, %v4450
    %v4457 = vmul.f32 %v4409, %v4451
    %v4458 = vmul.f32 %v4410, %v4452
    %v4459 = vmul.f32 %v4411, %v4453
    %v4460 = vlaneseq
    %v4461 = vshrl.u32 %v4460, 7
    %v4462 = vsub.s32 0, %v4461
    %v4463 = vrot.slane %v4381, %v4462
    %v4464 = vmul.f32 %v4454, %v4463
    %v4465 = vmul.f32 %v4455, %v4463
    %v4466 = vmul.f32 %v4456, %v4463
    %v4467 = vmul.f32 %v4457, %v4463
    %v4468 = vmul.f32 %v4458, %v4463
    %v4469 = vmul.f32 %v4459, %v4463
    %v4470 = vlaneseq
    %v4471 = vshrl.u32 %v4470, 7
    %v4472 = vsub.s32 1, %v4471
    %v4473 = vrot.slane %v4381, %v4472
    %v4474 = vadd.f32 %v4464, %v4473
    %v4475 = vadd.f32 %v4465, %v4473
    %v4476 = vadd.f32 %v4466, %v4473
    %v4477 = vadd.f32 %v4467, %v4473
    %v4478 = vadd.f32 %v4468, %v4473
    %v4479 = vadd.f32 %v4469, %v4473
    %s4480 = scalar_lea.vmem %s11, 32
    %v4481 = vld [vmem:[%s4480] sm:$0xff]
    %v4482 = vld [vmem:[%s4480 + $0x8] sm:$0xff]
    %v4483 = vld [vmem:[%s4480 + $0x10] sm:$0xff]
    %v4484 = vld [vmem:[%s4480 + $0x18] sm:$0xff]
    %s4485 = scalar_lea.vmem %s12, 1
    %v4486 = vld [vmem:[%s4485] sm:$0x1]
    %v4488 = vlaneseq
    %v4489 = vshrl.u32 %v4488, 7
    %v4490 = vsub.s32 0, %v4489
    %v4491 = vrot.slane %v4486, %v4490
    %v4494 = vsel %vm169, %v4474, 0
    %v4497 = vsel %vm169, %v4475, 0
    %v4500 = vsel %vm169, %v4476, 0
    %v4503 = vsel %vm169, %v4477, 0
    %v4506 = vsel %vm169, %v4478, 0
    %v4509 = vsel %vm169, %v4479, 0
    %4511 = vmatprep.subr.mxu0 0.0
    %4512 = vmatpush1.msra.mxu0 %v4481
    %4513 = vmatprep.subr.mxu0 0.0
    %4514 = vmatpush1.msra.mxu0 %v4482
    %4515 = vmatprep.subr.mxu0 0.0
    %4516 = vmatpush1.msra.mxu0 %v4483
    %4517 = vmatprep.subr.mxu0 0.0
    %4518 = vmatpush1.msra.mxu0 %v4484
    %4519 = vmatprep.subr.mxu0 0.0
    %4520 = vmatpush1.msra.mxu0 0.0
    %4521 = vmatprep.subr.mxu0 0.0
    %4522 = vmatpush1.msra.mxu0 0.0
    %4523 = vmatprep.subr.mxu0 0.0
    %4524 = vmatpush1.msra.mxu0 0.0
    %4525 = vmatprep.subr.mxu0 0.0
    %4526 = vmatpush1.msra.mxu0 0.0
    %4527 = vmatprep.subr.mxu0 0.0
    %4528 = vmatpush1.msra.mxu0 0.0
    %4529 = vmatprep.subr.mxu0 0.0
    %4530 = vmatpush1.msra.mxu0 0.0
    %4531 = vmatprep.subr.mxu0 0.0
    %4532 = vmatpush1.msra.mxu0 0.0
    %4533 = vmatprep.subr.mxu0 0.0
    %4534 = vmatpush1.msra.mxu0 0.0
    %4535 = vmatprep.subr.mxu0 0.0
    %4536 = vmatpush1.msra.mxu0 0.0
    %4537 = vmatprep.subr.mxu0 0.0
    %4538 = vmatpush1.msra.mxu0 0.0
    %4539 = vmatprep.subr.mxu0 0.0
    %4540 = vmatpush1.msra.mxu0 0.0
    %4541 = vmatprep.subr.mxu0 0.0
    %4542 = vmatpush1.msra.mxu0 0.0
    %4543 = vmatprep.subr.mxu0 0.0
    %4544 = vmatpush1.msra.mxu0 0.0
    %4545 = vmatprep.subr.mxu0 0.0
    %4546 = vmatpush1.msra.mxu0 0.0
    %4547 = vmatprep.subr.mxu0 0.0
    %4548 = vmatpush1.msra.mxu0 0.0
    %4549 = vmatprep.subr.mxu0 0.0
    %4550 = vmatpush1.msra.mxu0 0.0
    %4551 = vmatprep.subr.mxu0 0.0
    %4552 = vmatpush1.msra.mxu0 0.0
    %4553 = vmatprep.subr.mxu0 0.0
    %4554 = vmatpush1.msra.mxu0 0.0
    %4555 = vmatprep.subr.mxu0 0.0
    %4556 = vmatpush1.msra.mxu0 0.0
    %4557 = vmatprep.subr.mxu0 0.0
    %4558 = vmatpush1.msra.mxu0 0.0
    %4559 = vmatprep.subr.mxu0 0.0
    %4560 = vmatpush1.msra.mxu0 0.0
    %4561 = vmatprep.subr.mxu0 0.0
    %4562 = vmatpush1.msra.mxu0 0.0
    %4563 = vmatprep.subr.mxu0 0.0
    %4564 = vmatpush1.msra.mxu0 0.0
    %4565 = vmatprep.subr.mxu0 0.0
    %4566 = vmatpush1.msra.mxu0 0.0
    %4567 = vmatprep.subr.mxu0 0.0
    %4568 = vmatpush1.msra.mxu0 0.0
    %4569 = vmatprep.subr.mxu0 0.0
    %4570 = vmatpush1.msra.mxu0 0.0
    %4571 = vmatprep.subr.mxu0 0.0
    %4572 = vmatpush1.msra.mxu0 0.0
    %4573 = vmatprep.subr.mxu0 0.0
    %4574 = vmatpush1.msra.mxu0 0.0
    %4575 = vmatprep.mubr.f32.mxu0 0.0
    %4576 = vmatmul.mubr.f32.gmra.mrb[0].mxu0 %v4494
    %v4577 = vpop.f32.mrb[0].mxu0
    %v4578 = vadd.f32 %v4491, %v4577
    %v4579 = vpop.f32.mrb[0].mxu0
    %4580 = vmatprep.mubr.f32.mxu0 0.0
    %4581 = vmatmul.mubr.f32.gmra.mrb[0].mxu0 %v4497
    %v4582 = vpop.f32.mrb[0].mxu0
    %v4583 = vadd.f32 %v4491, %v4582
    %v4584 = vpop.f32.mrb[0].mxu0
    %4585 = vmatprep.mubr.f32.mxu0 0.0
    %4586 = vmatmul.mubr.f32.gmra.mrb[0].mxu0 %v4500
    %v4587 = vpop.f32.mrb[0].mxu0
    %v4588 = vadd.f32 %v4491, %v4587
    %v4589 = vpop.f32.mrb[0].mxu0
    %4590 = vmatprep.mubr.f32.mxu0 0.0
    %4591 = vmatmul.mubr.f32.gmra.mrb[0].mxu0 %v4503
    %v4592 = vpop.f32.mrb[0].mxu0
    %v4593 = vadd.f32 %v4491, %v4592
    %v4594 = vpop.f32.mrb[0].mxu0
    %4595 = vmatprep.mubr.f32.mxu0 0.0
    %4596 = vmatmul.mubr.f32.gmra.mrb[0].mxu0 %v4506
    %v4597 = vpop.f32.mrb[0].mxu0
    %v4598 = vadd.f32 %v4491, %v4597
    %v4599 = vpop.f32.mrb[0].mxu0
    %4600 = vmatprep.mubr.f32.mxu0 0.0
    %4601 = vmatmul.mubr.f32.gmra.mrb[0].mxu0 %v4509
    %v4602 = vpop.f32.mrb[0].mxu0
    %v4603 = vadd.f32 %v4491, %v4602
    %v4604 = vpop.f32.mrb[0].mxu0
    %4605 = vdwg.mxu0
    %v4606 = vmul.f32 %v4578, 0.5
    %v4607 = vmul.f32 %v4583, 0.5
    %v4608 = vmul.f32 %v4588, 0.5
    %v4609 = vmul.f32 %v4593, 0.5
    %v4610 = vmul.f32 %v4598, 0.5
    %v4611 = vmul.f32 %v4603, 0.5
    %v4612 = vmul.f32 %v4578, 0.70710677
    %v4613 = vmul.f32 %v4583, 0.70710677
    %v4614 = vmul.f32 %v4588, 0.70710677
    %v4615 = vmul.f32 %v4593, 0.70710677
    %v4616 = vmul.f32 %v4598, 0.70710677
    %v4617 = vmul.f32 %v4603, 0.70710677
    %v4618 = verf.f32.pop %v4612
    %v4619 = verf.f32.pop %v4613
    %v4620 = verf.f32.pop %v4614
    %v4621 = verf.f32.pop %v4615
    %v4622 = verf.f32.pop %v4616
    %v4623 = verf.f32.pop %v4617
    %v4624 = vadd.f32 %v4618, 1.0
    %v4625 = vadd.f32 %v4619, 1.0
    %v4626 = vadd.f32 %v4620, 1.0
    %v4627 = vadd.f32 %v4621, 1.0
    %v4628 = vadd.f32 %v4622, 1.0
    %v4629 = vadd.f32 %v4623, 1.0
    %v4630 = vmul.f32 %v4606, %v4624
    %v4631 = vmul.f32 %v4607, %v4625
    %v4632 = vmul.f32 %v4608, %v4626
    %v4633 = vmul.f32 %v4609, %v4627
    %v4634 = vmul.f32 %v4610, %v4628
    %v4635 = vmul.f32 %v4611, %v4629
    %s4636 = scalar_lea.vmem %s13, 64
    %v4637 = vld [vmem:[%s4636] sm:$0xff]
    %v4638 = vld [vmem:[%s4636 + $0x8] sm:$0xff]
    %v4639 = vld [vmem:[%s4636 + $0x10] sm:$0xff]
    %v4640 = vld [vmem:[%s4636 + $0x18] sm:$0xff]
    %v4641 = vld [vmem:[%s4636 + $0x20] sm:$0xff]
    %v4642 = vld [vmem:[%s4636 + $0x28] sm:$0xff]
    %v4643 = vld [vmem:[%s4636 + $0x30] sm:$0xff]
    %v4644 = vld [vmem:[%s4636 + $0x38] sm:$0xff]
    %v4646 = vsel %vm2397, %v4630, 0
    %v4649 = vsel %vm2397, %v4631, 0
    %v4652 = vsel %vm2397, %v4632, 0
    %v4655 = vsel %vm2397, %v4633, 0
    %v4658 = vsel %vm2397, %v4634, 0
    %v4661 = vsel %vm2397, %v4635, 0
    %4663 = vmatprep.subr.mxu0 0.0
    %4664 = vmatpush1.msra.mxu0 %v4637
    %4665 = vmatprep.subr.mxu0 0.0
    %4666 = vmatpush1.msra.mxu0 %v4638
    %4667 = vmatprep.subr.mxu0 0.0
    %4668 = vmatpush1.msra.mxu0 %v4639
    %4669 = vmatprep.subr.mxu0 0.0
    %4670 = vmatpush1.msra.mxu0 %v4640
    %4671 = vmatprep.subr.mxu0 0.0
    %4672 = vmatpush1.msra.mxu0 %v4641
    %4673 = vmatprep.subr.mxu0 0.0
    %4674 = vmatpush1.msra.mxu0 %v4642
    %4675 = vmatprep.subr.mxu0 0.0
    %4676 = vmatpush1.msra.mxu0 %v4643
    %4677 = vmatprep.subr.mxu0 0.0
    %4678 = vmatpush1.msra.mxu0 %v4644
    %4679 = vmatprep.subr.mxu0 0.0
    %4680 = vmatpush1.msra.mxu0 0.0
    %4681 = vmatprep.subr.mxu0 0.0
    %4682 = vmatpush1.msra.mxu0 0.0
    %4683 = vmatprep.subr.mxu0 0.0
    %4684 = vmatpush1.msra.mxu0 0.0
    %4685 = vmatprep.subr.mxu0 0.0
    %4686 = vmatpush1.msra.mxu0 0.0
    %4687 = vmatprep.subr.mxu0 0.0
    %4688 = vmatpush1.msra.mxu0 0.0
    %4689 = vmatprep.subr.mxu0 0.0
    %4690 = vmatpush1.msra.mxu0 0.0
    %4691 = vmatprep.subr.mxu0 0.0
    %4692 = vmatpush1.msra.mxu0 0.0
    %4693 = vmatprep.subr.mxu0 0.0
    %4694 = vmatpush1.msra.mxu0 0.0
    %4695 = vmatprep.subr.mxu0 0.0
    %4696 = vmatpush1.msra.mxu0 0.0
    %4697 = vmatprep.subr.mxu0 0.0
    %4698 = vmatpush1.msra.mxu0 0.0
    %4699 = vmatprep.subr.mxu0 0.0
    %4700 = vmatpush1.msra.mxu0 0.0
    %4701 = vmatprep.subr.mxu0 0.0
    %4702 = vmatpush1.msra.mxu0 0.0
    %4703 = vmatprep.subr.mxu0 0.0
    %4704 = vmatpush1.msra.mxu0 0.0
    %4705 = vmatprep.subr.mxu0 0.0
    %4706 = vmatpush1.msra.mxu0 0.0
    %4707 = vmatprep.subr.mxu0 0.0
    %4708 = vmatpush1.msra.mxu0 0.0
    %4709 = vmatprep.subr.mxu0 0.0
    %4710 = vmatpush1.msra.mxu0 0.0
    %4711 = vmatprep.subr.mxu0 0.0
    %4712 = vmatpush1.msra.mxu0 0.0
    %4713 = vmatprep.subr.mxu0 0.0
    %4714 = vmatpush1.msra.mxu0 0.0
    %4715 = vmatprep.subr.mxu0 0.0
    %4716 = vmatpush1.msra.mxu0 0.0
    %4717 = vmatprep.subr.mxu0 0.0
    %4718 = vmatpush1.msra.mxu0 0.0
    %4719 = vmatprep.subr.mxu0 0.0
    %4720 = vmatpush1.msra.mxu0 0.0
    %4721 = vmatprep.subr.mxu0 0.0
    %4722 = vmatpush1.msra.mxu0 0.0
    %4723 = vmatprep.subr.mxu0 0.0
    %4724 = vmatpush1.msra.mxu0 0.0
    %4725 = vmatprep.subr.mxu0 0.0
    %4726 = vmatpush1.msra.mxu0 0.0
    %4727 = vmatprep.mubr.f32.mxu0 0.0
    %4728 = vmatmul.mubr.f32.gmra.mrb[0].mxu0 %v4646
    %v4729 = vpop.f32.mrb[0].mxu0
    %v4730 = vpop.f32.mrb[0].mxu0
    %4731 = vmatprep.mubr.f32.mxu0 0.0
    %4732 = vmatmul.mubr.f32.gmra.mrb[0].mxu0 %v4649
    %v4733 = vpop.f32.mrb[0].mxu0
    %v4734 = vpop.f32.mrb[0].mxu0
    %4735 = vmatprep.mubr.f32.mxu0 0.0
    %4736 = vmatmul.mubr.f32.gmra.mrb[0].mxu0 %v4652
    %v4737 = vpop.f32.mrb[0].mxu0
    %v4738 = vadd.f32 0.0, %v4737
    %v4739 = vpop.f32.mrb[0].mxu0
    %4740 = vmatprep.mubr.f32.mxu0 0.0
    %4741 = vmatmul.mubr.f32.gmra.mrb[0].mxu0 %v4655
    %v4742 = vpop.f32.mrb[0].mxu0
    %v4743 = vpop.f32.mrb[0].mxu0
    %4744 = vmatprep.mubr.f32.mxu0 0.0
    %4745 = vmatmul.mubr.f32.gmra.mrb[0].mxu0 %v4658
    %v4746 = vpop.f32.mrb[0].mxu0
    %v4747 = vpop.f32.mrb[0].mxu0
    %4748 = vmatprep.mubr.f32.mxu0 0.0
    %4749 = vmatmul.mubr.f32.gmra.mrb[0].mxu0 %v4661
    %v4750 = vpop.f32.mrb[0].mxu0
    %v4751 = vadd.f32 0.0, %v4750
    %v4752 = vpop.f32.mrb[0].mxu0
    %4753 = vdwg.mxu0
    %v4754 = vadd.f32 %v4376, %v4738
    %v4755 = vadd.f32 %v4379, %v4751
    %s4756 = scalar_lea.vmem %s14, 1
    %v4757 = vld [vmem:[%s4756] sm:$0x1]
    %v4759 = vlaneseq
    %v4760 = vshrl.u32 %v4759, 7
    %v4761 = vsub.s32 0, %v4760
    %v4762 = vrot.slane %v4757, %v4761
    %v4764 = vadd.f32 %v4754, %v4762
    %v4765 = vadd.f32 %v4755, %v4762
    %v4766 = vld [vmem:[%s15] sm:$0x3]
    %v4767 = vsel %vm185, %v4764, 0.0
    %4768 = vadd.xlane.f32.xlu0 %v4767
    %v4769 = vpop.xlane.xlu0 %4768
    %v4770 = vmul.f32 %v4769, 0.03125
    %v4771 = vsub.f32 %v4764, %v4770
    %v4772 = vmul.f32 %v4771, %v4771
    %v4773 = vsel %vm185, %v4772, 0.0
    %4774 = vadd.xlane.f32.xlu0 %v4773
    %v4775 = vpop.xlane.xlu0 %4774
    %v4776 = vmul.f32 %v4775, 0.03125
    %v4777 = vadd.f32 %v4776, 1e-12
    %v4778 = vrsqrt.pop %v4777
    %v4779 = vmul.f32 %v4771, %v4778
    %v4780 = vmul.f32 %v4779, %v4766
    %v4782 = vrot.slane %v4766, 1
    %v4784 = vadd.f32 %v4780, %v4782
    %4785 = vst.msk [vmem:[#allocation3] sm:$0x1] %vm185, %v4784
    %v4786 = vsel %vm185, %v4765, 0.0
    %4787 = vadd.xlane.f32.xlu0 %v4786
    %v4788 = vpop.xlane.xlu0 %4787
    %v4789 = vmul.f32 %v4788, 0.03125
    %v4790 = vsub.f32 %v4765, %v4789
    %v4791 = vmul.f32 %v4790, %v4790
    %v4792 = vsel %vm185, %v4791, 0.0
    %4793 = vadd.xlane.f32.xlu0 %v4792
    %v4794 = vpop.xlane.xlu0 %4793
    %v4795 = vmul.f32 %v4794, 0.03125
    %v4796 = vadd.f32 %v4795, 1e-12
    %v4797 = vrsqrt.pop %v4796
    %v4798 = vmul.f32 %v4790, %v4797
    %v4799 = vmul.f32 %v4798, %v4766
    %v4800 = vadd.f32 %v4799, %v4782
    %4801 = vst.msk [vmem:[#allocation3 + $0x1] sm:$0x1] %vm185, %v4800
    // Predicated region
    $region66: #{image_encoder_forward.1} parent=1 // pred_check
      _
    $region67: #{image_encoder_forward.1} parent=1 // pred_check_branch
      %4803 = sbr.rel (0) target = $region69
    $region68: #{image_encoder_forward.1} parent=1 // pred_region
      %s4805 = ssub.s32 32, 32
      %4806 = vsyncadd [#allocation4], %s4805
      %s4808 = sshll.u32 [#allocation3], 4
      %s4809 = int_to_ptr.vmem [resolvable:$true] %s4808
      %4811 = dma.vmem_to_hbm [thread:$0]  %s4809, 32, %s16, [#allocation4]
    $region69: #{image_encoder_forward.1} parent=1 // pred_fallthru
      _
    // Predicated region
    $region70: #{image_encoder_forward.1} parent=1 // pred_check
      _
    $region71: #{image_encoder_forward.1} parent=1 // pred_check_branch
      %4813 = sbr.rel (0) target = $region73
    $region72: #{image_encoder_forward.1} parent=1 // pred_region
      %4814 = dma.done [#allocation4], 32
    $region73: #{image_encoder_forward.1} parent=1 // pred_fallthru
      _
    %4815 = vsyncpa [#allocation4], 1

</llo_original>
